<compile_context>
chip_gen: v7x
topology: tpu7x:2x2x1
jax: 0.10.0
libtpu: 0.0.40
codegen_flags: <defaults>
</compile_context>

<pallas_src>
import functools

import numpy as np
import jax
import jax.numpy as jnp
from jax.experimental import pallas as pl
from jax.experimental.pallas import tpu as pltpu

# ----------------------------- model hyper-params (small, consistent with forward) -----
KS = 3            # Conv1d kernel size (global `KS` in the reference file)
B = 2             # batch
D_FEATURE = 16    # sequence length == d_feature (required by linear1_cov(Conv1d(d_feature, 1)))
D_MODEL = 32
D_INNER = 64
N_LAYERS = 2
N_HEAD = 2
D_K = 16
D_V = 16
CLASS_NUM = 2
LN_EPS = 1e-5
MXU_DTYPE = jnp.bfloat16   # MXU operand dtype (native on v5e/v6e/v7x); accumulation stays f32


# ----------------------------- fused kernel --------------------------------------------
def transformer_kernel(src_ref, pos_ref, emb_w_ref, emb_b_ref,
                       wqkv_ref, bqkv_ref, fcw_ref, fcb_ref,
                       ln1g_ref, ln1b_ref, w1_ref, b1_ref, w2_ref, b2_ref,
                       ln2g_ref, ln2b_ref,
                       cov_w_ref, cov_b_ref, lin_w_ref, lin_b_ref,
                       res_llm_ref, res_ref, soft_ref,
                       asm_ref, npm_ref,
                       *, n_layers, n_head, d_k, d_v):
    f32 = jnp.float32
    mx = MXU_DTYPE
    src = src_ref[...]                                   # (B, L) f32
    Bc, L = src.shape
    D = pos_ref.shape[1]

    # Selection matrices built from 2-D iota: output row l selects source position l-1 / l / l+1.
    # Used both to realize the 3-tap conv (with implicit zero padding) and to move src values
    # from the lane axis (B, L) into the sublane axis ((L, 1) columns) without exotic reshapes.
    out_pos = jax.lax.broadcasted_iota(jnp.int32, (L, L), 0)
    in_pos = jax.lax.broadcasted_iota(jnp.int32, (L, L), 1)
    sel_prev = (in_pos == out_pos - 1).astype(f32)
    sel_self = (in_pos == out_pos).astype(f32)
    sel_next = (in_pos == out_pos + 1).astype(f32)

    nz_row = jnp.where(src == 0.0, 0.0, 1.0)             # (B, L) non-pad indicator (PAD == 0)
    ew = emb_w_ref[...]                                  # (KS, D) conv taps (f32, VPU use)
    pos = pos_ref[...]                                   # (L, D) positional encoding (pos 1..L)

    # ---- word embedding: Conv1d(1, D, KS=3, padding=1) + positional encoding ----
    for b in range(Bc):
        row = src[b:b + 1, :]                                              # (1, L)
        col_m1 = jnp.sum(sel_prev * row, axis=1, keepdims=True)            # (L, 1)  x[l-1]
        col_00 = jnp.sum(sel_self * row, axis=1, keepdims=True)            # (L, 1)  x[l]
        col_p1 = jnp.sum(sel_next * row, axis=1, keepdims=True)            # (L, 1)  x[l+1]
        emb_blk = (col_m1 * ew[0:1, :] + col_00 * ew[1:2, :] + col_p1 * ew[2:3, :]
                   + emb_b_ref[...] + pos)                                 # (L, D)
        asm_ref[b * L:(b + 1) * L, :] = emb_blk
        npm_ref[b * L:(b + 1) * L, :] = jnp.sum(sel_self * nz_row[b:b + 1, :],
                                                axis=1, keepdims=True)     # non-pad column

    x2 = asm_ref[...]                                    # (B*L, D) activations
    npm = npm_ref[...]                                   # (B*L, 1) non-pad mask

    # ---- encoder layers (statically unrolled over layers / batch / heads) ----
    for l in range(n_layers):
        wqkv = wqkv_ref[l]        # (D, 3*H*Dk) bf16, Q part pre-scaled by 1/sqrt(d_k)
        bqkv = bqkv_ref[l]        # (1, 3*H*Dk) f32
        fcw = fcw_ref[l]          # (H*Dv, D)   bf16
        fcb = fcb_ref[l]          # (1, D)      f32

        # fused Q|K|V projection for the whole batch: one MXU matmul
        qkv = jnp.dot(x2.astype(mx), wqkv, preferred_element_type=f32) + bqkv   # (B*L, 3*H*Dk)

        for b in range(Bc):
            key_pad = src[b:b + 1, :] == 0.0              # (1, L) True where key is PAD
            r0, r1 = b * L, (b + 1) * L
            mha_b = jnp.zeros((L, D), f32)
            for h in range(n_head):
                q0 = h * d_k
                k0 = (n_head + h) * d_k
                v0 = 2 * n_head * d_k + h * d_v
                qh = qkv[r0:r1, q0:q0 + d_k].astype(mx)   # (L, Dk)
                kh = qkv[r0:r1, k0:k0 + d_k].astype(mx)
                vh = qkv[r0:r1, v0:v0 + d_v].astype(mx)
                s = jax.lax.dot_general(qh, kh, (((1,), (1,)), ((), ())),
                                        preferred_element_type=f32)          # q @ k^T (L, L)
                # masked_fill(mask, -inf): large finite value to avoid 0*NaN on all-pad rows
                s = jnp.where(key_pad, -1e30, s)
                s = s - jnp.max(s, axis=-1, keepdims=True)
                p = jnp.exp(s)
                attn = p * pl.reciprocal(jnp.sum(p, axis=-1, keepdims=True), approx=True)
                ctx = jnp.dot(attn.astype(mx), vh, preferred_element_type=f32)    # (L, Dv)
                # heads are summed straight into the output projection (no concatenate)
                mha_b = mha_b + jnp.dot(ctx.astype(mx), fcw[h * d_v:(h + 1) * d_v, :],
                                        preferred_element_type=f32)
            asm_ref[r0:r1, :] = mha_b

        y = asm_ref[...] + fcb + x2                        # fc bias + residual
        mu = jnp.mean(y, axis=-1, keepdims=True)           # LayerNorm(d_model)
        var = jnp.mean((y - mu) ** 2, axis=-1, keepdims=True)
        y = (y - mu) * jax.lax.rsqrt(var + LN_EPS) * ln1g_ref[l] + ln1b_ref[l]
        y = y * npm                                        # enc_output *= non_pad_mask

        # position-wise feed forward
        h1 = jnp.maximum(jnp.dot(y.astype(mx), w1_ref[l], preferred_element_type=f32)
                         + b1_ref[l], 0.0)
        ff = jnp.dot(h1.astype(mx), w2_ref[l], preferred_element_type=f32) + b2_ref[l]
        z = ff + y
        mu2 = jnp.mean(z, axis=-1, keepdims=True)
        var2 = jnp.mean((z - mu2) ** 2, axis=-1, keepdims=True)
        z = (z - mu2) * jax.lax.rsqrt(var2 + LN_EPS) * ln2g_ref[l] + ln2b_ref[l]
        x2 = z * npm                                       # enc_output *= non_pad_mask

    # ---- head: linear1_cov (Conv1d(d_feature, 1, 1)) + linear1_linear + softmax(dim=1) ----
    covw = cov_w_ref[...]            # (1, L) bf16
    linw = lin_w_ref[...]            # (D, C) bf16
    for b in range(Bc):
        enc_b = x2[b * L:(b + 1) * L, :].astype(mx)                            # (L, D)
        r = jnp.dot(covw, enc_b, preferred_element_type=f32) + cov_b_ref[...]  # (1, D)
        res_llm_ref[b] = r
        o = jnp.dot(r.astype(mx), linw, preferred_element_type=f32) + lin_b_ref[...]  # (1, C)
        res_ref[b:b + 1, :] = o
        e = jnp.exp(o - jnp.max(o, axis=-1, keepdims=True))
        soft_ref[b:b + 1, :] = e / jnp.sum(e, axis=-1, keepdims=True)   # exact division


# ----------------------------- pallas_call wrapper ---------------------------------------
def transformer_forward(src_seq, kp):
    Bc, L = src_seq.shape
    kernel = functools.partial(transformer_kernel, n_layers=N_LAYERS, n_head=N_HEAD,
                               d_k=D_K, d_v=D_V)
    full = lambda s: pl.BlockSpec(s, lambda i, _s=s: (0,) * len(_s))
    operands = (src_seq, kp["pos"], kp["emb_w"], kp["emb_b"],
                kp["wqkv"], kp["bqkv"], kp["fcw"], kp["fcb"],
                kp["ln1g"], kp["ln1b"], kp["w1"], kp["b1"], kp["w2"], kp["b2"],
                kp["ln2g"], kp["ln2b"],
                kp["cov_w"], kp["cov_b"], kp["lin_w"], kp["lin_b"])
    out_shape = (jax.ShapeDtypeStruct((Bc, 1, D_MODEL), jnp.float32),   # res_llm
                 jax.ShapeDtypeStruct((Bc, CLASS_NUM), jnp.float32),    # res
                 jax.ShapeDtypeStruct((Bc, CLASS_NUM), jnp.float32))    # soft
    res_llm, res, soft = pl.pallas_call(
        kernel,
        out_shape=out_shape,
        grid=(1,),                                   # single grid step: whole model fused
        in_specs=[full(x.shape) for x in operands],
        out_specs=tuple(full(s.shape) for s in out_shape),
        scratch_shapes=[pltpu.VMEM((Bc * L, D_MODEL), jnp.float32),     # activation assembly
                        pltpu.VMEM((Bc * L, 1), jnp.float32)],          # non-pad mask column
        compiler_params=pltpu.CompilerParams(dimension_semantics=("arbitrary",)),
    )(*operands)
    return res, res_llm, soft


# ----------------------------- deterministic parameter init -----------------------------
def sinusoid_table(n_position, d_hid):
    pos = np.arange(n_position)[:, None].astype(np.float64)
    hid = np.arange(d_hid)[None, :]
    angle = pos / np.power(10000.0, 2 * (hid // 2) / d_hid)
    table = np.zeros((n_position, d_hid), dtype=np.float32)
    table[:, 0::2] = np.sin(angle[:, 0::2])
    table[:, 1::2] = np.cos(angle[:, 1::2])
    table[0] = 0.0  # padding_idx = 0
    return jnp.asarray(table)


def init_params(key):
    keys = iter(jax.random.split(key, 64))
    nrm = lambda shape, s=0.1: (s * jax.random.normal(next(keys), shape)).astype(jnp.float32)
    params = {
        "emb_w": nrm((KS, D_MODEL)),                # == torch conv weight (D_MODEL,1,KS) transposed
        "emb_b": nrm((1, D_MODEL), 0.02),
        "pos": sinusoid_table(D_FEATURE + 1, D_MODEL)[1:D_FEATURE + 1],  # positions 1..L
        "cov_w": nrm((1, D_FEATURE)),               # linear1_cov: Conv1d(d_feature, 1, 1)
        "cov_b": nrm((1, 1), 0.02),
        "lin_w": nrm((D_MODEL, CLASS_NUM)),         # linear1_linear
        "lin_b": nrm((1, CLASS_NUM), 0.02),
        "layers": [],
    }
    for _ in range(N_LAYERS):
        params["layers"].append({
            "wq": nrm((D_MODEL, N_HEAD * D_K)), "bq": nrm((1, N_HEAD * D_K), 0.02),
            "wk": nrm((D_MODEL, N_HEAD * D_K)), "bk": nrm((1, N_HEAD * D_K), 0.02),
            "wv": nrm((D_MODEL, N_HEAD * D_V)), "bv": nrm((1, N_HEAD * D_V), 0.02),
            "fcw": nrm((N_HEAD * D_V, D_MODEL)), "fcb": nrm((1, D_MODEL), 0.02),
            "ln1g": jnp.ones((1, D_MODEL), jnp.float32), "ln1b": jnp.zeros((1, D_MODEL), jnp.float32),
            "w1": nrm((D_MODEL, D_INNER)), "b1": nrm((1, D_INNER), 0.02),
            "w2": nrm((D_INNER, D_MODEL)), "b2": nrm((1, D_MODEL), 0.02),
            "ln2g": jnp.ones((1, D_MODEL), jnp.float32), "ln2b": jnp.zeros((1, D_MODEL), jnp.float32),
        })
    return params
    # TODO(synk): dropout layers are identity (inference mode); bn/bn2/linear2_* are unused in forward.


def pack_params(params):
    """Stack per-layer weights, fuse Q|K|V, fold 1/sqrt(d_k) into Q, cast MXU operands to bf16."""
    scale = 1.0 / float(D_K) ** 0.5
    mx = MXU_DTYPE
    layers = params["layers"]
    wqkv = jnp.stack([jnp.concatenate([lp["wq"] * scale, lp["wk"], lp["wv"]], axis=1)
                      for lp in layers])                                   # (NL, D, 3*H*Dk)
    bqkv = jnp.stack([jnp.concatenate([lp["bq"] * scale, lp["bk"], lp["bv"]], axis=1)
                      for lp in layers])                                   # (NL, 1, 3*H*Dk)
    stack = lambda name: jnp.stack([lp[name] for lp in layers])
    return {
        "pos": params["pos"], "emb_w": params["emb_w"], "emb_b": params["emb_b"],
        "wqkv": wqkv.astype(mx), "bqkv": bqkv,
        "fcw": stack("fcw").astype(mx), "fcb": stack("fcb"),
        "ln1g": stack("ln1g"), "ln1b": stack("ln1b"),
        "w1": stack("w1").astype(mx), "b1": stack("b1"),
        "w2": stack("w2").astype(mx), "b2": stack("b2"),
        "ln2g": stack("ln2g"), "ln2b": stack("ln2b"),
        "cov_w": params["cov_w"].astype(mx), "cov_b": params["cov_b"],
        "lin_w": params["lin_w"].astype(mx), "lin_b": params["lin_b"],
    }


# ----------------------------- main -----------------------------------------------------
if __name__ == "__main__":
    root = jax.random.PRNGKey(0)
    pkey, xkey = jax.random.split(root)
    params = init_params(pkey)
    kparams = pack_params(params)
    src_seq = jax.random.normal(xkey, (B, D_FEATURE), dtype=jnp.float32)  # nonzero => no PAD

    fwd = jax.jit(lambda x: transformer_forward(x, kparams))
    res, res_llm, soft = fwd(src_seq)
    jax.block_until_ready((res, res_llm, soft))

    assert res.shape == (B, CLASS_NUM)
    assert res_llm.shape == (B, 1, D_MODEL)
    assert soft.shape == (B, CLASS_NUM)
    assert bool(jnp.all(jnp.isfinite(res))) and bool(jnp.all(jnp.isfinite(soft)))
    assert bool(jnp.allclose(jnp.sum(soft, axis=1), 1.0, atol=1e-5))
    print("KERNEL_OK")
</pallas_src>

<mosaic_0001>
module attributes {stable_mosaic.version = 11 : i64} {
  func.func @transformer_kernel(%arg0: i32, %arg1: memref<2x16xf32, #tpu.memory_space<vmem>>, %arg2: memref<16x32xf32, #tpu.memory_space<vmem>>, %arg3: memref<3x32xf32, #tpu.memory_space<vmem>>, %arg4: memref<1x32xf32, #tpu.memory_space<vmem>>, %arg5: memref<2x32x96xbf16, #tpu.memory_space<vmem>>, %arg6: memref<2x1x96xf32, #tpu.memory_space<vmem>>, %arg7: memref<2x32x32xbf16, #tpu.memory_space<vmem>>, %arg8: memref<2x1x32xf32, #tpu.memory_space<vmem>>, %arg9: memref<2x1x32xf32, #tpu.memory_space<vmem>>, %arg10: memref<2x1x32xf32, #tpu.memory_space<vmem>>, %arg11: memref<2x32x64xbf16, #tpu.memory_space<vmem>>, %arg12: memref<2x1x64xf32, #tpu.memory_space<vmem>>, %arg13: memref<2x64x32xbf16, #tpu.memory_space<vmem>>, %arg14: memref<2x1x32xf32, #tpu.memory_space<vmem>>, %arg15: memref<2x1x32xf32, #tpu.memory_space<vmem>>, %arg16: memref<2x1x32xf32, #tpu.memory_space<vmem>>, %arg17: memref<1x16xbf16, #tpu.memory_space<vmem>>, %arg18: memref<1x1xf32, #tpu.memory_space<vmem>>, %arg19: memref<32x2xbf16, #tpu.memory_space<vmem>>, %arg20: memref<1x2xf32, #tpu.memory_space<vmem>>, %arg21: memref<2x1x32xf32, #tpu.memory_space<vmem>>, %arg22: memref<2x2xf32, #tpu.memory_space<vmem>>, %arg23: memref<2x2xf32, #tpu.memory_space<vmem>>, %arg24: memref<32x32xf32, #tpu.memory_space<vmem>>, %arg25: memref<32x1xf32, #tpu.memory_space<vmem>>) attributes {dimension_semantics = [#tpu.dimension_semantics<arbitrary>], iteration_bounds = array<i64: 1>, scalar_prefetch = 0 : i64, scratch_operands = 2 : i64, tpu.core_type = #tpu.core_type<tc>, window_params = [{pipeline_mode = #tpu.pipeline_mode<synchronous>, transform_indices = @transform_0, window_bounds = array<i64: 2, 16>}, {pipeline_mode = #tpu.pipeline_mode<synchronous>, transform_indices = @transform_1, window_bounds = array<i64: 16, 32>}, {pipeline_mode = #tpu.pipeline_mode<synchronous>, transform_indices = @transform_2, window_bounds = array<i64: 3, 32>}, {pipeline_mode = #tpu.pipeline_mode<synchronous>, transform_indices = @transform_3, window_bounds = array<i64: 1, 32>}, {pipeline_mode = #tpu.pipeline_mode<synchronous>, transform_indices = @transform_4, window_bounds = array<i64: 2, 32, 96>}, {pipeline_mode = #tpu.pipeline_mode<synchronous>, transform_indices = @transform_5, window_bounds = array<i64: 2, 1, 96>}, {pipeline_mode = #tpu.pipeline_mode<synchronous>, transform_indices = @transform_6, window_bounds = array<i64: 2, 32, 32>}, {pipeline_mode = #tpu.pipeline_mode<synchronous>, transform_indices = @transform_7, window_bounds = array<i64: 2, 1, 32>}, {pipeline_mode = #tpu.pipeline_mode<synchronous>, transform_indices = @transform_8, window_bounds = array<i64: 2, 1, 32>}, {pipeline_mode = #tpu.pipeline_mode<synchronous>, transform_indices = @transform_9, window_bounds = array<i64: 2, 1, 32>}, {pipeline_mode = #tpu.pipeline_mode<synchronous>, transform_indices = @transform_10, window_bounds = array<i64: 2, 32, 64>}, {pipeline_mode = #tpu.pipeline_mode<synchronous>, transform_indices = @transform_11, window_bounds = array<i64: 2, 1, 64>}, {pipeline_mode = #tpu.pipeline_mode<synchronous>, transform_indices = @transform_12, window_bounds = array<i64: 2, 64, 32>}, {pipeline_mode = #tpu.pipeline_mode<synchronous>, transform_indices = @transform_13, window_bounds = array<i64: 2, 1, 32>}, {pipeline_mode = #tpu.pipeline_mode<synchronous>, transform_indices = @transform_14, window_bounds = array<i64: 2, 1, 32>}, {pipeline_mode = #tpu.pipeline_mode<synchronous>, transform_indices = @transform_15, window_bounds = array<i64: 2, 1, 32>}, {pipeline_mode = #tpu.pipeline_mode<synchronous>, transform_indices = @transform_16, window_bounds = array<i64: 1, 16>}, {pipeline_mode = #tpu.pipeline_mode<synchronous>, transform_indices = @transform_17, window_bounds = array<i64: 1, 1>}, {pipeline_mode = #tpu.pipeline_mode<synchronous>, transform_indices = @transform_18, window_bounds = array<i64: 32, 2>}, {pipeline_mode = #tpu.pipeline_mode<synchronous>, transform_indices = @transform_19, window_bounds = array<i64: 1, 2>}, {pipeline_mode = #tpu.pipeline_mode<synchronous>, transform_indices = @transform_20, window_bounds = array<i64: 2, 1, 32>}, {pipeline_mode = #tpu.pipeline_mode<synchronous>, transform_indices = @transform_21, window_bounds = array<i64: 2, 2>}, {pipeline_mode = #tpu.pipeline_mode<synchronous>, transform_indices = @transform_22, window_bounds = array<i64: 2, 2>}]} {
    %c0 = arith.constant 0 : index
    %c0_0 = arith.constant 0 : index
    %0 = vector.load %arg1[%c0, %c0_0] : memref<2x16xf32, #tpu.memory_space<vmem>>, vector<2x16xf32>
    %1 = tpu.iota {dimensions = array<i32: 0>} : vector<16x16xi32>
    %2 = tpu.iota {dimensions = array<i32: 1>} : vector<16x16xi32>
    %c1_i32 = arith.constant 1 : i32
    %3 = vector.broadcast %c1_i32 : i32 to vector<16x16xi32>
    %4 = arith.subi %1, %3 : vector<16x16xi32>
    %5 = arith.cmpi eq, %2, %4 : vector<16x16xi32>
    %6 = arith.extui %5 : vector<16x16xi1> to vector<16x16xi32>
    %7 = arith.sitofp %6 : vector<16x16xi32> to vector<16x16xf32>
    %8 = arith.cmpi eq, %2, %1 : vector<16x16xi32>
    %9 = arith.extui %8 : vector<16x16xi1> to vector<16x16xi32>
    %10 = arith.sitofp %9 : vector<16x16xi32> to vector<16x16xf32>
    %c1_i32_1 = arith.constant 1 : i32
    %11 = vector.broadcast %c1_i32_1 : i32 to vector<16x16xi32>
    %12 = arith.addi %1, %11 : vector<16x16xi32>
    %13 = arith.cmpi eq, %2, %12 : vector<16x16xi32>
    %14 = arith.extui %13 : vector<16x16xi1> to vector<16x16xi32>
    %15 = arith.sitofp %14 : vector<16x16xi32> to vector<16x16xf32>
    %cst = arith.constant 0.000000e+00 : f32
    %16 = vector.broadcast %cst : f32 to vector<2x16xf32>
    %17 = arith.cmpf oeq, %0, %16 : vector<2x16xf32>
    %cst_2 = arith.constant 0.000000e+00 : f32
    %cst_3 = arith.constant 1.000000e+00 : f32
    %18 = vector.broadcast %cst_2 : f32 to vector<2x16xf32>
    %19 = vector.broadcast %cst_3 : f32 to vector<2x16xf32>
    %20 = arith.select %17, %18, %19 : vector<2x16xi1>, vector<2x16xf32>
    %c0_4 = arith.constant 0 : index
    %c0_5 = arith.constant 0 : index
    %21 = vector.load %arg3[%c0_4, %c0_5] : memref<3x32xf32, #tpu.memory_space<vmem>>, vector<3x32xf32>
    %c0_6 = arith.constant 0 : index
    %c0_7 = arith.constant 0 : index
    %22 = vector.load %arg2[%c0_6, %c0_7] : memref<16x32xf32, #tpu.memory_space<vmem>>, vector<16x32xf32>
    %23 = vector.extract_strided_slice %0 {offsets = [0, 0], sizes = [1, 16], strides = [1, 1]} : vector<2x16xf32> to vector<1x16xf32>
    %24 = vector.broadcast %23 : vector<1x16xf32> to vector<16x16xf32>
    %25 = arith.mulf %7, %24 : vector<16x16xf32>
    %cst_8 = arith.constant dense<0.000000e+00> : vector<16xf32>
    %26 = vector.multi_reduction <add>, %25, %cst_8 [1] : vector<16x16xf32> to vector<16xf32>
    %27 = vector.shape_cast %26 : vector<16xf32> to vector<16x1xf32>
    %28 = vector.broadcast %23 : vector<1x16xf32> to vector<16x16xf32>
    %29 = arith.mulf %10, %28 : vector<16x16xf32>
    %cst_9 = arith.constant dense<0.000000e+00> : vector<16xf32>
    %30 = vector.multi_reduction <add>, %29, %cst_9 [1] : vector<16x16xf32> to vector<16xf32>
    %31 = vector.shape_cast %30 : vector<16xf32> to vector<16x1xf32>
    %32 = vector.broadcast %23 : vector<1x16xf32> to vector<16x16xf32>
    %33 = arith.mulf %15, %32 : vector<16x16xf32>
    %cst_10 = arith.constant dense<0.000000e+00> : vector<16xf32>
    %34 = vector.multi_reduction <add>, %33, %cst_10 [1] : vector<16x16xf32> to vector<16xf32>
    %35 = vector.shape_cast %34 : vector<16xf32> to vector<16x1xf32>
    %36 = vector.extract_strided_slice %21 {offsets = [0, 0], sizes = [1, 32], strides = [1, 1]} : vector<3x32xf32> to vector<1x32xf32>
    %37 = vector.broadcast %27 : vector<16x1xf32> to vector<16x32xf32>
    %38 = vector.broadcast %36 : vector<1x32xf32> to vector<16x32xf32>
    %39 = arith.mulf %37, %38 : vector<16x32xf32>
    %40 = vector.extract_strided_slice %21 {offsets = [1, 0], sizes = [1, 32], strides = [1, 1]} : vector<3x32xf32> to vector<1x32xf32>
    %41 = vector.broadcast %31 : vector<16x1xf32> to vector<16x32xf32>
    %42 = vector.broadcast %40 : vector<1x32xf32> to vector<16x32xf32>
    %43 = arith.mulf %41, %42 : vector<16x32xf32>
    %44 = arith.addf %39, %43 : vector<16x32xf32>
    %45 = vector.extract_strided_slice %21 {offsets = [2, 0], sizes = [1, 32], strides = [1, 1]} : vector<3x32xf32> to vector<1x32xf32>
    %46 = vector.broadcast %35 : vector<16x1xf32> to vector<16x32xf32>
    %47 = vector.broadcast %45 : vector<1x32xf32> to vector<16x32xf32>
    %48 = arith.mulf %46, %47 : vector<16x32xf32>
    %49 = arith.addf %44, %48 : vector<16x32xf32>
    %c0_11 = arith.constant 0 : index
    %c0_12 = arith.constant 0 : index
    %50 = vector.load %arg4[%c0_11, %c0_12] : memref<1x32xf32, #tpu.memory_space<vmem>>, vector<1x32xf32>
    %51 = vector.broadcast %50 : vector<1x32xf32> to vector<16x32xf32>
    %52 = arith.addf %49, %51 : vector<16x32xf32>
    %53 = arith.addf %52, %22 : vector<16x32xf32>
    %c0_13 = arith.constant 0 : index
    %c0_14 = arith.constant 0 : index
    %54 = vector.load %arg24[%c0_13, %c0_14] : memref<32x32xf32, #tpu.memory_space<vmem>>, vector<16x32xf32>
    tpu.vector_store %arg24[%c0_13, %c0_14], %53 {strides = array<i32>} : memref<32x32xf32, #tpu.memory_space<vmem>>, vector<16x32xf32>,
    %55 = vector.extract_strided_slice %20 {offsets = [0, 0], sizes = [1, 16], strides = [1, 1]} : vector<2x16xf32> to vector<1x16xf32>
    %56 = vector.broadcast %55 : vector<1x16xf32> to vector<16x16xf32>
    %57 = arith.mulf %10, %56 : vector<16x16xf32>
    %cst_15 = arith.constant dense<0.000000e+00> : vector<16xf32>
    %58 = vector.multi_reduction <add>, %57, %cst_15 [1] : vector<16x16xf32> to vector<16xf32>
    %59 = vector.shape_cast %58 : vector<16xf32> to vector<16x1xf32>
    %c0_16 = arith.constant 0 : index
    %c0_17 = arith.constant 0 : index
    %60 = vector.load %arg25[%c0_16, %c0_17] : memref<32x1xf32, #tpu.memory_space<vmem>>, vector<16x1xf32>
    tpu.vector_store %arg25[%c0_16, %c0_17], %59 {strides = array<i32>} : memref<32x1xf32, #tpu.memory_space<vmem>>, vector<16x1xf32>,
    %61 = vector.extract_strided_slice %0 {offsets = [1, 0], sizes = [1, 16], strides = [1, 1]} : vector<2x16xf32> to vector<1x16xf32>
    %62 = vector.broadcast %61 : vector<1x16xf32> to vector<16x16xf32>
    %63 = arith.mulf %7, %62 : vector<16x16xf32>
    %cst_18 = arith.constant dense<0.000000e+00> : vector<16xf32>
    %64 = vector.multi_reduction <add>, %63, %cst_18 [1] : vector<16x16xf32> to vector<16xf32>
    %65 = vector.shape_cast %64 : vector<16xf32> to vector<16x1xf32>
    %66 = vector.broadcast %61 : vector<1x16xf32> to vector<16x16xf32>
    %67 = arith.mulf %10, %66 : vector<16x16xf32>
    %cst_19 = arith.constant dense<0.000000e+00> : vector<16xf32>
    %68 = vector.multi_reduction <add>, %67, %cst_19 [1] : vector<16x16xf32> to vector<16xf32>
    %69 = vector.shape_cast %68 : vector<16xf32> to vector<16x1xf32>
    %70 = vector.broadcast %61 : vector<1x16xf32> to vector<16x16xf32>
    %71 = arith.mulf %15, %70 : vector<16x16xf32>
    %cst_20 = arith.constant dense<0.000000e+00> : vector<16xf32>
    %72 = vector.multi_reduction <add>, %71, %cst_20 [1] : vector<16x16xf32> to vector<16xf32>
    %73 = vector.shape_cast %72 : vector<16xf32> to vector<16x1xf32>
    %74 = vector.extract_strided_slice %21 {offsets = [0, 0], sizes = [1, 32], strides = [1, 1]} : vector<3x32xf32> to vector<1x32xf32>
    %75 = vector.broadcast %65 : vector<16x1xf32> to vector<16x32xf32>
    %76 = vector.broadcast %74 : vector<1x32xf32> to vector<16x32xf32>
    %77 = arith.mulf %75, %76 : vector<16x32xf32>
    %78 = vector.extract_strided_slice %21 {offsets = [1, 0], sizes = [1, 32], strides = [1, 1]} : vector<3x32xf32> to vector<1x32xf32>
    %79 = vector.broadcast %69 : vector<16x1xf32> to vector<16x32xf32>
    %80 = vector.broadcast %78 : vector<1x32xf32> to vector<16x32xf32>
    %81 = arith.mulf %79, %80 : vector<16x32xf32>
    %82 = arith.addf %77, %81 : vector<16x32xf32>
    %83 = vector.extract_strided_slice %21 {offsets = [2, 0], sizes = [1, 32], strides = [1, 1]} : vector<3x32xf32> to vector<1x32xf32>
    %84 = vector.broadcast %73 : vector<16x1xf32> to vector<16x32xf32>
    %85 = vector.broadcast %83 : vector<1x32xf32> to vector<16x32xf32>
    %86 = arith.mulf %84, %85 : vector<16x32xf32>
    %87 = arith.addf %82, %86 : vector<16x32xf32>
    %c0_21 = arith.constant 0 : index
    %c0_22 = arith.constant 0 : index
    %88 = vector.load %arg4[%c0_21, %c0_22] : memref<1x32xf32, #tpu.memory_space<vmem>>, vector<1x32xf32>
    %89 = vector.broadcast %88 : vector<1x32xf32> to vector<16x32xf32>
    %90 = arith.addf %87, %89 : vector<16x32xf32>
    %91 = arith.addf %90, %22 : vector<16x32xf32>
    %c16 = arith.constant 16 : index
    %c0_23 = arith.constant 0 : index
    %92 = vector.load %arg24[%c16, %c0_23] : memref<32x32xf32, #tpu.memory_space<vmem>>, vector<16x32xf32>
    tpu.vector_store %arg24[%c16, %c0_23], %91 {strides = array<i32>} : memref<32x32xf32, #tpu.memory_space<vmem>>, vector<16x32xf32>,
    %93 = vector.extract_strided_slice %20 {offsets = [1, 0], sizes = [1, 16], strides = [1, 1]} : vector<2x16xf32> to vector<1x16xf32>
    %94 = vector.broadcast %93 : vector<1x16xf32> to vector<16x16xf32>
    %95 = arith.mulf %10, %94 : vector<16x16xf32>
    %cst_24 = arith.constant dense<0.000000e+00> : vector<16xf32>
    %96 = vector.multi_reduction <add>, %95, %cst_24 [1] : vector<16x16xf32> to vector<16xf32>
    %97 = vector.shape_cast %96 : vector<16xf32> to vector<16x1xf32>
    %c16_25 = arith.constant 16 : index
    %c0_26 = arith.constant 0 : index
    %98 = vector.load %arg25[%c16_25, %c0_26] : memref<32x1xf32, #tpu.memory_space<vmem>>, vector<16x1xf32>
    tpu.vector_store %arg25[%c16_25, %c0_26], %97 {strides = array<i32>} : memref<32x1xf32, #tpu.memory_space<vmem>>, vector<16x1xf32>,
    %c0_27 = arith.constant 0 : index
    %c0_28 = arith.constant 0 : index
    %99 = vector.load %arg24[%c0_27, %c0_28] : memref<32x32xf32, #tpu.memory_space<vmem>>, vector<32x32xf32>
    %c0_29 = arith.constant 0 : index
    %c0_30 = arith.constant 0 : index
    %100 = vector.load %arg25[%c0_29, %c0_30] : memref<32x1xf32, #tpu.memory_space<vmem>>, vector<32x1xf32>
    %c0_31 = arith.constant 0 : index
    %c0_32 = arith.constant 0 : index
    %c0_33 = arith.constant 0 : index
    %101 = vector.load %arg5[%c0_31, %c0_32, %c0_33] : memref<2x32x96xbf16, #tpu.memory_space<vmem>>, vector<1x32x96xbf16>
    %102 = vector.shape_cast %101 : vector<1x32x96xbf16> to vector<32x96xbf16>
    %c0_34 = arith.constant 0 : index
    %c0_35 = arith.constant 0 : index
    %c0_36 = arith.constant 0 : index
    %103 = vector.load %arg6[%c0_34, %c0_35, %c0_36] : memref<2x1x96xf32, #tpu.memory_space<vmem>>, vector<1x1x96xf32>
    %104 = vector.shape_cast %103 : vector<1x1x96xf32> to vector<1x96xf32>
    %c0_37 = arith.constant 0 : index
    %c0_38 = arith.constant 0 : index
    %c0_39 = arith.constant 0 : index
    %105 = vector.load %arg7[%c0_37, %c0_38, %c0_39] : memref<2x32x32xbf16, #tpu.memory_space<vmem>>, vector<1x32x32xbf16>
    %106 = vector.shape_cast %105 : vector<1x32x32xbf16> to vector<32x32xbf16>
    %c0_40 = arith.constant 0 : index
    %c0_41 = arith.constant 0 : index
    %c0_42 = arith.constant 0 : index
    %107 = vector.load %arg8[%c0_40, %c0_41, %c0_42] : memref<2x1x32xf32, #tpu.memory_space<vmem>>, vector<1x1x32xf32>
    %108 = vector.shape_cast %107 : vector<1x1x32xf32> to vector<1x32xf32>
    %109 = arith.truncf %99 : vector<32x32xf32> to vector<32x32xbf16>
    %cst_43 = arith.constant dense<0.000000e+00> : vector<32x96xf32>
    %110 = tpu.matmul %109, %102, %cst_43 {dimension_numbers = #tpu.dot_dimension_numbers<[1], [0], [0], [1], [0, 0, 1, 1], [], []>} : vector<32x32xbf16>, vector<32x96xbf16>, vector<32x96xf32> -> vector<32x96xf32>
    %111 = vector.broadcast %104 : vector<1x96xf32> to vector<32x96xf32>
    %112 = arith.addf %110, %111 : vector<32x96xf32>
    %113 = vector.extract_strided_slice %0 {offsets = [0, 0], sizes = [1, 16], strides = [1, 1]} : vector<2x16xf32> to vector<1x16xf32>
    %cst_44 = arith.constant 0.000000e+00 : f32
    %114 = vector.broadcast %cst_44 : f32 to vector<1x16xf32>
    %115 = arith.cmpf oeq, %113, %114 : vector<1x16xf32>
    %cst_45 = arith.constant 0.000000e+00 : f32
    %116 = vector.broadcast %cst_45 : f32 to vector<16x32xf32>
    %117 = vector.extract_strided_slice %112 {offsets = [0, 0], sizes = [16, 16], strides = [1, 1]} : vector<32x96xf32> to vector<16x16xf32>
    %118 = arith.truncf %117 : vector<16x16xf32> to vector<16x16xbf16>
    %119 = vector.extract_strided_slice %112 {offsets = [0, 32], sizes = [16, 16], strides = [1, 1]} : vector<32x96xf32> to vector<16x16xf32>
    %120 = arith.truncf %119 : vector<16x16xf32> to vector<16x16xbf16>
    %121 = vector.extract_strided_slice %112 {offsets = [0, 64], sizes = [16, 16], strides = [1, 1]} : vector<32x96xf32> to vector<16x16xf32>
    %122 = arith.truncf %121 : vector<16x16xf32> to vector<16x16xbf16>
    %cst_46 = arith.constant dense<0.000000e+00> : vector<16x16xf32>
    %123 = tpu.matmul %118, %120, %cst_46 {dimension_numbers = #tpu.dot_dimension_numbers<[1], [1], [0], [0], [0, 0, 1, 0], [], []>} : vector<16x16xbf16>, vector<16x16xbf16>, vector<16x16xf32> -> vector<16x16xf32>
    %cst_47 = arith.constant -1.000000e+30 : f32
    %124 = vector.shape_cast %115 : vector<1x16xi1> to vector<1x16xi1>
    %125 = vector.broadcast %124 : vector<1x16xi1> to vector<16x16xi1>
    %126 = vector.broadcast %cst_47 : f32 to vector<16x16xf32>
    %127 = arith.select %125, %126, %123 : vector<16x16xi1>, vector<16x16xf32>
    %cst_48 = arith.constant dense<0xFF800000> : vector<16xf32>
    %128 = vector.multi_reduction <maximumf>, %127, %cst_48 [1] : vector<16x16xf32> to vector<16xf32>
    %129 = vector.shape_cast %128 : vector<16xf32> to vector<16x1xf32>
    %130 = vector.broadcast %129 : vector<16x1xf32> to vector<16x16xf32>
    %131 = arith.subf %127, %130 : vector<16x16xf32>
    %132 = math.exp %131 : vector<16x16xf32>
    %cst_49 = arith.constant dense<0.000000e+00> : vector<16xf32>
    %133 = vector.multi_reduction <add>, %132, %cst_49 [1] : vector<16x16xf32> to vector<16xf32>
    %134 = vector.shape_cast %133 : vector<16xf32> to vector<16x1xf32>
    %135 = tpu.reciprocal %134 {approx = true} : vector<16x1xf32> -> vector<16x1xf32>
    %136 = vector.broadcast %135 : vector<16x1xf32> to vector<16x16xf32>
    %137 = arith.mulf %132, %136 : vector<16x16xf32>
    %138 = arith.truncf %137 : vector<16x16xf32> to vector<16x16xbf16>
    %cst_50 = arith.constant dense<0.000000e+00> : vector<16x16xf32>
    %139 = tpu.matmul %138, %122, %cst_50 {dimension_numbers = #tpu.dot_dimension_numbers<[1], [0], [0], [1], [0, 0, 1, 1], [], []>} : vector<16x16xbf16>, vector<16x16xbf16>, vector<16x16xf32> -> vector<16x16xf32>
    %140 = arith.truncf %139 : vector<16x16xf32> to vector<16x16xbf16>
    %141 = vector.extract_strided_slice %106 {offsets = [0, 0], sizes = [16, 32], strides = [1, 1]} : vector<32x32xbf16> to vector<16x32xbf16>
    %cst_51 = arith.constant dense<0.000000e+00> : vector<16x32xf32>
    %142 = tpu.matmul %140, %141, %cst_51 {dimension_numbers = #tpu.dot_dimension_numbers<[1], [0], [0], [1], [0, 0, 1, 1], [], []>} : vector<16x16xbf16>, vector<16x32xbf16>, vector<16x32xf32> -> vector<16x32xf32>
    %143 = arith.addf %116, %142 : vector<16x32xf32>
    %144 = vector.extract_strided_slice %112 {offsets = [0, 16], sizes = [16, 16], strides = [1, 1]} : vector<32x96xf32> to vector<16x16xf32>
    %145 = arith.truncf %144 : vector<16x16xf32> to vector<16x16xbf16>
    %146 = vector.extract_strided_slice %112 {offsets = [0, 48], sizes = [16, 16], strides = [1, 1]} : vector<32x96xf32> to vector<16x16xf32>
    %147 = arith.truncf %146 : vector<16x16xf32> to vector<16x16xbf16>
    %148 = vector.extract_strided_slice %112 {offsets = [0, 80], sizes = [16, 16], strides = [1, 1]} : vector<32x96xf32> to vector<16x16xf32>
    %149 = arith.truncf %148 : vector<16x16xf32> to vector<16x16xbf16>
    %cst_52 = arith.constant dense<0.000000e+00> : vector<16x16xf32>
    %150 = tpu.matmul %145, %147, %cst_52 {dimension_numbers = #tpu.dot_dimension_numbers<[1], [1], [0], [0], [0, 0, 1, 0], [], []>} : vector<16x16xbf16>, vector<16x16xbf16>, vector<16x16xf32> -> vector<16x16xf32>
    %cst_53 = arith.constant -1.000000e+30 : f32
    %151 = vector.shape_cast %115 : vector<1x16xi1> to vector<1x16xi1>
    %152 = vector.broadcast %151 : vector<1x16xi1> to vector<16x16xi1>
    %153 = vector.broadcast %cst_53 : f32 to vector<16x16xf32>
    %154 = arith.select %152, %153, %150 : vector<16x16xi1>, vector<16x16xf32>
    %cst_54 = arith.constant dense<0xFF800000> : vector<16xf32>
    %155 = vector.multi_reduction <maximumf>, %154, %cst_54 [1] : vector<16x16xf32> to vector<16xf32>
    %156 = vector.shape_cast %155 : vector<16xf32> to vector<16x1xf32>
    %157 = vector.broadcast %156 : vector<16x1xf32> to vector<16x16xf32>
    %158 = arith.subf %154, %157 : vector<16x16xf32>
    %159 = math.exp %158 : vector<16x16xf32>
    %cst_55 = arith.constant dense<0.000000e+00> : vector<16xf32>
    %160 = vector.multi_reduction <add>, %159, %cst_55 [1] : vector<16x16xf32> to vector<16xf32>
    %161 = vector.shape_cast %160 : vector<16xf32> to vector<16x1xf32>
    %162 = tpu.reciprocal %161 {approx = true} : vector<16x1xf32> -> vector<16x1xf32>
    %163 = vector.broadcast %162 : vector<16x1xf32> to vector<16x16xf32>
    %164 = arith.mulf %159, %163 : vector<16x16xf32>
    %165 = arith.truncf %164 : vector<16x16xf32> to vector<16x16xbf16>
    %cst_56 = arith.constant dense<0.000000e+00> : vector<16x16xf32>
    %166 = tpu.matmul %165, %149, %cst_56 {dimension_numbers = #tpu.dot_dimension_numbers<[1], [0], [0], [1], [0, 0, 1, 1], [], []>} : vector<16x16xbf16>, vector<16x16xbf16>, vector<16x16xf32> -> vector<16x16xf32>
    %167 = arith.truncf %166 : vector<16x16xf32> to vector<16x16xbf16>
    %168 = vector.extract_strided_slice %106 {offsets = [16, 0], sizes = [16, 32], strides = [1, 1]} : vector<32x32xbf16> to vector<16x32xbf16>
    %cst_57 = arith.constant dense<0.000000e+00> : vector<16x32xf32>
    %169 = tpu.matmul %167, %168, %cst_57 {dimension_numbers = #tpu.dot_dimension_numbers<[1], [0], [0], [1], [0, 0, 1, 1], [], []>} : vector<16x16xbf16>, vector<16x32xbf16>, vector<16x32xf32> -> vector<16x32xf32>
    %170 = arith.addf %143, %169 : vector<16x32xf32>
    %c0_58 = arith.constant 0 : index
    %c0_59 = arith.constant 0 : index
    %171 = vector.load %arg24[%c0_58, %c0_59] : memref<32x32xf32, #tpu.memory_space<vmem>>, vector<16x32xf32>
    tpu.vector_store %arg24[%c0_58, %c0_59], %170 {strides = array<i32>} : memref<32x32xf32, #tpu.memory_space<vmem>>, vector<16x32xf32>,
    %172 = vector.extract_strided_slice %0 {offsets = [1, 0], sizes = [1, 16], strides = [1, 1]} : vector<2x16xf32> to vector<1x16xf32>
    %cst_60 = arith.constant 0.000000e+00 : f32
    %173 = vector.broadcast %cst_60 : f32 to vector<1x16xf32>
    %174 = arith.cmpf oeq, %172, %173 : vector<1x16xf32>
    %cst_61 = arith.constant 0.000000e+00 : f32
    %175 = vector.broadcast %cst_61 : f32 to vector<16x32xf32>
    %176 = vector.extract_strided_slice %112 {offsets = [16, 0], sizes = [16, 16], strides = [1, 1]} : vector<32x96xf32> to vector<16x16xf32>
    %177 = arith.truncf %176 : vector<16x16xf32> to vector<16x16xbf16>
    %178 = vector.extract_strided_slice %112 {offsets = [16, 32], sizes = [16, 16], strides = [1, 1]} : vector<32x96xf32> to vector<16x16xf32>
    %179 = arith.truncf %178 : vector<16x16xf32> to vector<16x16xbf16>
    %180 = vector.extract_strided_slice %112 {offsets = [16, 64], sizes = [16, 16], strides = [1, 1]} : vector<32x96xf32> to vector<16x16xf32>
    %181 = arith.truncf %180 : vector<16x16xf32> to vector<16x16xbf16>
    %cst_62 = arith.constant dense<0.000000e+00> : vector<16x16xf32>
    %182 = tpu.matmul %177, %179, %cst_62 {dimension_numbers = #tpu.dot_dimension_numbers<[1], [1], [0], [0], [0, 0, 1, 0], [], []>} : vector<16x16xbf16>, vector<16x16xbf16>, vector<16x16xf32> -> vector<16x16xf32>
    %cst_63 = arith.constant -1.000000e+30 : f32
    %183 = vector.shape_cast %174 : vector<1x16xi1> to vector<1x16xi1>
    %184 = vector.broadcast %183 : vector<1x16xi1> to vector<16x16xi1>
    %185 = vector.broadcast %cst_63 : f32 to vector<16x16xf32>
    %186 = arith.select %184, %185, %182 : vector<16x16xi1>, vector<16x16xf32>
    %cst_64 = arith.constant dense<0xFF800000> : vector<16xf32>
    %187 = vector.multi_reduction <maximumf>, %186, %cst_64 [1] : vector<16x16xf32> to vector<16xf32>
    %188 = vector.shape_cast %187 : vector<16xf32> to vector<16x1xf32>
    %189 = vector.broadcast %188 : vector<16x1xf32> to vector<16x16xf32>
    %190 = arith.subf %186, %189 : vector<16x16xf32>
    %191 = math.exp %190 : vector<16x16xf32>
    %cst_65 = arith.constant dense<0.000000e+00> : vector<16xf32>
    %192 = vector.multi_reduction <add>, %191, %cst_65 [1] : vector<16x16xf32> to vector<16xf32>
    %193 = vector.shape_cast %192 : vector<16xf32> to vector<16x1xf32>
    %194 = tpu.reciprocal %193 {approx = true} : vector<16x1xf32> -> vector<16x1xf32>
    %195 = vector.broadcast %194 : vector<16x1xf32> to vector<16x16xf32>
    %196 = arith.mulf %191, %195 : vector<16x16xf32>
    %197 = arith.truncf %196 : vector<16x16xf32> to vector<16x16xbf16>
    %cst_66 = arith.constant dense<0.000000e+00> : vector<16x16xf32>
    %198 = tpu.matmul %197, %181, %cst_66 {dimension_numbers = #tpu.dot_dimension_numbers<[1], [0], [0], [1], [0, 0, 1, 1], [], []>} : vector<16x16xbf16>, vector<16x16xbf16>, vector<16x16xf32> -> vector<16x16xf32>
    %199 = arith.truncf %198 : vector<16x16xf32> to vector<16x16xbf16>
    %200 = vector.extract_strided_slice %106 {offsets = [0, 0], sizes = [16, 32], strides = [1, 1]} : vector<32x32xbf16> to vector<16x32xbf16>
    %cst_67 = arith.constant dense<0.000000e+00> : vector<16x32xf32>
    %201 = tpu.matmul %199, %200, %cst_67 {dimension_numbers = #tpu.dot_dimension_numbers<[1], [0], [0], [1], [0, 0, 1, 1], [], []>} : vector<16x16xbf16>, vector<16x32xbf16>, vector<16x32xf32> -> vector<16x32xf32>
    %202 = arith.addf %175, %201 : vector<16x32xf32>
    %203 = vector.extract_strided_slice %112 {offsets = [16, 16], sizes = [16, 16], strides = [1, 1]} : vector<32x96xf32> to vector<16x16xf32>
    %204 = arith.truncf %203 : vector<16x16xf32> to vector<16x16xbf16>
    %205 = vector.extract_strided_slice %112 {offsets = [16, 48], sizes = [16, 16], strides = [1, 1]} : vector<32x96xf32> to vector<16x16xf32>
    %206 = arith.truncf %205 : vector<16x16xf32> to vector<16x16xbf16>
    %207 = vector.extract_strided_slice %112 {offsets = [16, 80], sizes = [16, 16], strides = [1, 1]} : vector<32x96xf32> to vector<16x16xf32>
    %208 = arith.truncf %207 : vector<16x16xf32> to vector<16x16xbf16>
    %cst_68 = arith.constant dense<0.000000e+00> : vector<16x16xf32>
    %209 = tpu.matmul %204, %206, %cst_68 {dimension_numbers = #tpu.dot_dimension_numbers<[1], [1], [0], [0], [0, 0, 1, 0], [], []>} : vector<16x16xbf16>, vector<16x16xbf16>, vector<16x16xf32> -> vector<16x16xf32>
    %cst_69 = arith.constant -1.000000e+30 : f32
    %210 = vector.shape_cast %174 : vector<1x16xi1> to vector<1x16xi1>
    %211 = vector.broadcast %210 : vector<1x16xi1> to vector<16x16xi1>
    %212 = vector.broadcast %cst_69 : f32 to vector<16x16xf32>
    %213 = arith.select %211, %212, %209 : vector<16x16xi1>, vector<16x16xf32>
    %cst_70 = arith.constant dense<0xFF800000> : vector<16xf32>
    %214 = vector.multi_reduction <maximumf>, %213, %cst_70 [1] : vector<16x16xf32> to vector<16xf32>
    %215 = vector.shape_cast %214 : vector<16xf32> to vector<16x1xf32>
    %216 = vector.broadcast %215 : vector<16x1xf32> to vector<16x16xf32>
    %217 = arith.subf %213, %216 : vector<16x16xf32>
    %218 = math.exp %217 : vector<16x16xf32>
    %cst_71 = arith.constant dense<0.000000e+00> : vector<16xf32>
    %219 = vector.multi_reduction <add>, %218, %cst_71 [1] : vector<16x16xf32> to vector<16xf32>
    %220 = vector.shape_cast %219 : vector<16xf32> to vector<16x1xf32>
    %221 = tpu.reciprocal %220 {approx = true} : vector<16x1xf32> -> vector<16x1xf32>
    %222 = vector.broadcast %221 : vector<16x1xf32> to vector<16x16xf32>
    %223 = arith.mulf %218, %222 : vector<16x16xf32>
    %224 = arith.truncf %223 : vector<16x16xf32> to vector<16x16xbf16>
    %cst_72 = arith.constant dense<0.000000e+00> : vector<16x16xf32>
    %225 = tpu.matmul %224, %208, %cst_72 {dimension_numbers = #tpu.dot_dimension_numbers<[1], [0], [0], [1], [0, 0, 1, 1], [], []>} : vector<16x16xbf16>, vector<16x16xbf16>, vector<16x16xf32> -> vector<16x16xf32>
    %226 = arith.truncf %225 : vector<16x16xf32> to vector<16x16xbf16>
    %227 = vector.extract_strided_slice %106 {offsets = [16, 0], sizes = [16, 32], strides = [1, 1]} : vector<32x32xbf16> to vector<16x32xbf16>
    %cst_73 = arith.constant dense<0.000000e+00> : vector<16x32xf32>
    %228 = tpu.matmul %226, %227, %cst_73 {dimension_numbers = #tpu.dot_dimension_numbers<[1], [0], [0], [1], [0, 0, 1, 1], [], []>} : vector<16x16xbf16>, vector<16x32xbf16>, vector<16x32xf32> -> vector<16x32xf32>
    %229 = arith.addf %202, %228 : vector<16x32xf32>
    %c16_74 = arith.constant 16 : index
    %c0_75 = arith.constant 0 : index
    %230 = vector.load %arg24[%c16_74, %c0_75] : memref<32x32xf32, #tpu.memory_space<vmem>>, vector<16x32xf32>
    tpu.vector_store %arg24[%c16_74, %c0_75], %229 {strides = array<i32>} : memref<32x32xf32, #tpu.memory_space<vmem>>, vector<16x32xf32>,
    %c0_76 = arith.constant 0 : index
    %c0_77 = arith.constant 0 : index
    %231 = vector.load %arg24[%c0_76, %c0_77] : memref<32x32xf32, #tpu.memory_space<vmem>>, vector<32x32xf32>
    %232 = vector.broadcast %108 : vector<1x32xf32> to vector<32x32xf32>
    %233 = arith.addf %231, %232 : vector<32x32xf32>
    %234 = arith.addf %233, %99 : vector<32x32xf32>
    %cst_78 = arith.constant dense<0.000000e+00> : vector<32xf32>
    %235 = vector.multi_reduction <add>, %234, %cst_78 [1] : vector<32x32xf32> to vector<32xf32>
    %236 = vector.shape_cast %235 : vector<32xf32> to vector<32x1xf32>
    %cst_79 = arith.constant 3.200000e+01 : f32
    %237 = vector.broadcast %cst_79 : f32 to vector<32x1xf32>
    %238 = arith.divf %236, %237 : vector<32x1xf32>
    %239 = vector.broadcast %238 : vector<32x1xf32> to vector<32x32xf32>
    %240 = arith.subf %234, %239 : vector<32x32xf32>
    %241 = arith.mulf %240, %240 : vector<32x32xf32>
    %cst_80 = arith.constant dense<0.000000e+00> : vector<32xf32>
    %242 = vector.multi_reduction <add>, %241, %cst_80 [1] : vector<32x32xf32> to vector<32xf32>
    %243 = vector.shape_cast %242 : vector<32xf32> to vector<32x1xf32>
    %cst_81 = arith.constant 3.200000e+01 : f32
    %244 = vector.broadcast %cst_81 : f32 to vector<32x1xf32>
    %245 = arith.divf %243, %244 : vector<32x1xf32>
    %246 = vector.broadcast %238 : vector<32x1xf32> to vector<32x32xf32>
    %247 = arith.subf %234, %246 : vector<32x32xf32>
    %cst_82 = arith.constant 9.99999974E-6 : f32
    %248 = vector.broadcast %cst_82 : f32 to vector<32x1xf32>
    %249 = arith.addf %245, %248 : vector<32x1xf32>
    %250 = math.rsqrt %249 : vector<32x1xf32>
    %251 = vector.broadcast %250 : vector<32x1xf32> to vector<32x32xf32>
    %252 = arith.mulf %247, %251 : vector<32x32xf32>
    %c0_83 = arith.constant 0 : index
    %c0_84 = arith.constant 0 : index
    %c0_85 = arith.constant 0 : index
    %253 = vector.load %arg9[%c0_83, %c0_84, %c0_85] : memref<2x1x32xf32, #tpu.memory_space<vmem>>, vector<1x1x32xf32>
    %254 = vector.shape_cast %253 : vector<1x1x32xf32> to vector<1x32xf32>
    %255 = vector.broadcast %254 : vector<1x32xf32> to vector<32x32xf32>
    %256 = arith.mulf %252, %255 : vector<32x32xf32>
    %c0_86 = arith.constant 0 : index
    %c0_87 = arith.constant 0 : index
    %c0_88 = arith.constant 0 : index
    %257 = vector.load %arg10[%c0_86, %c0_87, %c0_88] : memref<2x1x32xf32, #tpu.memory_space<vmem>>, vector<1x1x32xf32>
    %258 = vector.shape_cast %257 : vector<1x1x32xf32> to vector<1x32xf32>
    %259 = vector.broadcast %258 : vector<1x32xf32> to vector<32x32xf32>
    %260 = arith.addf %256, %259 : vector<32x32xf32>
    %261 = vector.broadcast %100 : vector<32x1xf32> to vector<32x32xf32>
    %262 = arith.mulf %260, %261 : vector<32x32xf32>
    %263 = arith.truncf %262 : vector<32x32xf32> to vector<32x32xbf16>
    %c0_89 = arith.constant 0 : index
    %c0_90 = arith.constant 0 : index
    %c0_91 = arith.constant 0 : index
    %264 = vector.load %arg11[%c0_89, %c0_90, %c0_91] : memref<2x32x64xbf16, #tpu.memory_space<vmem>>, vector<1x32x64xbf16>
    %265 = vector.shape_cast %264 : vector<1x32x64xbf16> to vector<32x64xbf16>
    %cst_92 = arith.constant dense<0.000000e+00> : vector<32x64xf32>
    %266 = tpu.matmul %263, %265, %cst_92 {dimension_numbers = #tpu.dot_dimension_numbers<[1], [0], [0], [1], [0, 0, 1, 1], [], []>} : vector<32x32xbf16>, vector<32x64xbf16>, vector<32x64xf32> -> vector<32x64xf32>
    %c0_93 = arith.constant 0 : index
    %c0_94 = arith.constant 0 : index
    %c0_95 = arith.constant 0 : index
    %267 = vector.load %arg12[%c0_93, %c0_94, %c0_95] : memref<2x1x64xf32, #tpu.memory_space<vmem>>, vector<1x1x64xf32>
    %268 = vector.shape_cast %267 : vector<1x1x64xf32> to vector<1x64xf32>
    %269 = vector.broadcast %268 : vector<1x64xf32> to vector<32x64xf32>
    %270 = arith.addf %266, %269 : vector<32x64xf32>
    %cst_96 = arith.constant 0.000000e+00 : f32
    %271 = vector.broadcast %cst_96 : f32 to vector<32x64xf32>
    %272 = arith.maximumf %270, %271 : vector<32x64xf32>
    %273 = arith.truncf %272 : vector<32x64xf32> to vector<32x64xbf16>
    %c0_97 = arith.constant 0 : index
    %c0_98 = arith.constant 0 : index
    %c0_99 = arith.constant 0 : index
    %274 = vector.load %arg13[%c0_97, %c0_98, %c0_99] : memref<2x64x32xbf16, #tpu.memory_space<vmem>>, vector<1x64x32xbf16>
    %275 = vector.shape_cast %274 : vector<1x64x32xbf16> to vector<64x32xbf16>
    %cst_100 = arith.constant dense<0.000000e+00> : vector<32x32xf32>
    %276 = tpu.matmul %273, %275, %cst_100 {dimension_numbers = #tpu.dot_dimension_numbers<[1], [0], [0], [1], [0, 0, 1, 1], [], []>} : vector<32x64xbf16>, vector<64x32xbf16>, vector<32x32xf32> -> vector<32x32xf32>
    %c0_101 = arith.constant 0 : index
    %c0_102 = arith.constant 0 : index
    %c0_103 = arith.constant 0 : index
    %277 = vector.load %arg14[%c0_101, %c0_102, %c0_103] : memref<2x1x32xf32, #tpu.memory_space<vmem>>, vector<1x1x32xf32>
    %278 = vector.shape_cast %277 : vector<1x1x32xf32> to vector<1x32xf32>
    %279 = vector.broadcast %278 : vector<1x32xf32> to vector<32x32xf32>
    %280 = arith.addf %276, %279 : vector<32x32xf32>
    %281 = arith.addf %280, %262 : vector<32x32xf32>
    %cst_104 = arith.constant dense<0.000000e+00> : vector<32xf32>
    %282 = vector.multi_reduction <add>, %281, %cst_104 [1] : vector<32x32xf32> to vector<32xf32>
    %283 = vector.shape_cast %282 : vector<32xf32> to vector<32x1xf32>
    %cst_105 = arith.constant 3.200000e+01 : f32
    %284 = vector.broadcast %cst_105 : f32 to vector<32x1xf32>
    %285 = arith.divf %283, %284 : vector<32x1xf32>
    %286 = vector.broadcast %285 : vector<32x1xf32> to vector<32x32xf32>
    %287 = arith.subf %281, %286 : vector<32x32xf32>
    %288 = arith.mulf %287, %287 : vector<32x32xf32>
    %cst_106 = arith.constant dense<0.000000e+00> : vector<32xf32>
    %289 = vector.multi_reduction <add>, %288, %cst_106 [1] : vector<32x32xf32> to vector<32xf32>
    %290 = vector.shape_cast %289 : vector<32xf32> to vector<32x1xf32>
    %cst_107 = arith.constant 3.200000e+01 : f32
    %291 = vector.broadcast %cst_107 : f32 to vector<32x1xf32>
    %292 = arith.divf %290, %291 : vector<32x1xf32>
    %293 = vector.broadcast %285 : vector<32x1xf32> to vector<32x32xf32>
    %294 = arith.subf %281, %293 : vector<32x32xf32>
    %cst_108 = arith.constant 9.99999974E-6 : f32
    %295 = vector.broadcast %cst_108 : f32 to vector<32x1xf32>
    %296 = arith.addf %292, %295 : vector<32x1xf32>
    %297 = math.rsqrt %296 : vector<32x1xf32>
    %298 = vector.broadcast %297 : vector<32x1xf32> to vector<32x32xf32>
    %299 = arith.mulf %294, %298 : vector<32x32xf32>
    %c0_109 = arith.constant 0 : index
    %c0_110 = arith.constant 0 : index
    %c0_111 = arith.constant 0 : index
    %300 = vector.load %arg15[%c0_109, %c0_110, %c0_111] : memref<2x1x32xf32, #tpu.memory_space<vmem>>, vector<1x1x32xf32>
    %301 = vector.shape_cast %300 : vector<1x1x32xf32> to vector<1x32xf32>
    %302 = vector.broadcast %301 : vector<1x32xf32> to vector<32x32xf32>
    %303 = arith.mulf %299, %302 : vector<32x32xf32>
    %c0_112 = arith.constant 0 : index
    %c0_113 = arith.constant 0 : index
    %c0_114 = arith.constant 0 : index
    %304 = vector.load %arg16[%c0_112, %c0_113, %c0_114] : memref<2x1x32xf32, #tpu.memory_space<vmem>>, vector<1x1x32xf32>
    %305 = vector.shape_cast %304 : vector<1x1x32xf32> to vector<1x32xf32>
    %306 = vector.broadcast %305 : vector<1x32xf32> to vector<32x32xf32>
    %307 = arith.addf %303, %306 : vector<32x32xf32>
    %308 = vector.broadcast %100 : vector<32x1xf32> to vector<32x32xf32>
    %309 = arith.mulf %307, %308 : vector<32x32xf32>
    %c1 = arith.constant 1 : index
    %c0_115 = arith.constant 0 : index
    %c0_116 = arith.constant 0 : index
    %310 = vector.load %arg5[%c1, %c0_115, %c0_116] : memref<2x32x96xbf16, #tpu.memory_space<vmem>>, vector<1x32x96xbf16>
    %311 = vector.shape_cast %310 : vector<1x32x96xbf16> to vector<32x96xbf16>
    %c1_117 = arith.constant 1 : index
    %c0_118 = arith.constant 0 : index
    %c0_119 = arith.constant 0 : index
    %312 = vector.load %arg6[%c1_117, %c0_118, %c0_119] : memref<2x1x96xf32, #tpu.memory_space<vmem>>, vector<1x1x96xf32>
    %313 = vector.shape_cast %312 : vector<1x1x96xf32> to vector<1x96xf32>
    %c1_120 = arith.constant 1 : index
    %c0_121 = arith.constant 0 : index
    %c0_122 = arith.constant 0 : index
    %314 = vector.load %arg7[%c1_120, %c0_121, %c0_122] : memref<2x32x32xbf16, #tpu.memory_space<vmem>>, vector<1x32x32xbf16>
    %315 = vector.shape_cast %314 : vector<1x32x32xbf16> to vector<32x32xbf16>
    %c1_123 = arith.constant 1 : index
    %c0_124 = arith.constant 0 : index
    %c0_125 = arith.constant 0 : index
    %316 = vector.load %arg8[%c1_123, %c0_124, %c0_125] : memref<2x1x32xf32, #tpu.memory_space<vmem>>, vector<1x1x32xf32>
    %317 = vector.shape_cast %316 : vector<1x1x32xf32> to vector<1x32xf32>
    %318 = arith.truncf %309 : vector<32x32xf32> to vector<32x32xbf16>
    %cst_126 = arith.constant dense<0.000000e+00> : vector<32x96xf32>
    %319 = tpu.matmul %318, %311, %cst_126 {dimension_numbers = #tpu.dot_dimension_numbers<[1], [0], [0], [1], [0, 0, 1, 1], [], []>} : vector<32x32xbf16>, vector<32x96xbf16>, vector<32x96xf32> -> vector<32x96xf32>
    %320 = vector.broadcast %313 : vector<1x96xf32> to vector<32x96xf32>
    %321 = arith.addf %319, %320 : vector<32x96xf32>
    %322 = vector.extract_strided_slice %0 {offsets = [0, 0], sizes = [1, 16], strides = [1, 1]} : vector<2x16xf32> to vector<1x16xf32>
    %cst_127 = arith.constant 0.000000e+00 : f32
    %323 = vector.broadcast %cst_127 : f32 to vector<1x16xf32>
    %324 = arith.cmpf oeq, %322, %323 : vector<1x16xf32>
    %cst_128 = arith.constant 0.000000e+00 : f32
    %325 = vector.broadcast %cst_128 : f32 to vector<16x32xf32>
    %326 = vector.extract_strided_slice %321 {offsets = [0, 0], sizes = [16, 16], strides = [1, 1]} : vector<32x96xf32> to vector<16x16xf32>
    %327 = arith.truncf %326 : vector<16x16xf32> to vector<16x16xbf16>
    %328 = vector.extract_strided_slice %321 {offsets = [0, 32], sizes = [16, 16], strides = [1, 1]} : vector<32x96xf32> to vector<16x16xf32>
    %329 = arith.truncf %328 : vector<16x16xf32> to vector<16x16xbf16>
    %330 = vector.extract_strided_slice %321 {offsets = [0, 64], sizes = [16, 16], strides = [1, 1]} : vector<32x96xf32> to vector<16x16xf32>
    %331 = arith.truncf %330 : vector<16x16xf32> to vector<16x16xbf16>
    %cst_129 = arith.constant dense<0.000000e+00> : vector<16x16xf32>
    %332 = tpu.matmul %327, %329, %cst_129 {dimension_numbers = #tpu.dot_dimension_numbers<[1], [1], [0], [0], [0, 0, 1, 0], [], []>} : vector<16x16xbf16>, vector<16x16xbf16>, vector<16x16xf32> -> vector<16x16xf32>
    %cst_130 = arith.constant -1.000000e+30 : f32
    %333 = vector.shape_cast %324 : vector<1x16xi1> to vector<1x16xi1>
    %334 = vector.broadcast %333 : vector<1x16xi1> to vector<16x16xi1>
    %335 = vector.broadcast %cst_130 : f32 to vector<16x16xf32>
    %336 = arith.select %334, %335, %332 : vector<16x16xi1>, vector<16x16xf32>
    %cst_131 = arith.constant dense<0xFF800000> : vector<16xf32>
    %337 = vector.multi_reduction <maximumf>, %336, %cst_131 [1] : vector<16x16xf32> to vector<16xf32>
    %338 = vector.shape_cast %337 : vector<16xf32> to vector<16x1xf32>
    %339 = vector.broadcast %338 : vector<16x1xf32> to vector<16x16xf32>
    %340 = arith.subf %336, %339 : vector<16x16xf32>
    %341 = math.exp %340 : vector<16x16xf32>
    %cst_132 = arith.constant dense<0.000000e+00> : vector<16xf32>
    %342 = vector.multi_reduction <add>, %341, %cst_132 [1] : vector<16x16xf32> to vector<16xf32>
    %343 = vector.shape_cast %342 : vector<16xf32> to vector<16x1xf32>
    %344 = tpu.reciprocal %343 {approx = true} : vector<16x1xf32> -> vector<16x1xf32>
    %345 = vector.broadcast %344 : vector<16x1xf32> to vector<16x16xf32>
    %346 = arith.mulf %341, %345 : vector<16x16xf32>
    %347 = arith.truncf %346 : vector<16x16xf32> to vector<16x16xbf16>
    %cst_133 = arith.constant dense<0.000000e+00> : vector<16x16xf32>
    %348 = tpu.matmul %347, %331, %cst_133 {dimension_numbers = #tpu.dot_dimension_numbers<[1], [0], [0], [1], [0, 0, 1, 1], [], []>} : vector<16x16xbf16>, vector<16x16xbf16>, vector<16x16xf32> -> vector<16x16xf32>
    %349 = arith.truncf %348 : vector<16x16xf32> to vector<16x16xbf16>
    %350 = vector.extract_strided_slice %315 {offsets = [0, 0], sizes = [16, 32], strides = [1, 1]} : vector<32x32xbf16> to vector<16x32xbf16>
    %cst_134 = arith.constant dense<0.000000e+00> : vector<16x32xf32>
    %351 = tpu.matmul %349, %350, %cst_134 {dimension_numbers = #tpu.dot_dimension_numbers<[1], [0], [0], [1], [0, 0, 1, 1], [], []>} : vector<16x16xbf16>, vector<16x32xbf16>, vector<16x32xf32> -> vector<16x32xf32>
    %352 = arith.addf %325, %351 : vector<16x32xf32>
    %353 = vector.extract_strided_slice %321 {offsets = [0, 16], sizes = [16, 16], strides = [1, 1]} : vector<32x96xf32> to vector<16x16xf32>
    %354 = arith.truncf %353 : vector<16x16xf32> to vector<16x16xbf16>
    %355 = vector.extract_strided_slice %321 {offsets = [0, 48], sizes = [16, 16], strides = [1, 1]} : vector<32x96xf32> to vector<16x16xf32>
    %356 = arith.truncf %355 : vector<16x16xf32> to vector<16x16xbf16>
    %357 = vector.extract_strided_slice %321 {offsets = [0, 80], sizes = [16, 16], strides = [1, 1]} : vector<32x96xf32> to vector<16x16xf32>
    %358 = arith.truncf %357 : vector<16x16xf32> to vector<16x16xbf16>
    %cst_135 = arith.constant dense<0.000000e+00> : vector<16x16xf32>
    %359 = tpu.matmul %354, %356, %cst_135 {dimension_numbers = #tpu.dot_dimension_numbers<[1], [1], [0], [0], [0, 0, 1, 0], [], []>} : vector<16x16xbf16>, vector<16x16xbf16>, vector<16x16xf32> -> vector<16x16xf32>
    %cst_136 = arith.constant -1.000000e+30 : f32
    %360 = vector.shape_cast %324 : vector<1x16xi1> to vector<1x16xi1>
    %361 = vector.broadcast %360 : vector<1x16xi1> to vector<16x16xi1>
    %362 = vector.broadcast %cst_136 : f32 to vector<16x16xf32>
    %363 = arith.select %361, %362, %359 : vector<16x16xi1>, vector<16x16xf32>
    %cst_137 = arith.constant dense<0xFF800000> : vector<16xf32>
    %364 = vector.multi_reduction <maximumf>, %363, %cst_137 [1] : vector<16x16xf32> to vector<16xf32>
    %365 = vector.shape_cast %364 : vector<16xf32> to vector<16x1xf32>
    %366 = vector.broadcast %365 : vector<16x1xf32> to vector<16x16xf32>
    %367 = arith.subf %363, %366 : vector<16x16xf32>
    %368 = math.exp %367 : vector<16x16xf32>
    %cst_138 = arith.constant dense<0.000000e+00> : vector<16xf32>
    %369 = vector.multi_reduction <add>, %368, %cst_138 [1] : vector<16x16xf32> to vector<16xf32>
    %370 = vector.shape_cast %369 : vector<16xf32> to vector<16x1xf32>
    %371 = tpu.reciprocal %370 {approx = true} : vector<16x1xf32> -> vector<16x1xf32>
    %372 = vector.broadcast %371 : vector<16x1xf32> to vector<16x16xf32>
    %373 = arith.mulf %368, %372 : vector<16x16xf32>
    %374 = arith.truncf %373 : vector<16x16xf32> to vector<16x16xbf16>
    %cst_139 = arith.constant dense<0.000000e+00> : vector<16x16xf32>
    %375 = tpu.matmul %374, %358, %cst_139 {dimension_numbers = #tpu.dot_dimension_numbers<[1], [0], [0], [1], [0, 0, 1, 1], [], []>} : vector<16x16xbf16>, vector<16x16xbf16>, vector<16x16xf32> -> vector<16x16xf32>
    %376 = arith.truncf %375 : vector<16x16xf32> to vector<16x16xbf16>
    %377 = vector.extract_strided_slice %315 {offsets = [16, 0], sizes = [16, 32], strides = [1, 1]} : vector<32x32xbf16> to vector<16x32xbf16>
    %cst_140 = arith.constant dense<0.000000e+00> : vector<16x32xf32>
    %378 = tpu.matmul %376, %377, %cst_140 {dimension_numbers = #tpu.dot_dimension_numbers<[1], [0], [0], [1], [0, 0, 1, 1], [], []>} : vector<16x16xbf16>, vector<16x32xbf16>, vector<16x32xf32> -> vector<16x32xf32>
    %379 = arith.addf %352, %378 : vector<16x32xf32>
    %c0_141 = arith.constant 0 : index
    %c0_142 = arith.constant 0 : index
    %380 = vector.load %arg24[%c0_141, %c0_142] : memref<32x32xf32, #tpu.memory_space<vmem>>, vector<16x32xf32>
    tpu.vector_store %arg24[%c0_141, %c0_142], %379 {strides = array<i32>} : memref<32x32xf32, #tpu.memory_space<vmem>>, vector<16x32xf32>,
    %381 = vector.extract_strided_slice %0 {offsets = [1, 0], sizes = [1, 16], strides = [1, 1]} : vector<2x16xf32> to vector<1x16xf32>
    %cst_143 = arith.constant 0.000000e+00 : f32
    %382 = vector.broadcast %cst_143 : f32 to vector<1x16xf32>
    %383 = arith.cmpf oeq, %381, %382 : vector<1x16xf32>
    %cst_144 = arith.constant 0.000000e+00 : f32
    %384 = vector.broadcast %cst_144 : f32 to vector<16x32xf32>
    %385 = vector.extract_strided_slice %321 {offsets = [16, 0], sizes = [16, 16], strides = [1, 1]} : vector<32x96xf32> to vector<16x16xf32>
    %386 = arith.truncf %385 : vector<16x16xf32> to vector<16x16xbf16>
    %387 = vector.extract_strided_slice %321 {offsets = [16, 32], sizes = [16, 16], strides = [1, 1]} : vector<32x96xf32> to vector<16x16xf32>
    %388 = arith.truncf %387 : vector<16x16xf32> to vector<16x16xbf16>
    %389 = vector.extract_strided_slice %321 {offsets = [16, 64], sizes = [16, 16], strides = [1, 1]} : vector<32x96xf32> to vector<16x16xf32>
    %390 = arith.truncf %389 : vector<16x16xf32> to vector<16x16xbf16>
    %cst_145 = arith.constant dense<0.000000e+00> : vector<16x16xf32>
    %391 = tpu.matmul %386, %388, %cst_145 {dimension_numbers = #tpu.dot_dimension_numbers<[1], [1], [0], [0], [0, 0, 1, 0], [], []>} : vector<16x16xbf16>, vector<16x16xbf16>, vector<16x16xf32> -> vector<16x16xf32>
    %cst_146 = arith.constant -1.000000e+30 : f32
    %392 = vector.shape_cast %383 : vector<1x16xi1> to vector<1x16xi1>
    %393 = vector.broadcast %392 : vector<1x16xi1> to vector<16x16xi1>
    %394 = vector.broadcast %cst_146 : f32 to vector<16x16xf32>
    %395 = arith.select %393, %394, %391 : vector<16x16xi1>, vector<16x16xf32>
    %cst_147 = arith.constant dense<0xFF800000> : vector<16xf32>
    %396 = vector.multi_reduction <maximumf>, %395, %cst_147 [1] : vector<16x16xf32> to vector<16xf32>
    %397 = vector.shape_cast %396 : vector<16xf32> to vector<16x1xf32>
    %398 = vector.broadcast %397 : vector<16x1xf32> to vector<16x16xf32>
    %399 = arith.subf %395, %398 : vector<16x16xf32>
    %400 = math.exp %399 : vector<16x16xf32>
    %cst_148 = arith.constant dense<0.000000e+00> : vector<16xf32>
    %401 = vector.multi_reduction <add>, %400, %cst_148 [1] : vector<16x16xf32> to vector<16xf32>
    %402 = vector.shape_cast %401 : vector<16xf32> to vector<16x1xf32>
    %403 = tpu.reciprocal %402 {approx = true} : vector<16x1xf32> -> vector<16x1xf32>
    %404 = vector.broadcast %403 : vector<16x1xf32> to vector<16x16xf32>
    %405 = arith.mulf %400, %404 : vector<16x16xf32>
    %406 = arith.truncf %405 : vector<16x16xf32> to vector<16x16xbf16>
    %cst_149 = arith.constant dense<0.000000e+00> : vector<16x16xf32>
    %407 = tpu.matmul %406, %390, %cst_149 {dimension_numbers = #tpu.dot_dimension_numbers<[1], [0], [0], [1], [0, 0, 1, 1], [], []>} : vector<16x16xbf16>, vector<16x16xbf16>, vector<16x16xf32> -> vector<16x16xf32>
    %408 = arith.truncf %407 : vector<16x16xf32> to vector<16x16xbf16>
    %409 = vector.extract_strided_slice %315 {offsets = [0, 0], sizes = [16, 32], strides = [1, 1]} : vector<32x32xbf16> to vector<16x32xbf16>
    %cst_150 = arith.constant dense<0.000000e+00> : vector<16x32xf32>
    %410 = tpu.matmul %408, %409, %cst_150 {dimension_numbers = #tpu.dot_dimension_numbers<[1], [0], [0], [1], [0, 0, 1, 1], [], []>} : vector<16x16xbf16>, vector<16x32xbf16>, vector<16x32xf32> -> vector<16x32xf32>
    %411 = arith.addf %384, %410 : vector<16x32xf32>
    %412 = vector.extract_strided_slice %321 {offsets = [16, 16], sizes = [16, 16], strides = [1, 1]} : vector<32x96xf32> to vector<16x16xf32>
    %413 = arith.truncf %412 : vector<16x16xf32> to vector<16x16xbf16>
    %414 = vector.extract_strided_slice %321 {offsets = [16, 48], sizes = [16, 16], strides = [1, 1]} : vector<32x96xf32> to vector<16x16xf32>
    %415 = arith.truncf %414 : vector<16x16xf32> to vector<16x16xbf16>
    %416 = vector.extract_strided_slice %321 {offsets = [16, 80], sizes = [16, 16], strides = [1, 1]} : vector<32x96xf32> to vector<16x16xf32>
    %417 = arith.truncf %416 : vector<16x16xf32> to vector<16x16xbf16>
    %cst_151 = arith.constant dense<0.000000e+00> : vector<16x16xf32>
    %418 = tpu.matmul %413, %415, %cst_151 {dimension_numbers = #tpu.dot_dimension_numbers<[1], [1], [0], [0], [0, 0, 1, 0], [], []>} : vector<16x16xbf16>, vector<16x16xbf16>, vector<16x16xf32> -> vector<16x16xf32>
    %cst_152 = arith.constant -1.000000e+30 : f32
    %419 = vector.shape_cast %383 : vector<1x16xi1> to vector<1x16xi1>
    %420 = vector.broadcast %419 : vector<1x16xi1> to vector<16x16xi1>
    %421 = vector.broadcast %cst_152 : f32 to vector<16x16xf32>
    %422 = arith.select %420, %421, %418 : vector<16x16xi1>, vector<16x16xf32>
    %cst_153 = arith.constant dense<0xFF800000> : vector<16xf32>
    %423 = vector.multi_reduction <maximumf>, %422, %cst_153 [1] : vector<16x16xf32> to vector<16xf32>
    %424 = vector.shape_cast %423 : vector<16xf32> to vector<16x1xf32>
    %425 = vector.broadcast %424 : vector<16x1xf32> to vector<16x16xf32>
    %426 = arith.subf %422, %425 : vector<16x16xf32>
    %427 = math.exp %426 : vector<16x16xf32>
    %cst_154 = arith.constant dense<0.000000e+00> : vector<16xf32>
    %428 = vector.multi_reduction <add>, %427, %cst_154 [1] : vector<16x16xf32> to vector<16xf32>
    %429 = vector.shape_cast %428 : vector<16xf32> to vector<16x1xf32>
    %430 = tpu.reciprocal %429 {approx = true} : vector<16x1xf32> -> vector<16x1xf32>
    %431 = vector.broadcast %430 : vector<16x1xf32> to vector<16x16xf32>
    %432 = arith.mulf %427, %431 : vector<16x16xf32>
    %433 = arith.truncf %432 : vector<16x16xf32> to vector<16x16xbf16>
    %cst_155 = arith.constant dense<0.000000e+00> : vector<16x16xf32>
    %434 = tpu.matmul %433, %417, %cst_155 {dimension_numbers = #tpu.dot_dimension_numbers<[1], [0], [0], [1], [0, 0, 1, 1], [], []>} : vector<16x16xbf16>, vector<16x16xbf16>, vector<16x16xf32> -> vector<16x16xf32>
    %435 = arith.truncf %434 : vector<16x16xf32> to vector<16x16xbf16>
    %436 = vector.extract_strided_slice %315 {offsets = [16, 0], sizes = [16, 32], strides = [1, 1]} : vector<32x32xbf16> to vector<16x32xbf16>
    %cst_156 = arith.constant dense<0.000000e+00> : vector<16x32xf32>
    %437 = tpu.matmul %435, %436, %cst_156 {dimension_numbers = #tpu.dot_dimension_numbers<[1], [0], [0], [1], [0, 0, 1, 1], [], []>} : vector<16x16xbf16>, vector<16x32xbf16>, vector<16x32xf32> -> vector<16x32xf32>
    %438 = arith.addf %411, %437 : vector<16x32xf32>
    %c16_157 = arith.constant 16 : index
    %c0_158 = arith.constant 0 : index
    %439 = vector.load %arg24[%c16_157, %c0_158] : memref<32x32xf32, #tpu.memory_space<vmem>>, vector<16x32xf32>
    tpu.vector_store %arg24[%c16_157, %c0_158], %438 {strides = array<i32>} : memref<32x32xf32, #tpu.memory_space<vmem>>, vector<16x32xf32>,
    %c0_159 = arith.constant 0 : index
    %c0_160 = arith.constant 0 : index
    %440 = vector.load %arg24[%c0_159, %c0_160] : memref<32x32xf32, #tpu.memory_space<vmem>>, vector<32x32xf32>
    %441 = vector.broadcast %317 : vector<1x32xf32> to vector<32x32xf32>
    %442 = arith.addf %440, %441 : vector<32x32xf32>
    %443 = arith.addf %442, %309 : vector<32x32xf32>
    %cst_161 = arith.constant dense<0.000000e+00> : vector<32xf32>
    %444 = vector.multi_reduction <add>, %443, %cst_161 [1] : vector<32x32xf32> to vector<32xf32>
    %445 = vector.shape_cast %444 : vector<32xf32> to vector<32x1xf32>
    %cst_162 = arith.constant 3.200000e+01 : f32
    %446 = vector.broadcast %cst_162 : f32 to vector<32x1xf32>
    %447 = arith.divf %445, %446 : vector<32x1xf32>
    %448 = vector.broadcast %447 : vector<32x1xf32> to vector<32x32xf32>
    %449 = arith.subf %443, %448 : vector<32x32xf32>
    %450 = arith.mulf %449, %449 : vector<32x32xf32>
    %cst_163 = arith.constant dense<0.000000e+00> : vector<32xf32>
    %451 = vector.multi_reduction <add>, %450, %cst_163 [1] : vector<32x32xf32> to vector<32xf32>
    %452 = vector.shape_cast %451 : vector<32xf32> to vector<32x1xf32>
    %cst_164 = arith.constant 3.200000e+01 : f32
    %453 = vector.broadcast %cst_164 : f32 to vector<32x1xf32>
    %454 = arith.divf %452, %453 : vector<32x1xf32>
    %455 = vector.broadcast %447 : vector<32x1xf32> to vector<32x32xf32>
    %456 = arith.subf %443, %455 : vector<32x32xf32>
    %cst_165 = arith.constant 9.99999974E-6 : f32
    %457 = vector.broadcast %cst_165 : f32 to vector<32x1xf32>
    %458 = arith.addf %454, %457 : vector<32x1xf32>
    %459 = math.rsqrt %458 : vector<32x1xf32>
    %460 = vector.broadcast %459 : vector<32x1xf32> to vector<32x32xf32>
    %461 = arith.mulf %456, %460 : vector<32x32xf32>
    %c1_166 = arith.constant 1 : index
    %c0_167 = arith.constant 0 : index
    %c0_168 = arith.constant 0 : index
    %462 = vector.load %arg9[%c1_166, %c0_167, %c0_168] : memref<2x1x32xf32, #tpu.memory_space<vmem>>, vector<1x1x32xf32>
    %463 = vector.shape_cast %462 : vector<1x1x32xf32> to vector<1x32xf32>
    %464 = vector.broadcast %463 : vector<1x32xf32> to vector<32x32xf32>
    %465 = arith.mulf %461, %464 : vector<32x32xf32>
    %c1_169 = arith.constant 1 : index
    %c0_170 = arith.constant 0 : index
    %c0_171 = arith.constant 0 : index
    %466 = vector.load %arg10[%c1_169, %c0_170, %c0_171] : memref<2x1x32xf32, #tpu.memory_space<vmem>>, vector<1x1x32xf32>
    %467 = vector.shape_cast %466 : vector<1x1x32xf32> to vector<1x32xf32>
    %468 = vector.broadcast %467 : vector<1x32xf32> to vector<32x32xf32>
    %469 = arith.addf %465, %468 : vector<32x32xf32>
    %470 = vector.broadcast %100 : vector<32x1xf32> to vector<32x32xf32>
    %471 = arith.mulf %469, %470 : vector<32x32xf32>
    %472 = arith.truncf %471 : vector<32x32xf32> to vector<32x32xbf16>
    %c1_172 = arith.constant 1 : index
    %c0_173 = arith.constant 0 : index
    %c0_174 = arith.constant 0 : index
    %473 = vector.load %arg11[%c1_172, %c0_173, %c0_174] : memref<2x32x64xbf16, #tpu.memory_space<vmem>>, vector<1x32x64xbf16>
    %474 = vector.shape_cast %473 : vector<1x32x64xbf16> to vector<32x64xbf16>
    %cst_175 = arith.constant dense<0.000000e+00> : vector<32x64xf32>
    %475 = tpu.matmul %472, %474, %cst_175 {dimension_numbers = #tpu.dot_dimension_numbers<[1], [0], [0], [1], [0, 0, 1, 1], [], []>} : vector<32x32xbf16>, vector<32x64xbf16>, vector<32x64xf32> -> vector<32x64xf32>
    %c1_176 = arith.constant 1 : index
    %c0_177 = arith.constant 0 : index
    %c0_178 = arith.constant 0 : index
    %476 = vector.load %arg12[%c1_176, %c0_177, %c0_178] : memref<2x1x64xf32, #tpu.memory_space<vmem>>, vector<1x1x64xf32>
    %477 = vector.shape_cast %476 : vector<1x1x64xf32> to vector<1x64xf32>
    %478 = vector.broadcast %477 : vector<1x64xf32> to vector<32x64xf32>
    %479 = arith.addf %475, %478 : vector<32x64xf32>
    %cst_179 = arith.constant 0.000000e+00 : f32
    %480 = vector.broadcast %cst_179 : f32 to vector<32x64xf32>
    %481 = arith.maximumf %479, %480 : vector<32x64xf32>
    %482 = arith.truncf %481 : vector<32x64xf32> to vector<32x64xbf16>
    %c1_180 = arith.constant 1 : index
    %c0_181 = arith.constant 0 : index
    %c0_182 = arith.constant 0 : index
    %483 = vector.load %arg13[%c1_180, %c0_181, %c0_182] : memref<2x64x32xbf16, #tpu.memory_space<vmem>>, vector<1x64x32xbf16>
    %484 = vector.shape_cast %483 : vector<1x64x32xbf16> to vector<64x32xbf16>
    %cst_183 = arith.constant dense<0.000000e+00> : vector<32x32xf32>
    %485 = tpu.matmul %482, %484, %cst_183 {dimension_numbers = #tpu.dot_dimension_numbers<[1], [0], [0], [1], [0, 0, 1, 1], [], []>} : vector<32x64xbf16>, vector<64x32xbf16>, vector<32x32xf32> -> vector<32x32xf32>
    %c1_184 = arith.constant 1 : index
    %c0_185 = arith.constant 0 : index
    %c0_186 = arith.constant 0 : index
    %486 = vector.load %arg14[%c1_184, %c0_185, %c0_186] : memref<2x1x32xf32, #tpu.memory_space<vmem>>, vector<1x1x32xf32>
    %487 = vector.shape_cast %486 : vector<1x1x32xf32> to vector<1x32xf32>
    %488 = vector.broadcast %487 : vector<1x32xf32> to vector<32x32xf32>
    %489 = arith.addf %485, %488 : vector<32x32xf32>
    %490 = arith.addf %489, %471 : vector<32x32xf32>
    %cst_187 = arith.constant dense<0.000000e+00> : vector<32xf32>
    %491 = vector.multi_reduction <add>, %490, %cst_187 [1] : vector<32x32xf32> to vector<32xf32>
    %492 = vector.shape_cast %491 : vector<32xf32> to vector<32x1xf32>
    %cst_188 = arith.constant 3.200000e+01 : f32
    %493 = vector.broadcast %cst_188 : f32 to vector<32x1xf32>
    %494 = arith.divf %492, %493 : vector<32x1xf32>
    %495 = vector.broadcast %494 : vector<32x1xf32> to vector<32x32xf32>
    %496 = arith.subf %490, %495 : vector<32x32xf32>
    %497 = arith.mulf %496, %496 : vector<32x32xf32>
    %cst_189 = arith.constant dense<0.000000e+00> : vector<32xf32>
    %498 = vector.multi_reduction <add>, %497, %cst_189 [1] : vector<32x32xf32> to vector<32xf32>
    %499 = vector.shape_cast %498 : vector<32xf32> to vector<32x1xf32>
    %cst_190 = arith.constant 3.200000e+01 : f32
    %500 = vector.broadcast %cst_190 : f32 to vector<32x1xf32>
    %501 = arith.divf %499, %500 : vector<32x1xf32>
    %502 = vector.broadcast %494 : vector<32x1xf32> to vector<32x32xf32>
    %503 = arith.subf %490, %502 : vector<32x32xf32>
    %cst_191 = arith.constant 9.99999974E-6 : f32
    %504 = vector.broadcast %cst_191 : f32 to vector<32x1xf32>
    %505 = arith.addf %501, %504 : vector<32x1xf32>
    %506 = math.rsqrt %505 : vector<32x1xf32>
    %507 = vector.broadcast %506 : vector<32x1xf32> to vector<32x32xf32>
    %508 = arith.mulf %503, %507 : vector<32x32xf32>
    %c1_192 = arith.constant 1 : index
    %c0_193 = arith.constant 0 : index
    %c0_194 = arith.constant 0 : index
    %509 = vector.load %arg15[%c1_192, %c0_193, %c0_194] : memref<2x1x32xf32, #tpu.memory_space<vmem>>, vector<1x1x32xf32>
    %510 = vector.shape_cast %509 : vector<1x1x32xf32> to vector<1x32xf32>
    %511 = vector.broadcast %510 : vector<1x32xf32> to vector<32x32xf32>
    %512 = arith.mulf %508, %511 : vector<32x32xf32>
    %c1_195 = arith.constant 1 : index
    %c0_196 = arith.constant 0 : index
    %c0_197 = arith.constant 0 : index
    %513 = vector.load %arg16[%c1_195, %c0_196, %c0_197] : memref<2x1x32xf32, #tpu.memory_space<vmem>>, vector<1x1x32xf32>
    %514 = vector.shape_cast %513 : vector<1x1x32xf32> to vector<1x32xf32>
    %515 = vector.broadcast %514 : vector<1x32xf32> to vector<32x32xf32>
    %516 = arith.addf %512, %515 : vector<32x32xf32>
    %517 = vector.broadcast %100 : vector<32x1xf32> to vector<32x32xf32>
    %518 = arith.mulf %516, %517 : vector<32x32xf32>
    %c0_198 = arith.constant 0 : index
    %c0_199 = arith.constant 0 : index
    %519 = vector.load %arg17[%c0_198, %c0_199] : memref<1x16xbf16, #tpu.memory_space<vmem>>, vector<1x16xbf16>
    %c0_200 = arith.constant 0 : index
    %c0_201 = arith.constant 0 : index
    %520 = vector.load %arg19[%c0_200, %c0_201] : memref<32x2xbf16, #tpu.memory_space<vmem>>, vector<32x2xbf16>
    %521 = vector.extract_strided_slice %518 {offsets = [0, 0], sizes = [16, 32], strides = [1, 1]} : vector<32x32xf32> to vector<16x32xf32>
    %522 = arith.truncf %521 : vector<16x32xf32> to vector<16x32xbf16>
    %cst_202 = arith.constant dense<0.000000e+00> : vector<1x32xf32>
    %523 = tpu.matmul %519, %522, %cst_202 {dimension_numbers = #tpu.dot_dimension_numbers<[1], [0], [0], [1], [0, 0, 1, 1], [], []>} : vector<1x16xbf16>, vector<16x32xbf16>, vector<1x32xf32> -> vector<1x32xf32>
    %c0_203 = arith.constant 0 : index
    %c0_204 = arith.constant 0 : index
    %524 = vector.load %arg18[%c0_203, %c0_204] : memref<1x1xf32, #tpu.memory_space<vmem>>, vector<1x1xf32>
    %525 = vector.broadcast %524 : vector<1x1xf32> to vector<1x32xf32>
    %526 = arith.addf %523, %525 : vector<1x32xf32>
    %c0_205 = arith.constant 0 : index
    %c0_206 = arith.constant 0 : index
    %c0_207 = arith.constant 0 : index
    %527 = vector.load %arg21[%c0_205, %c0_206, %c0_207] : memref<2x1x32xf32, #tpu.memory_space<vmem>>, vector<1x1x32xf32>
    %528 = vector.shape_cast %527 : vector<1x1x32xf32> to vector<1x32xf32>
    %529 = vector.shape_cast %526 : vector<1x32xf32> to vector<1x1x32xf32>
    tpu.vector_store %arg21[%c0_205, %c0_206, %c0_207], %529 {strides = array<i32>} : memref<2x1x32xf32, #tpu.memory_space<vmem>>, vector<1x1x32xf32>,
    %530 = arith.truncf %526 : vector<1x32xf32> to vector<1x32xbf16>
    %cst_208 = arith.constant dense<0.000000e+00> : vector<1x2xf32>
    %531 = tpu.matmul %530, %520, %cst_208 {dimension_numbers = #tpu.dot_dimension_numbers<[1], [0], [0], [1], [0, 0, 1, 1], [], []>} : vector<1x32xbf16>, vector<32x2xbf16>, vector<1x2xf32> -> vector<1x2xf32>
    %c0_209 = arith.constant 0 : index
    %c0_210 = arith.constant 0 : index
    %532 = vector.load %arg20[%c0_209, %c0_210] : memref<1x2xf32, #tpu.memory_space<vmem>>, vector<1x2xf32>
    %533 = arith.addf %531, %532 : vector<1x2xf32>
    %c0_211 = arith.constant 0 : index
    %c0_212 = arith.constant 0 : index
    %534 = vector.load %arg22[%c0_211, %c0_212] : memref<2x2xf32, #tpu.memory_space<vmem>>, vector<1x2xf32>
    tpu.vector_store %arg22[%c0_211, %c0_212], %533 {strides = array<i32>} : memref<2x2xf32, #tpu.memory_space<vmem>>, vector<1x2xf32>,
    %cst_213 = arith.constant dense<0xFF800000> : vector<1xf32>
    %535 = vector.multi_reduction <maximumf>, %533, %cst_213 [1] : vector<1x2xf32> to vector<1xf32>
    %536 = vector.shape_cast %535 : vector<1xf32> to vector<1x1xf32>
    %537 = vector.broadcast %536 : vector<1x1xf32> to vector<1x2xf32>
    %538 = arith.subf %533, %537 : vector<1x2xf32>
    %539 = math.exp %538 : vector<1x2xf32>
    %cst_214 = arith.constant dense<0.000000e+00> : vector<1xf32>
    %540 = vector.multi_reduction <add>, %539, %cst_214 [1] : vector<1x2xf32> to vector<1xf32>
    %541 = vector.shape_cast %540 : vector<1xf32> to vector<1x1xf32>
    %542 = vector.broadcast %541 : vector<1x1xf32> to vector<1x2xf32>
    %543 = arith.divf %539, %542 : vector<1x2xf32>
    %c0_215 = arith.constant 0 : index
    %c0_216 = arith.constant 0 : index
    %544 = vector.load %arg23[%c0_215, %c0_216] : memref<2x2xf32, #tpu.memory_space<vmem>>, vector<1x2xf32>
    tpu.vector_store %arg23[%c0_215, %c0_216], %543 {strides = array<i32>} : memref<2x2xf32, #tpu.memory_space<vmem>>, vector<1x2xf32>,
    %545 = vector.extract_strided_slice %518 {offsets = [16, 0], sizes = [16, 32], strides = [1, 1]} : vector<32x32xf32> to vector<16x32xf32>
    %546 = arith.truncf %545 : vector<16x32xf32> to vector<16x32xbf16>
    %cst_217 = arith.constant dense<0.000000e+00> : vector<1x32xf32>
    %547 = tpu.matmul %519, %546, %cst_217 {dimension_numbers = #tpu.dot_dimension_numbers<[1], [0], [0], [1], [0, 0, 1, 1], [], []>} : vector<1x16xbf16>, vector<16x32xbf16>, vector<1x32xf32> -> vector<1x32xf32>
    %c0_218 = arith.constant 0 : index
    %c0_219 = arith.constant 0 : index
    %548 = vector.load %arg18[%c0_218, %c0_219] : memref<1x1xf32, #tpu.memory_space<vmem>>, vector<1x1xf32>
    %549 = vector.broadcast %548 : vector<1x1xf32> to vector<1x32xf32>
    %550 = arith.addf %547, %549 : vector<1x32xf32>
    %c1_220 = arith.constant 1 : index
    %c0_221 = arith.constant 0 : index
    %c0_222 = arith.constant 0 : index
    %551 = vector.load %arg21[%c1_220, %c0_221, %c0_222] : memref<2x1x32xf32, #tpu.memory_space<vmem>>, vector<1x1x32xf32>
    %552 = vector.shape_cast %551 : vector<1x1x32xf32> to vector<1x32xf32>
    %553 = vector.shape_cast %550 : vector<1x32xf32> to vector<1x1x32xf32>
    tpu.vector_store %arg21[%c1_220, %c0_221, %c0_222], %553 {strides = array<i32>} : memref<2x1x32xf32, #tpu.memory_space<vmem>>, vector<1x1x32xf32>,
    %554 = arith.truncf %550 : vector<1x32xf32> to vector<1x32xbf16>
    %cst_223 = arith.constant dense<0.000000e+00> : vector<1x2xf32>
    %555 = tpu.matmul %554, %520, %cst_223 {dimension_numbers = #tpu.dot_dimension_numbers<[1], [0], [0], [1], [0, 0, 1, 1], [], []>} : vector<1x32xbf16>, vector<32x2xbf16>, vector<1x2xf32> -> vector<1x2xf32>
    %c0_224 = arith.constant 0 : index
    %c0_225 = arith.constant 0 : index
    %556 = vector.load %arg20[%c0_224, %c0_225] : memref<1x2xf32, #tpu.memory_space<vmem>>, vector<1x2xf32>
    %557 = arith.addf %555, %556 : vector<1x2xf32>
    %c1_226 = arith.constant 1 : index
    %c0_227 = arith.constant 0 : index
    %558 = vector.load %arg22[%c1_226, %c0_227] : memref<2x2xf32, #tpu.memory_space<vmem>>, vector<1x2xf32>
    tpu.vector_store %arg22[%c1_226, %c0_227], %557 {strides = array<i32>} : memref<2x2xf32, #tpu.memory_space<vmem>>, vector<1x2xf32>,
    %cst_228 = arith.constant dense<0xFF800000> : vector<1xf32>
    %559 = vector.multi_reduction <maximumf>, %557, %cst_228 [1] : vector<1x2xf32> to vector<1xf32>
    %560 = vector.shape_cast %559 : vector<1xf32> to vector<1x1xf32>
    %561 = vector.broadcast %560 : vector<1x1xf32> to vector<1x2xf32>
    %562 = arith.subf %557, %561 : vector<1x2xf32>
    %563 = math.exp %562 : vector<1x2xf32>
    %cst_229 = arith.constant dense<0.000000e+00> : vector<1xf32>
    %564 = vector.multi_reduction <add>, %563, %cst_229 [1] : vector<1x2xf32> to vector<1xf32>
    %565 = vector.shape_cast %564 : vector<1xf32> to vector<1x1xf32>
    %566 = vector.broadcast %565 : vector<1x1xf32> to vector<1x2xf32>
    %567 = arith.divf %563, %566 : vector<1x2xf32>
    %c1_230 = arith.constant 1 : index
    %c0_231 = arith.constant 0 : index
    %568 = vector.load %arg23[%c1_230, %c0_231] : memref<2x2xf32, #tpu.memory_space<vmem>>, vector<1x2xf32>
    tpu.vector_store %arg23[%c1_230, %c0_231], %567 {strides = array<i32>} : memref<2x2xf32, #tpu.memory_space<vmem>>, vector<1x2xf32>,
    return
  }
  func.func @transform_0(%arg0: i32) -> (i32, i32) {
    %c0_i32 = arith.constant 0 : i32
    %c0_i32_0 = arith.constant 0 : i32
    %c0_i32_1 = arith.constant 0 : i32
    return %c0_i32, %c0_i32_0 : i32, i32
  }
  func.func @transform_1(%arg0: i32) -> (i32, i32) {
    %c0_i32 = arith.constant 0 : i32
    %c0_i32_0 = arith.constant 0 : i32
    %c0_i32_1 = arith.constant 0 : i32
    return %c0_i32, %c0_i32_0 : i32, i32
  }
  func.func @transform_2(%arg0: i32) -> (i32, i32) {
    %c0_i32 = arith.constant 0 : i32
    %c0_i32_0 = arith.constant 0 : i32
    %c0_i32_1 = arith.constant 0 : i32
    return %c0_i32, %c0_i32_0 : i32, i32
  }
  func.func @transform_3(%arg0: i32) -> (i32, i32) {
    %c0_i32 = arith.constant 0 : i32
    %c0_i32_0 = arith.constant 0 : i32
    %c0_i32_1 = arith.constant 0 : i32
    return %c0_i32, %c0_i32_0 : i32, i32
  }
  func.func @transform_4(%arg0: i32) -> (i32, i32, i32) {
    %c0_i32 = arith.constant 0 : i32
    %c0_i32_0 = arith.constant 0 : i32
    %c0_i32_1 = arith.constant 0 : i32
    %c0_i32_2 = arith.constant 0 : i32
    return %c0_i32, %c0_i32_0, %c0_i32_1 : i32, i32, i32
  }
  func.func @transform_5(%arg0: i32) -> (i32, i32, i32) {
    %c0_i32 = arith.constant 0 : i32
    %c0_i32_0 = arith.constant 0 : i32
    %c0_i32_1 = arith.constant 0 : i32
    %c0_i32_2 = arith.constant 0 : i32
    return %c0_i32, %c0_i32_0, %c0_i32_1 : i32, i32, i32
  }
  func.func @transform_6(%arg0: i32) -> (i32, i32, i32) {
    %c0_i32 = arith.constant 0 : i32
    %c0_i32_0 = arith.constant 0 : i32
    %c0_i32_1 = arith.constant 0 : i32
    %c0_i32_2 = arith.constant 0 : i32
    return %c0_i32, %c0_i32_0, %c0_i32_1 : i32, i32, i32
  }
  func.func @transform_7(%arg0: i32) -> (i32, i32, i32) {
    %c0_i32 = arith.constant 0 : i32
    %c0_i32_0 = arith.constant 0 : i32
    %c0_i32_1 = arith.constant 0 : i32
    %c0_i32_2 = arith.constant 0 : i32
    return %c0_i32, %c0_i32_0, %c0_i32_1 : i32, i32, i32
  }
  func.func @transform_8(%arg0: i32) -> (i32, i32, i32) {
    %c0_i32 = arith.constant 0 : i32
    %c0_i32_0 = arith.constant 0 : i32
    %c0_i32_1 = arith.constant 0 : i32
    %c0_i32_2 = arith.constant 0 : i32
    return %c0_i32, %c0_i32_0, %c0_i32_1 : i32, i32, i32
  }
  func.func @transform_9(%arg0: i32) -> (i32, i32, i32) {
    %c0_i32 = arith.constant 0 : i32
    %c0_i32_0 = arith.constant 0 : i32
    %c0_i32_1 = arith.constant 0 : i32
    %c0_i32_2 = arith.constant 0 : i32
    return %c0_i32, %c0_i32_0, %c0_i32_1 : i32, i32, i32
  }
  func.func @transform_10(%arg0: i32) -> (i32, i32, i32) {
    %c0_i32 = arith.constant 0 : i32
    %c0_i32_0 = arith.constant 0 : i32
    %c0_i32_1 = arith.constant 0 : i32
    %c0_i32_2 = arith.constant 0 : i32
    return %c0_i32, %c0_i32_0, %c0_i32_1 : i32, i32, i32
  }
  func.func @transform_11(%arg0: i32) -> (i32, i32, i32) {
    %c0_i32 = arith.constant 0 : i32
    %c0_i32_0 = arith.constant 0 : i32
    %c0_i32_1 = arith.constant 0 : i32
    %c0_i32_2 = arith.constant 0 : i32
    return %c0_i32, %c0_i32_0, %c0_i32_1 : i32, i32, i32
  }
  func.func @transform_12(%arg0: i32) -> (i32, i32, i32) {
    %c0_i32 = arith.constant 0 : i32
    %c0_i32_0 = arith.constant 0 : i32
    %c0_i32_1 = arith.constant 0 : i32
    %c0_i32_2 = arith.constant 0 : i32
    return %c0_i32, %c0_i32_0, %c0_i32_1 : i32, i32, i32
  }
  func.func @transform_13(%arg0: i32) -> (i32, i32, i32) {
    %c0_i32 = arith.constant 0 : i32
    %c0_i32_0 = arith.constant 0 : i32
    %c0_i32_1 = arith.constant 0 : i32
    %c0_i32_2 = arith.constant 0 : i32
    return %c0_i32, %c0_i32_0, %c0_i32_1 : i32, i32, i32
  }
  func.func @transform_14(%arg0: i32) -> (i32, i32, i32) {
    %c0_i32 = arith.constant 0 : i32
    %c0_i32_0 = arith.constant 0 : i32
    %c0_i32_1 = arith.constant 0 : i32
    %c0_i32_2 = arith.constant 0 : i32
    return %c0_i32, %c0_i32_0, %c0_i32_1 : i32, i32, i32
  }
  func.func @transform_15(%arg0: i32) -> (i32, i32, i32) {
    %c0_i32 = arith.constant 0 : i32
    %c0_i32_0 = arith.constant 0 : i32
    %c0_i32_1 = arith.constant 0 : i32
    %c0_i32_2 = arith.constant 0 : i32
    return %c0_i32, %c0_i32_0, %c0_i32_1 : i32, i32, i32
  }
  func.func @transform_16(%arg0: i32) -> (i32, i32) {
    %c0_i32 = arith.constant 0 : i32
    %c0_i32_0 = arith.constant 0 : i32
    %c0_i32_1 = arith.constant 0 : i32
    return %c0_i32, %c0_i32_0 : i32, i32
  }
  func.func @transform_17(%arg0: i32) -> (i32, i32) {
    %c0_i32 = arith.constant 0 : i32
    %c0_i32_0 = arith.constant 0 : i32
    %c0_i32_1 = arith.constant 0 : i32
    return %c0_i32, %c0_i32_0 : i32, i32
  }
  func.func @transform_18(%arg0: i32) -> (i32, i32) {
    %c0_i32 = arith.constant 0 : i32
    %c0_i32_0 = arith.constant 0 : i32
    %c0_i32_1 = arith.constant 0 : i32
    return %c0_i32, %c0_i32_0 : i32, i32
  }
  func.func @transform_19(%arg0: i32) -> (i32, i32) {
    %c0_i32 = arith.constant 0 : i32
    %c0_i32_0 = arith.constant 0 : i32
    %c0_i32_1 = arith.constant 0 : i32
    return %c0_i32, %c0_i32_0 : i32, i32
  }
  func.func @transform_20(%arg0: i32) -> (i32, i32, i32) {
    %c0_i32 = arith.constant 0 : i32
    %c0_i32_0 = arith.constant 0 : i32
    %c0_i32_1 = arith.constant 0 : i32
    %c0_i32_2 = arith.constant 0 : i32
    return %c0_i32, %c0_i32_0, %c0_i32_1 : i32, i32, i32
  }
  func.func @transform_21(%arg0: i32) -> (i32, i32) {
    %c0_i32 = arith.constant 0 : i32
    %c0_i32_0 = arith.constant 0 : i32
    %c0_i32_1 = arith.constant 0 : i32
    return %c0_i32, %c0_i32_0 : i32, i32
  }
  func.func @transform_22(%arg0: i32) -> (i32, i32) {
    %c0_i32 = arith.constant 0 : i32
    %c0_i32_0 = arith.constant 0 : i32
    %c0_i32_1 = arith.constant 0 : i32
    return %c0_i32, %c0_i32_0 : i32, i32
  }
}

</mosaic_0001>

<llo_original>
// kernel: _lambda_.1
$region0: #{_lambda_.1}
  #allocation0 [shape = 'u32[]', space=smem, size = 0x4, offset = 0x4, fixed_abs, tag = 'smem constant byte address 0x4 - core index']
  #allocation1 [shape = 'u32[144,128]{1,0:T(1,128)}', space=vmem, size = 0x12000, scoped, tag = 'internal scratch']
  #allocation2 [shape = 'f32[32,32]{1,0:T(8,128)}', space=vmem, size = 0x4000, scoped, tag = 'scratch operand']
  #allocation3 [shape = 'f32[32,1]{1,0:T(8,128)}', space=vmem, size = 0x4000, scoped, tag = 'scratch operand']
  #allocation4 [shape = 'f32[1,1]{1,0:T(1,128)S(1)}', space=vmem, size = 0x200, scoped, tag = 'scoped memory for _lambda_.1']
  %s0 = inlined_call_operand.vmem [shape: f32[2,16], index: 0, kind: input, shape index: {}]
  %s1 = inlined_call_operand.hbm [shape: f32[16,32], index: 1, kind: input, shape index: {}]
  %s2 = inlined_call_operand.vmem [shape: f32[3,32], index: 2, kind: input, shape index: {}]
  %s3 = inlined_call_operand.hbm [shape: f32[1,32], index: 3, kind: input, shape index: {}]
  %s4 = inlined_call_operand.hbm [shape: bf16[2,32,96], index: 4, kind: input, shape index: {}]
  %s5 = inlined_call_operand.hbm [shape: f32[2,1,96], index: 5, kind: input, shape index: {}]
  %s6 = inlined_call_operand.hbm [shape: bf16[2,32,32], index: 6, kind: input, shape index: {}]
  %s7 = inlined_call_operand.hbm [shape: f32[2,1,32], index: 7, kind: input, shape index: {}]
  %s8 = inlined_call_operand.vmem [shape: f32[2,1,32], index: 8, kind: input, shape index: {}, may-alias: {8,14}]
  %s9 = inlined_call_operand.vmem [shape: f32[2,1,32], index: 9, kind: input, shape index: {}, may-alias: {9,15}]
  %s10 = inlined_call_operand.hbm [shape: bf16[2,32,64], index: 10, kind: input, shape index: {}]
  %s11 = inlined_call_operand.hbm [shape: f32[2,1,64], index: 11, kind: input, shape index: {}]
  %s12 = inlined_call_operand.vmem [shape: bf16[2,64,32], index: 12, kind: input, shape index: {}]
  %s13 = inlined_call_operand.hbm [shape: f32[2,1,32], index: 13, kind: input, shape index: {}]
  %s14 = inlined_call_operand.vmem [shape: f32[2,1,32], index: 14, kind: input, shape index: {}, may-alias: {8,14}]
  %s15 = inlined_call_operand.vmem [shape: f32[2,1,32], index: 15, kind: input, shape index: {}, may-alias: {9,15}]
  %s16 = inlined_call_operand.hbm [shape: bf16[1,16], index: 16, kind: input, shape index: {}]
  %s17 = inlined_call_operand.<no memory space> [shape: f32[1,1], index: 17, kind: input, shape index: {}]
  %s18 = inlined_call_operand.vmem [shape: bf16[32,2], index: 18, kind: input, shape index: {}]
  %s19 = inlined_call_operand.vmem [shape: f32[1,2], index: 19, kind: input, shape index: {}]
  %s20 = inlined_call_operand.hbm [shape: f32[2,1,32], index: 20, kind: output, shape index: {0}]
  %s21 = inlined_call_operand.hbm [shape: f32[2,2], index: 21, kind: output, shape index: {1}]
  %s22 = inlined_call_operand.hbm [shape: f32[2,2], index: 22, kind: output, shape index: {2}]
  %23 = xla_tuple %s20, %s21, %s22
  %s24 = sld [smem:[#allocation0]]
  $region146: #{_lambda_.1} parent=0
    _
  %s26 = ssub.s32 1, %s24
  %s27 = scalar_select 0, %s26, %s24
  %v28 = vstv %s17
  %29 = vst [vmem:[#allocation4] sm:$0x1] %v28
  $region1: #{_lambda_.1} parent=0
    #allocation5 [shape = 'u8[8192]{0}', space=vmem, size = 0x2000, scoped, tag = 'input window, operand 1, single buffered']
    #allocation6 [shape = 's32[1]{0}', space=sflag, size = 0x4, scoped, tag = 'scoped memory for _lambda_.1']
    #allocation7 [shape = 's32[1]{0}', space=sflag, size = 0x4, scoped, tag = 'scoped memory for _lambda_.1']
    #allocation8 [shape = 'u8[512]{0}', space=vmem, size = 0x400, scoped, tag = 'input window, operand 3, single buffered']
    #allocation9 [shape = 's32[1]{0}', space=sflag, size = 0x4, scoped, tag = 'scoped memory for _lambda_.1']
    #allocation10 [shape = 'u8[16384]{0}', space=vmem, size = 0x4000, scoped, tag = 'input window, operand 4, single buffered']
    #allocation11 [shape = 'u8[1024]{0}', space=vmem, size = 0x400, scoped, tag = 'input window, operand 5, single buffered']
    #allocation12 [shape = 's32[1]{0}', space=sflag, size = 0x4, scoped, tag = 'scoped memory for _lambda_.1']
    #allocation13 [shape = 'u8[16384]{0}', space=vmem, size = 0x4000, scoped, tag = 'input window, operand 6, single buffered']
    #allocation14 [shape = 'u8[1024]{0}', space=vmem, size = 0x400, scoped, tag = 'input window, operand 7, single buffered']
    #allocation15 [shape = 's32[1]{0}', space=sflag, size = 0x4, scoped, tag = 'scoped memory for _lambda_.1']
    #allocation16 [shape = 'u8[16384]{0}', space=vmem, size = 0x4000, scoped, tag = 'input window, operand 10, single buffered']
    #allocation17 [shape = 'u8[1024]{0}', space=vmem, size = 0x400, scoped, tag = 'input window, operand 11, single buffered']
    #allocation18 [shape = 's32[1]{0}', space=sflag, size = 0x4, scoped, tag = 'scoped memory for _lambda_.1']
    #allocation19 [shape = 'u8[1024]{0}', space=vmem, size = 0x400, scoped, tag = 'input window, operand 13, single buffered']
    #allocation20 [shape = 'u8[512]{0}', space=vmem, size = 0x400, scoped, tag = 'input window, operand 16, single buffered']
    #allocation21 [shape = 's32[1]{0}', space=sflag, size = 0x4, scoped, tag = 'scoped memory for _lambda_.1']
    #allocation22 [shape = 'u8[1024]{0}', space=vmem, size = 0x400, scoped, tag = 'output window, operand 0, single buffered']
    #allocation23 [shape = 'u8[1024]{0}', space=vmem, size = 0x400, scoped, tag = 'output window, operand 1, single buffered']
    #allocation24 [shape = 's32[1]{0}', space=sflag, size = 0x4, scoped, tag = 'scoped memory for _lambda_.1']
    #allocation25 [shape = 'u8[1024]{0}', space=vmem, size = 0x400, scoped, tag = 'output window, operand 2, single buffered']
    %30 = vsyncpa [#allocation6], 0
    %31 = vsyncpa [#allocation9], 0
    %32 = vsyncpa [#allocation12], 0
    %33 = vsyncpa [#allocation15], 0
    %34 = vsyncpa [#allocation18], 0
    %35 = vsyncpa [#allocation21], 0
    %36 = vsyncpa [#allocation7], 0
    %37 = vsyncpa [#allocation24], 0
    // Predicated region
    $region2: #{_lambda_.1} parent=1 // pred_check
      _
    $region3: #{_lambda_.1} parent=1 // pred_check_branch
      %39 = sbr.rel (0) target = $region5
    $region4: #{_lambda_.1} parent=1 // pred_region
      _
    $region5: #{_lambda_.1} parent=1 // pred_fallthru
      _
    // Predicated region
    $region6: #{_lambda_.1} parent=1 // pred_check
      _
    $region7: #{_lambda_.1} parent=1 // pred_check_branch
      %41 = sbr.rel (0) target = $region9
    $region8: #{_lambda_.1} parent=1 // pred_region
      %s43 = ssub.s32 256, 256
      %44 = vsyncadd [#allocation6], %s43
      %s45 = sshll.u32 [#allocation5], 4
      %s46 = int_to_ptr.vmem [resolvable:$true] %s45
      %51 = dma.hbm_to_vmem [thread:$0]  %s1, 256, %s46, [#allocation6], 128, 128, 8
    $region9: #{_lambda_.1} parent=1 // pred_fallthru
      _
    // Predicated region
    $region10: #{_lambda_.1} parent=1 // pred_check
      _
    $region11: #{_lambda_.1} parent=1 // pred_check_branch
      %53 = sbr.rel (0) target = $region13
    $region12: #{_lambda_.1} parent=1 // pred_region
      _
    $region13: #{_lambda_.1} parent=1 // pred_fallthru
      _
    // Predicated region
    $region14: #{_lambda_.1} parent=1 // pred_check
      _
    $region15: #{_lambda_.1} parent=1 // pred_check_branch
      %55 = sbr.rel (0) target = $region17
    $region16: #{_lambda_.1} parent=1 // pred_region
      %s57 = ssub.s32 16, 16
      %58 = vsyncadd [#allocation9], %s57
      %s60 = sshll.u32 [#allocation8], 4
      %s61 = int_to_ptr.vmem [resolvable:$true] %s60
      %63 = dma.hbm_to_vmem [thread:$0]  %s3, 16, %s61, [#allocation9]
    $region17: #{_lambda_.1} parent=1 // pred_fallthru
      _
    // Predicated region
    $region18: #{_lambda_.1} parent=1 // pred_check
      _
    $region19: #{_lambda_.1} parent=1 // pred_check_branch
      %65 = sbr.rel (0) target = $region21
    $region20: #{_lambda_.1} parent=1 // pred_region
      %s67 = ssub.s32 512, 512
      %68 = vsyncadd [#allocation9], %s67
      %s69 = sshll.u32 [#allocation10], 4
      %s70 = int_to_ptr.vmem [resolvable:$true] %s69
      %75 = dma.hbm_to_vmem [thread:$0]  %s4, 512, %s70, [#allocation9], 64, 64, 4
    $region21: #{_lambda_.1} parent=1 // pred_fallthru
      _
    // Predicated region
    $region22: #{_lambda_.1} parent=1 // pred_check
      _
    $region23: #{_lambda_.1} parent=1 // pred_check_branch
      %77 = sbr.rel (0) target = $region25
    $region24: #{_lambda_.1} parent=1 // pred_region
      %s79 = ssub.s32 32, 32
      %80 = vsyncadd [#allocation12], %s79
      %s81 = sshll.u32 [#allocation11], 4
      %s82 = int_to_ptr.vmem [resolvable:$true] %s81
      %87 = dma.hbm_to_vmem [thread:$0]  %s5, 32, %s82, [#allocation12], 16, 16, 1
    $region25: #{_lambda_.1} parent=1 // pred_fallthru
      _
    // Predicated region
    $region26: #{_lambda_.1} parent=1 // pred_check
      _
    $region27: #{_lambda_.1} parent=1 // pred_check_branch
      %89 = sbr.rel (0) target = $region29
    $region28: #{_lambda_.1} parent=1 // pred_region
      %s91 = ssub.s32 512, 512
      %92 = vsyncadd [#allocation12], %s91
      %s93 = sshll.u32 [#allocation13], 4
      %s94 = int_to_ptr.vmem [resolvable:$true] %s93
      %99 = dma.hbm_to_vmem [thread:$0]  %s6, 512, %s94, [#allocation12], 64, 64, 4
    $region29: #{_lambda_.1} parent=1 // pred_fallthru
      _
    // Predicated region
    $region30: #{_lambda_.1} parent=1 // pred_check
      _
    $region31: #{_lambda_.1} parent=1 // pred_check_branch
      %101 = sbr.rel (0) target = $region33
    $region32: #{_lambda_.1} parent=1 // pred_region
      %s103 = ssub.s32 32, 32
      %104 = vsyncadd [#allocation15], %s103
      %s105 = sshll.u32 [#allocation14], 4
      %s106 = int_to_ptr.vmem [resolvable:$true] %s105
      %111 = dma.hbm_to_vmem [thread:$0]  %s7, 32, %s106, [#allocation15], 16, 16, 1
    $region33: #{_lambda_.1} parent=1 // pred_fallthru
      _
    // Predicated region
    $region34: #{_lambda_.1} parent=1 // pred_check
      _
    $region35: #{_lambda_.1} parent=1 // pred_check_branch
      %113 = sbr.rel (0) target = $region37
    $region36: #{_lambda_.1} parent=1 // pred_region
      _
    $region37: #{_lambda_.1} parent=1 // pred_fallthru
      _
    // Predicated region
    $region38: #{_lambda_.1} parent=1 // pred_check
      _
    $region39: #{_lambda_.1} parent=1 // pred_check_branch
      %115 = sbr.rel (0) target = $region41
    $region40: #{_lambda_.1} parent=1 // pred_region
      _
    $region41: #{_lambda_.1} parent=1 // pred_fallthru
      _
    // Predicated region
    $region42: #{_lambda_.1} parent=1 // pred_check
      _
    $region43: #{_lambda_.1} parent=1 // pred_check_branch
      %117 = sbr.rel (0) target = $region45
    $region44: #{_lambda_.1} parent=1 // pred_region
      %s119 = ssub.s32 512, 512
      %120 = vsyncadd [#allocation15], %s119
      %s121 = sshll.u32 [#allocation16], 4
      %s122 = int_to_ptr.vmem [resolvable:$true] %s121
      %127 = dma.hbm_to_vmem [thread:$0]  %s10, 512, %s122, [#allocation15], 64, 64, 4
    $region45: #{_lambda_.1} parent=1 // pred_fallthru
      _
    // Predicated region
    $region46: #{_lambda_.1} parent=1 // pred_check
      _
    $region47: #{_lambda_.1} parent=1 // pred_check_branch
      %129 = sbr.rel (0) target = $region49
    $region48: #{_lambda_.1} parent=1 // pred_region
      %s131 = ssub.s32 32, 32
      %132 = vsyncadd [#allocation18], %s131
      %s133 = sshll.u32 [#allocation17], 4
      %s134 = int_to_ptr.vmem [resolvable:$true] %s133
      %139 = dma.hbm_to_vmem [thread:$0]  %s11, 32, %s134, [#allocation18], 16, 16, 1
    $region49: #{_lambda_.1} parent=1 // pred_fallthru
      _
    // Predicated region
    $region50: #{_lambda_.1} parent=1 // pred_check
      _
    $region51: #{_lambda_.1} parent=1 // pred_check_branch
      %141 = sbr.rel (0) target = $region53
    $region52: #{_lambda_.1} parent=1 // pred_region
      _
    $region53: #{_lambda_.1} parent=1 // pred_fallthru
      _
    // Predicated region
    $region54: #{_lambda_.1} parent=1 // pred_check
      _
    $region55: #{_lambda_.1} parent=1 // pred_check_branch
      %143 = sbr.rel (0) target = $region57
    $region56: #{_lambda_.1} parent=1 // pred_region
      %s145 = ssub.s32 32, 32
      %146 = vsyncadd [#allocation18], %s145
      %s147 = sshll.u32 [#allocation19], 4
      %s148 = int_to_ptr.vmem [resolvable:$true] %s147
      %153 = dma.hbm_to_vmem [thread:$0]  %s13, 32, %s148, [#allocation18], 16, 16, 1
    $region57: #{_lambda_.1} parent=1 // pred_fallthru
      _
    // Predicated region
    $region58: #{_lambda_.1} parent=1 // pred_check
      _
    $region59: #{_lambda_.1} parent=1 // pred_check_branch
      %155 = sbr.rel (0) target = $region61
    $region60: #{_lambda_.1} parent=1 // pred_region
      _
    $region61: #{_lambda_.1} parent=1 // pred_fallthru
      _
    // Predicated region
    $region62: #{_lambda_.1} parent=1 // pred_check
      _
    $region63: #{_lambda_.1} parent=1 // pred_check_branch
      %157 = sbr.rel (0) target = $region65
    $region64: #{_lambda_.1} parent=1 // pred_region
      _
    $region65: #{_lambda_.1} parent=1 // pred_fallthru
      _
    // Predicated region
    $region66: #{_lambda_.1} parent=1 // pred_check
      _
    $region67: #{_lambda_.1} parent=1 // pred_check_branch
      %159 = sbr.rel (0) target = $region69
    $region68: #{_lambda_.1} parent=1 // pred_region
      %s161 = ssub.s32 16, 16
      %162 = vsyncadd [#allocation21], %s161
      %s164 = sshll.u32 [#allocation20], 4
      %s165 = int_to_ptr.vmem [resolvable:$true] %s164
      %167 = dma.hbm_to_vmem [thread:$0]  %s16, 16, %s165, [#allocation21]
    $region69: #{_lambda_.1} parent=1 // pred_fallthru
      _
    // Predicated region
    $region70: #{_lambda_.1} parent=1 // pred_check
      _
    $region71: #{_lambda_.1} parent=1 // pred_check_branch
      %169 = sbr.rel (0) target = $region73
    $region72: #{_lambda_.1} parent=1 // pred_region
      _
    $region73: #{_lambda_.1} parent=1 // pred_fallthru
      _
    // Predicated region
    $region74: #{_lambda_.1} parent=1 // pred_check
      _
    $region75: #{_lambda_.1} parent=1 // pred_check_branch
      %171 = sbr.rel (0) target = $region77
    $region76: #{_lambda_.1} parent=1 // pred_region
      _
    $region77: #{_lambda_.1} parent=1 // pred_fallthru
      _
    // Predicated region
    $region78: #{_lambda_.1} parent=1 // pred_check
      _
    $region79: #{_lambda_.1} parent=1 // pred_check_branch
      %173 = sbr.rel (0) target = $region81
    $region80: #{_lambda_.1} parent=1 // pred_region
      _
    $region81: #{_lambda_.1} parent=1 // pred_fallthru
      _
    // Predicated region
    $region82: #{_lambda_.1} parent=1 // pred_check
      _
    $region83: #{_lambda_.1} parent=1 // pred_check_branch
      %175 = sbr.rel (0) target = $region85
    $region84: #{_lambda_.1} parent=1 // pred_region
      %176 = dma.done [#allocation6], 256
    $region85: #{_lambda_.1} parent=1 // pred_fallthru
      _
    // Predicated region
    $region86: #{_lambda_.1} parent=1 // pred_check
      _
    $region87: #{_lambda_.1} parent=1 // pred_check_branch
      %178 = sbr.rel (0) target = $region89
    $region88: #{_lambda_.1} parent=1 // pred_region
      %179 = dma.done [#allocation9], 16
    $region89: #{_lambda_.1} parent=1 // pred_fallthru
      _
    // Predicated region
    $region90: #{_lambda_.1} parent=1 // pred_check
      _
    $region91: #{_lambda_.1} parent=1 // pred_check_branch
      %181 = sbr.rel (0) target = $region93
    $region92: #{_lambda_.1} parent=1 // pred_region
      %182 = dma.done [#allocation9], 512
    $region93: #{_lambda_.1} parent=1 // pred_fallthru
      _
    // Predicated region
    $region94: #{_lambda_.1} parent=1 // pred_check
      _
    $region95: #{_lambda_.1} parent=1 // pred_check_branch
      %184 = sbr.rel (0) target = $region97
    $region96: #{_lambda_.1} parent=1 // pred_region
      %185 = dma.done [#allocation12], 32
    $region97: #{_lambda_.1} parent=1 // pred_fallthru
      _
    // Predicated region
    $region98: #{_lambda_.1} parent=1 // pred_check
      _
    $region99: #{_lambda_.1} parent=1 // pred_check_branch
      %187 = sbr.rel (0) target = $region101
    $region100: #{_lambda_.1} parent=1 // pred_region
      %188 = dma.done [#allocation12], 512
    $region101: #{_lambda_.1} parent=1 // pred_fallthru
      _
    // Predicated region
    $region102: #{_lambda_.1} parent=1 // pred_check
      _
    $region103: #{_lambda_.1} parent=1 // pred_check_branch
      %190 = sbr.rel (0) target = $region105
    $region104: #{_lambda_.1} parent=1 // pred_region
      %191 = dma.done [#allocation15], 32
    $region105: #{_lambda_.1} parent=1 // pred_fallthru
      _
    // Predicated region
    $region106: #{_lambda_.1} parent=1 // pred_check
      _
    $region107: #{_lambda_.1} parent=1 // pred_check_branch
      %193 = sbr.rel (0) target = $region109
    $region108: #{_lambda_.1} parent=1 // pred_region
      %194 = dma.done [#allocation15], 512
    $region109: #{_lambda_.1} parent=1 // pred_fallthru
      _
    // Predicated region
    $region110: #{_lambda_.1} parent=1 // pred_check
      _
    $region111: #{_lambda_.1} parent=1 // pred_check_branch
      %196 = sbr.rel (0) target = $region113
    $region112: #{_lambda_.1} parent=1 // pred_region
      %197 = dma.done [#allocation18], 32
    $region113: #{_lambda_.1} parent=1 // pred_fallthru
      _
    // Predicated region
    $region114: #{_lambda_.1} parent=1 // pred_check
      _
    $region115: #{_lambda_.1} parent=1 // pred_check_branch
      %199 = sbr.rel (0) target = $region117
    $region116: #{_lambda_.1} parent=1 // pred_region
      %200 = dma.done [#allocation18], 32
    $region117: #{_lambda_.1} parent=1 // pred_fallthru
      _
    // Predicated region
    $region118: #{_lambda_.1} parent=1 // pred_check
      _
    $region119: #{_lambda_.1} parent=1 // pred_check_branch
      %202 = sbr.rel (0) target = $region121
    $region120: #{_lambda_.1} parent=1 // pred_region
      %203 = dma.done [#allocation21], 16
    $region121: #{_lambda_.1} parent=1 // pred_fallthru
      _
    %v205 = vld [vmem:[%s0] sm:$0x3]
    %v206 = vlaneseq
    %v207 = vshrl.u32 %v206, 7
    %v208 = vadd.s32 %v207, 8
    %v209 = vlaneseq
    %v210 = vand.u32 %v209, 127
    %v211 = vsub.s32 %v207, 1
    %v212 = vsub.s32 %v208, 1
    %vm213 = vcmp.eq.s32.totalorder %v210, %v211
    %vm214 = vcmp.eq.s32.totalorder %v210, %v212
    %v215 = vsel %vm213, 1, 0
    %v216 = vsel %vm214, 1, 0
    %v217 = vcvt.s32.f32 %v215
    %v218 = vcvt.s32.f32 %v216
    %vm219 = vcmp.eq.s32.totalorder %v210, %v207
    %vm220 = vcmp.eq.s32.totalorder %v210, %v208
    %v221 = vsel %vm219, 1, 0
    %v222 = vsel %vm220, 1, 0
    %v223 = vcvt.s32.f32 %v221
    %v224 = vcvt.s32.f32 %v222
    %v225 = vadd.s32 %v207, 1
    %v226 = vadd.s32 %v208, 1
    %vm227 = vcmp.eq.s32.totalorder %v210, %v225
    %vm228 = vcmp.eq.s32.totalorder %v210, %v226
    %v229 = vsel %vm227, 1, 0
    %v230 = vsel %vm228, 1, 0
    %v231 = vcvt.s32.f32 %v229
    %v232 = vcvt.s32.f32 %v230
    %vm233 = vcmp.eq.f32.partialorder %v205, 0.0
    %v234 = vsel %vm233, 0.0, 1.0
    %v235 = vld [vmem:[%s2] sm:$0x7]
    %v236 = vld [vmem:[#allocation5] sm:$0xff]
    %v237 = vld [vmem:[#allocation5 + $0x8] sm:$0xff]
    %v238 = vlaneseq
    %v239 = vshrl.u32 %v238, 7
    %v240 = vsub.s32 0, %v239
    %v241 = vrot.slane %v205, %v240
    %v242 = vmul.f32 %v217, %v241
    %v243 = vmul.f32 %v218, %v241
    %vm244 = vcmask 130048
    %v245 = vsel %vm244, %v242, 0.0
    %246 = vadd.xlane.f32.xlu0 %v245
    %v247 = vpop.xlane.xlu0 %246
    %v248 = vsel %vm244, %v243, 0.0
    %249 = vadd.xlane.f32.xlu0 %v248
    %v250 = vpop.xlane.xlu0 %249
    %v251 = vmul.f32 %v223, %v241
    %v252 = vmul.f32 %v224, %v241
    %v253 = vsel %vm244, %v251, 0.0
    %254 = vadd.xlane.f32.xlu0 %v253
    %v255 = vpop.xlane.xlu0 %254
    %v256 = vsel %vm244, %v252, 0.0
    %257 = vadd.xlane.f32.xlu0 %v256
    %v258 = vpop.xlane.xlu0 %257
    %v259 = vmul.f32 %v231, %v241
    %v260 = vmul.f32 %v232, %v241
    %v261 = vsel %vm244, %v259, 0.0
    %262 = vadd.xlane.f32.xlu0 %v261
    %v263 = vpop.xlane.xlu0 %262
    %v264 = vsel %vm244, %v260, 0.0
    %265 = vadd.xlane.f32.xlu0 %v264
    %v266 = vpop.xlane.xlu0 %265
    %v267 = vlaneseq
    %v268 = vshrl.u32 %v267, 7
    %v269 = vsub.s32 0, %v268
    %v270 = vrot.slane %v235, %v269
    %v271 = vmul.f32 %v247, %v270
    %v272 = vmul.f32 %v250, %v270
    %v273 = vlaneseq
    %v274 = vshrl.u32 %v273, 7
    %v275 = vsub.s32 1, %v274
    %v276 = vrot.slane %v235, %v275
    %v277 = vmul.f32 %v255, %v276
    %v278 = vmul.f32 %v258, %v276
    %v279 = vadd.f32 %v271, %v277
    %v280 = vadd.f32 %v272, %v278
    %v281 = vlaneseq
    %v282 = vshrl.u32 %v281, 7
    %v283 = vsub.s32 2, %v282
    %v284 = vrot.slane %v235, %v283
    %v285 = vmul.f32 %v263, %v284
    %v286 = vmul.f32 %v266, %v284
    %v287 = vadd.f32 %v279, %v285
    %v288 = vadd.f32 %v280, %v286
    %v289 = vld [vmem:[#allocation8] sm:$0x1]
    %v291 = vlaneseq
    %v292 = vshrl.u32 %v291, 7
    %v293 = vsub.s32 0, %v292
    %v294 = vrot.slane %v289, %v293
    %v296 = vadd.f32 %v287, %v294
    %v297 = vadd.f32 %v288, %v294
    %v298 = vadd.f32 %v296, %v236
    %v299 = vadd.f32 %v297, %v237
    %vm300 = vcmask 261120
    %301 = vst.msk [vmem:[#allocation2] sm:$0xff] %vm300, %v298
    %302 = vst.msk [vmem:[#allocation2 + $0x8] sm:$0xff] %vm300, %v299
    %v303 = vlaneseq
    %v304 = vshrl.u32 %v303, 7
    %v305 = vsub.s32 0, %v304
    %v306 = vrot.slane %v234, %v305
    %v307 = vmul.f32 %v223, %v306
    %v308 = vmul.f32 %v224, %v306
    %v309 = vsel %vm244, %v307, 0.0
    %310 = vadd.xlane.f32.xlu0 %v309
    %v311 = vpop.xlane.xlu0 %310
    %v312 = vsel %vm244, %v308, 0.0
    %313 = vadd.xlane.f32.xlu0 %v312
    %v314 = vpop.xlane.xlu0 %313
    %vm315 = vcmask 7168
    %316 = vst.msk [vmem:[#allocation3] sm:$0xff] %vm315, %v311
    %317 = vst.msk [vmem:[#allocation3 + $0x8] sm:$0xff] %vm315, %v314
    %v318 = vlaneseq
    %v319 = vshrl.u32 %v318, 7
    %v320 = vsub.s32 1, %v319
    %v321 = vrot.slane %v205, %v320
    %v322 = vmul.f32 %v217, %v321
    %v323 = vmul.f32 %v218, %v321
    %v324 = vsel %vm244, %v322, 0.0
    %325 = vadd.xlane.f32.xlu0 %v324
    %v326 = vpop.xlane.xlu0 %325
    %v327 = vsel %vm244, %v323, 0.0
    %328 = vadd.xlane.f32.xlu0 %v327
    %v329 = vpop.xlane.xlu0 %328
    %v330 = vmul.f32 %v223, %v321
    %v331 = vmul.f32 %v224, %v321
    %v332 = vsel %vm244, %v330, 0.0
    %333 = vadd.xlane.f32.xlu0 %v332
    %v334 = vpop.xlane.xlu0 %333
    %v335 = vsel %vm244, %v331, 0.0
    %336 = vadd.xlane.f32.xlu0 %v335
    %v337 = vpop.xlane.xlu0 %336
    %v338 = vmul.f32 %v231, %v321
    %v339 = vmul.f32 %v232, %v321
    %v340 = vsel %vm244, %v338, 0.0
    %341 = vadd.xlane.f32.xlu0 %v340
    %v342 = vpop.xlane.xlu0 %341
    %v343 = vsel %vm244, %v339, 0.0
    %344 = vadd.xlane.f32.xlu0 %v343
    %v345 = vpop.xlane.xlu0 %344
    %v346 = vmul.f32 %v326, %v270
    %v347 = vmul.f32 %v329, %v270
    %v348 = vmul.f32 %v334, %v276
    %v349 = vmul.f32 %v337, %v276
    %v350 = vadd.f32 %v346, %v348
    %v351 = vadd.f32 %v347, %v349
    %v352 = vmul.f32 %v342, %v284
    %v353 = vmul.f32 %v345, %v284
    %v354 = vadd.f32 %v350, %v352
    %v355 = vadd.f32 %v351, %v353
    %v356 = vld [vmem:[#allocation8] sm:$0x1]
    %v358 = vlaneseq
    %v359 = vshrl.u32 %v358, 7
    %v360 = vsub.s32 0, %v359
    %v361 = vrot.slane %v356, %v360
    %v363 = vadd.f32 %v354, %v361
    %v364 = vadd.f32 %v355, %v361
    %v365 = vadd.f32 %v363, %v236
    %v366 = vadd.f32 %v364, %v237
    %367 = vst.msk [vmem:[#allocation2 + $0x10] sm:$0xff] %vm300, %v365
    %368 = vst.msk [vmem:[#allocation2 + $0x18] sm:$0xff] %vm300, %v366
    %v369 = vlaneseq
    %v370 = vshrl.u32 %v369, 7
    %v371 = vsub.s32 1, %v370
    %v372 = vrot.slane %v234, %v371
    %v373 = vmul.f32 %v223, %v372
    %v374 = vmul.f32 %v224, %v372
    %v375 = vsel %vm244, %v373, 0.0
    %376 = vadd.xlane.f32.xlu0 %v375
    %v377 = vpop.xlane.xlu0 %376
    %v378 = vsel %vm244, %v374, 0.0
    %379 = vadd.xlane.f32.xlu0 %v378
    %v380 = vpop.xlane.xlu0 %379
    %381 = vst.msk [vmem:[#allocation3 + $0x10] sm:$0xff] %vm315, %v377
    %382 = vst.msk [vmem:[#allocation3 + $0x18] sm:$0xff] %vm315, %v380
    %v383 = vld [vmem:[#allocation2] sm:$0xff]
    %v384 = vld [vmem:[#allocation2 + $0x8] sm:$0xff]
    %v385 = vld [vmem:[#allocation2 + $0x10] sm:$0xff]
    %v386 = vld [vmem:[#allocation2 + $0x18] sm:$0xff]
    %v387 = vld [vmem:[#allocation3] sm:$0xff]
    %v388 = vld [vmem:[#allocation3 + $0x8] sm:$0xff]
    %v389 = vld [vmem:[#allocation3 + $0x10] sm:$0xff]
    %v390 = vld [vmem:[#allocation3 + $0x18] sm:$0xff]
    %v391 = vld [vmem:[#allocation10] sm:$0xf]
    %v392 = vld [vmem:[#allocation10 + $0x4] sm:$0xf]
    %v393 = vld [vmem:[#allocation10 + $0x8] sm:$0xf]
    %v394 = vld [vmem:[#allocation10 + $0xc] sm:$0xf]
    %v395 = vld [vmem:[#allocation11] sm:$0x1]
    %v396 = vld [vmem:[#allocation13] sm:$0xf]
    %v397 = vld [vmem:[#allocation13 + $0x4] sm:$0xf]
    %v398 = vld [vmem:[#allocation13 + $0x8] sm:$0xf]
    %v399 = vld [vmem:[#allocation13 + $0xc] sm:$0xf]
    %v400 = vld [vmem:[#allocation14] sm:$0x1]
    %v401 = vpack.c.bf16 %v384, %v383
    %v402 = vpack.c.bf16 %v386, %v385
    %v404 = vlaneseq
    %v405 = vshrl.u32 %v404, 7
    %v406 = vsub.s32 0, %v405
    %v407 = vrot.slane %v395, %v406
    %v413 = vunpack.c.l.b16 %v391
    %v414 = vunpack.c.l.b16 %v392
    %v415 = vunpack.c.l.b16 %v393
    %v416 = vunpack.c.l.b16 %v394
    %v417 = vpack.c.b16 %v414, %v413
    %v418 = vpack.c.b16 %v416, %v415
    %v422 = vsel %vm300, %v401, 0
    %v425 = vsel %vm300, %v402, 0
    %427 = vmatprep.subr.bf16.mxu0 0
    %428 = vmatpush1.bf16.msra.mxu0 %v417
    %429 = vmatprep.subr.bf16.mxu0 0
    %430 = vmatpush1.bf16.msra.mxu0 %v418
    %431 = vmatprep.subr.bf16.mxu0 0
    %432 = vmatpush1.bf16.msra.mxu0 0
    %433 = vmatprep.subr.bf16.mxu0 0
    %434 = vmatpush1.bf16.msra.mxu0 0
    %435 = vmatprep.subr.bf16.mxu0 0
    %436 = vmatpush1.bf16.msra.mxu0 0
    %437 = vmatprep.subr.bf16.mxu0 0
    %438 = vmatpush1.bf16.msra.mxu0 0
    %439 = vmatprep.subr.bf16.mxu0 0
    %440 = vmatpush1.bf16.msra.mxu0 0
    %441 = vmatprep.subr.bf16.mxu0 0
    %442 = vmatpush1.bf16.msra.mxu0 0
    %443 = vmatprep.subr.bf16.mxu0 0
    %444 = vmatpush1.bf16.msra.mxu0 0
    %445 = vmatprep.subr.bf16.mxu0 0
    %446 = vmatpush1.bf16.msra.mxu0 0
    %447 = vmatprep.subr.bf16.mxu0 0
    %448 = vmatpush1.bf16.msra.mxu0 0
    %449 = vmatprep.subr.bf16.mxu0 0
    %450 = vmatpush1.bf16.msra.mxu0 0
    %451 = vmatprep.subr.bf16.mxu0 0
    %452 = vmatpush1.bf16.msra.mxu0 0
    %453 = vmatprep.subr.bf16.mxu0 0
    %454 = vmatpush1.bf16.msra.mxu0 0
    %455 = vmatprep.subr.bf16.mxu0 0
    %456 = vmatpush1.bf16.msra.mxu0 0
    %457 = vmatprep.subr.bf16.mxu0 0
    %458 = vmatpush1.bf16.msra.mxu0 0
    %459 = vmatprep.mubr.bf16.mxu0 0
    %460 = vmatmul.mubr.bf16.gmra.mrb[0].mxu0 %v422
    %v461 = vpop.f32.mrb[0].mxu0
    %v462 = vadd.f32 %v407, %v461
    %v463 = vpop.f32.mrb[0].mxu0
    %v464 = vpop.f32.mrb[0].mxu0
    %v465 = vadd.f32 %v407, %v464
    %v466 = vpop.f32.mrb[0].mxu0
    %467 = vmatprep.mubr.bf16.mxu0 0
    %468 = vmatmul.mubr.bf16.gmra.mrb[0].mxu0 %v425
    %v469 = vpop.f32.mrb[0].mxu0
    %v470 = vadd.f32 %v407, %v469
    %v471 = vpop.f32.mrb[0].mxu0
    %v472 = vpop.f32.mrb[0].mxu0
    %v473 = vadd.f32 %v407, %v472
    %v474 = vpop.f32.mrb[0].mxu0
    %475 = vdwg.mxu0
    %v476 = vpack.c.bf16 %v465, %v462
    %478 = vrot.lane.b32.xlu0 %v476, 96
    %v479 = vpop.permute.xlu0 %478
    %v481 = vsel %vm244, %v476, 0
    %v484 = vsel %vm244, %v479, 0
    %486 = vmatprep.subr.bf16.mxu0 0
    %487 = vmatpush1.bf16.xpose.msra.mxu0 %v484
    %488 = vmatprep.subr.bf16.mxu0 0
    %489 = vmatpush1.bf16.xpose.msra.mxu0 0
    %490 = vmatprep.subr.bf16.mxu0 0
    %491 = vmatpush1.bf16.xpose.msra.mxu0 0
    %492 = vmatprep.subr.bf16.mxu0 0
    %493 = vmatpush1.bf16.xpose.msra.mxu0 0
    %494 = vmatprep.subr.bf16.mxu0 0
    %495 = vmatpush1.bf16.xpose.msra.mxu0 0
    %496 = vmatprep.subr.bf16.mxu0 0
    %497 = vmatpush1.bf16.xpose.msra.mxu0 0
    %498 = vmatprep.subr.bf16.mxu0 0
    %499 = vmatpush1.bf16.xpose.msra.mxu0 0
    %500 = vmatprep.subr.bf16.mxu0 0
    %501 = vmatpush1.bf16.xpose.msra.mxu0 0
    %502 = vmatprep.subr.bf16.mxu0 0
    %503 = vmatpush1.bf16.xpose.msra.mxu0 0
    %504 = vmatprep.subr.bf16.mxu0 0
    %505 = vmatpush1.bf16.xpose.msra.mxu0 0
    %506 = vmatprep.subr.bf16.mxu0 0
    %507 = vmatpush1.bf16.xpose.msra.mxu0 0
    %508 = vmatprep.subr.bf16.mxu0 0
    %509 = vmatpush1.bf16.xpose.msra.mxu0 0
    %510 = vmatprep.subr.bf16.mxu0 0
    %511 = vmatpush1.bf16.xpose.msra.mxu0 0
    %512 = vmatprep.subr.bf16.mxu0 0
    %513 = vmatpush1.bf16.xpose.msra.mxu0 0
    %514 = vmatprep.subr.bf16.mxu0 0
    %515 = vmatpush1.bf16.xpose.msra.mxu0 0
    %516 = vmatprep.subr.bf16.mxu0 0
    %517 = vmatpush1.bf16.xpose.msra.mxu0 0
    %518 = vmatprep.mubr.bf16.mxu0 0
    %519 = vmatmul.mubr.bf16.gmra.mrb[0].mxu0 %v481
    %v520 = vpop.f32.mrb[0].mxu0
    %v521 = vadd.f32 0.0, %v520
    %v522 = vpop.f32.mrb[0].mxu0
    %v523 = vpop.f32.mrb[0].mxu0
    %v524 = vadd.f32 0.0, %v523
    %v525 = vpop.f32.mrb[0].mxu0
    %526 = vdwg.mxu0
    %v527 = vsel %vm233, 1, 0
    %v528 = vlaneseq
    %v529 = vshrl.u32 %v528, 7
    %v530 = vsub.s32 0, %v529
    %v531 = vrot.slane %v527, %v530
    %vm532 = vcmp.eq.s32.totalorder %v531, 1
    %v533 = vsel %vm532, -1e+30, %v521
    %v534 = vsel %vm532, -1e+30, %v524
    %v535 = vsel %vm244, %v533, -inf
    %536 = vmax.xlane.f32.xlu0 %v535
    %v537 = vpop.xlane.xlu0 %536
    %v538 = vsel %vm244, %v534, -inf
    %539 = vmax.xlane.f32.xlu0 %v538
    %v540 = vpop.xlane.xlu0 %539
    %v541 = vsub.f32 %v533, %v537
    %v542 = vsub.f32 %v534, %v540
    %v543 = vmul.f32 %v541, 1.442695
    %v544 = vpow.pop %v543
    %v545 = vmul.f32 %v542, 1.442695
    %v546 = vpow.pop %v545
    %v547 = vsel %vm244, %v544, 0.0
    %548 = vadd.xlane.f32.xlu0 %v547
    %v549 = vpop.xlane.xlu0 %548
    %v550 = vsel %vm244, %v546, 0.0
    %551 = vadd.xlane.f32.xlu0 %v550
    %v552 = vpop.xlane.xlu0 %551
    %v553 = vrcp.pop %v549
    %v554 = vrcp.pop %v552
    %v555 = vmul.f32 %v544, %v553
    %v556 = vmul.f32 %v546, %v554
    %v557 = vpack.c.bf16 %v556, %v555
    %558 = vrot.lane.b32.xlu0 %v476, 64
    %v559 = vpop.permute.xlu0 %558
    %v562 = vsel %vm244, %v557, 0
    %564 = vmatprep.subr.bf16.mxu0 0
    %565 = vmatpush1.bf16.msra.mxu0 %v559
    %566 = vmatprep.subr.bf16.mxu0 0
    %567 = vmatpush1.bf16.msra.mxu0 0
    %568 = vmatprep.subr.bf16.mxu0 0
    %569 = vmatpush1.bf16.msra.mxu0 0
    %570 = vmatprep.subr.bf16.mxu0 0
    %571 = vmatpush1.bf16.msra.mxu0 0
    %572 = vmatprep.subr.bf16.mxu0 0
    %573 = vmatpush1.bf16.msra.mxu0 0
    %574 = vmatprep.subr.bf16.mxu0 0
    %575 = vmatpush1.bf16.msra.mxu0 0
    %576 = vmatprep.subr.bf16.mxu0 0
    %577 = vmatpush1.bf16.msra.mxu0 0
    %578 = vmatprep.subr.bf16.mxu0 0
    %579 = vmatpush1.bf16.msra.mxu0 0
    %580 = vmatprep.subr.bf16.mxu0 0
    %581 = vmatpush1.bf16.msra.mxu0 0
    %582 = vmatprep.subr.bf16.mxu0 0
    %583 = vmatpush1.bf16.msra.mxu0 0
    %584 = vmatprep.subr.bf16.mxu0 0
    %585 = vmatpush1.bf16.msra.mxu0 0
    %586 = vmatprep.subr.bf16.mxu0 0
    %587 = vmatpush1.bf16.msra.mxu0 0
    %588 = vmatprep.subr.bf16.mxu0 0
    %589 = vmatpush1.bf16.msra.mxu0 0
    %590 = vmatprep.subr.bf16.mxu0 0
    %591 = vmatpush1.bf16.msra.mxu0 0
    %592 = vmatprep.subr.bf16.mxu0 0
    %593 = vmatpush1.bf16.msra.mxu0 0
    %594 = vmatprep.subr.bf16.mxu0 0
    %595 = vmatpush1.bf16.msra.mxu0 0
    %596 = vmatprep.mubr.bf16.mxu0 0
    %597 = vmatmul.mubr.bf16.gmra.mrb[0].mxu0 %v562
    %v598 = vpop.f32.mrb[0].mxu0
    %v599 = vadd.f32 0.0, %v598
    %v600 = vpop.f32.mrb[0].mxu0
    %v601 = vpop.f32.mrb[0].mxu0
    %v602 = vadd.f32 0.0, %v601
    %v603 = vpop.f32.mrb[0].mxu0
    %604 = vdwg.mxu0
    %v605 = vpack.c.bf16 %v602, %v599
    %606 = vrot.lane.b32.xlu0 %v476, 112
    %v607 = vpop.permute.xlu0 %606
    %608 = vrot.lane.b32.xlu0 %v476, 80
    %v609 = vpop.permute.xlu0 %608
    %v611 = vsel %vm244, %v607, 0
    %v614 = vsel %vm244, %v609, 0
    %616 = vmatprep.subr.bf16.mxu0 0
    %617 = vmatpush1.bf16.xpose.msra.mxu0 %v614
    %618 = vmatprep.subr.bf16.mxu0 0
    %619 = vmatpush1.bf16.xpose.msra.mxu0 0
    %620 = vmatprep.subr.bf16.mxu0 0
    %621 = vmatpush1.bf16.xpose.msra.mxu0 0
    %622 = vmatprep.subr.bf16.mxu0 0
    %623 = vmatpush1.bf16.xpose.msra.mxu0 0
    %624 = vmatprep.subr.bf16.mxu0 0
    %625 = vmatpush1.bf16.xpose.msra.mxu0 0
    %626 = vmatprep.subr.bf16.mxu0 0
    %627 = vmatpush1.bf16.xpose.msra.mxu0 0
    %628 = vmatprep.subr.bf16.mxu0 0
    %629 = vmatpush1.bf16.xpose.msra.mxu0 0
    %630 = vmatprep.subr.bf16.mxu0 0
    %631 = vmatpush1.bf16.xpose.msra.mxu0 0
    %632 = vmatprep.subr.bf16.mxu0 0
    %633 = vmatpush1.bf16.xpose.msra.mxu0 0
    %634 = vmatprep.subr.bf16.mxu0 0
    %635 = vmatpush1.bf16.xpose.msra.mxu0 0
    %636 = vmatprep.subr.bf16.mxu0 0
    %637 = vmatpush1.bf16.xpose.msra.mxu0 0
    %638 = vmatprep.subr.bf16.mxu0 0
    %639 = vmatpush1.bf16.xpose.msra.mxu0 0
    %640 = vmatprep.subr.bf16.mxu0 0
    %641 = vmatpush1.bf16.xpose.msra.mxu0 0
    %642 = vmatprep.subr.bf16.mxu0 0
    %643 = vmatpush1.bf16.xpose.msra.mxu0 0
    %644 = vmatprep.subr.bf16.mxu0 0
    %645 = vmatpush1.bf16.xpose.msra.mxu0 0
    %646 = vmatprep.subr.bf16.mxu0 0
    %647 = vmatpush1.bf16.xpose.msra.mxu0 0
    %648 = vmatprep.mubr.bf16.mxu0 0
    %649 = vmatmul.mubr.bf16.gmra.mrb[0].mxu0 %v611
    %v650 = vpop.f32.mrb[0].mxu0
    %v651 = vadd.f32 0.0, %v650
    %v652 = vpop.f32.mrb[0].mxu0
    %v653 = vpop.f32.mrb[0].mxu0
    %v654 = vadd.f32 0.0, %v653
    %v655 = vpop.f32.mrb[0].mxu0
    %656 = vdwg.mxu0
    %v657 = vsel %vm532, -1e+30, %v651
    %v658 = vsel %vm532, -1e+30, %v654
    %v659 = vsel %vm244, %v657, -inf
    %660 = vmax.xlane.f32.xlu0 %v659
    %v661 = vpop.xlane.xlu0 %660
    %v662 = vsel %vm244, %v658, -inf
    %663 = vmax.xlane.f32.xlu0 %v662
    %v664 = vpop.xlane.xlu0 %663
    %v665 = vsub.f32 %v657, %v661
    %v666 = vsub.f32 %v658, %v664
    %v667 = vmul.f32 %v665, 1.442695
    %v668 = vpow.pop %v667
    %v669 = vmul.f32 %v666, 1.442695
    %v670 = vpow.pop %v669
    %v671 = vsel %vm244, %v668, 0.0
    %672 = vadd.xlane.f32.xlu0 %v671
    %v673 = vpop.xlane.xlu0 %672
    %v674 = vsel %vm244, %v670, 0.0
    %675 = vadd.xlane.f32.xlu0 %v674
    %v676 = vpop.xlane.xlu0 %675
    %v677 = vrcp.pop %v673
    %v678 = vrcp.pop %v676
    %v679 = vmul.f32 %v668, %v677
    %v680 = vmul.f32 %v670, %v678
    %v681 = vpack.c.bf16 %v680, %v679
    %682 = vrot.lane.b32.xlu0 %v476, 48
    %v683 = vpop.permute.xlu0 %682
    %v686 = vsel %vm244, %v681, 0
    %688 = vmatprep.subr.bf16.mxu0 0
    %689 = vmatpush1.bf16.msra.mxu0 %v683
    %690 = vmatprep.subr.bf16.mxu0 0
    %691 = vmatpush1.bf16.msra.mxu0 0
    %692 = vmatprep.subr.bf16.mxu0 0
    %693 = vmatpush1.bf16.msra.mxu0 0
    %694 = vmatprep.subr.bf16.mxu0 0
    %695 = vmatpush1.bf16.msra.mxu0 0
    %696 = vmatprep.subr.bf16.mxu0 0
    %697 = vmatpush1.bf16.msra.mxu0 0
    %698 = vmatprep.subr.bf16.mxu0 0
    %699 = vmatpush1.bf16.msra.mxu0 0
    %700 = vmatprep.subr.bf16.mxu0 0
    %701 = vmatpush1.bf16.msra.mxu0 0
    %702 = vmatprep.subr.bf16.mxu0 0
    %703 = vmatpush1.bf16.msra.mxu0 0
    %704 = vmatprep.subr.bf16.mxu0 0
    %705 = vmatpush1.bf16.msra.mxu0 0
    %706 = vmatprep.subr.bf16.mxu0 0
    %707 = vmatpush1.bf16.msra.mxu0 0
    %708 = vmatprep.subr.bf16.mxu0 0
    %709 = vmatpush1.bf16.msra.mxu0 0
    %710 = vmatprep.subr.bf16.mxu0 0
    %711 = vmatpush1.bf16.msra.mxu0 0
    %712 = vmatprep.subr.bf16.mxu0 0
    %713 = vmatpush1.bf16.msra.mxu0 0
    %714 = vmatprep.subr.bf16.mxu0 0
    %715 = vmatpush1.bf16.msra.mxu0 0
    %716 = vmatprep.subr.bf16.mxu0 0
    %717 = vmatpush1.bf16.msra.mxu0 0
    %718 = vmatprep.subr.bf16.mxu0 0
    %719 = vmatpush1.bf16.msra.mxu0 0
    %720 = vmatprep.mubr.bf16.mxu0 0
    %721 = vmatmul.mubr.bf16.gmra.mrb[0].mxu0 %v686
    %v722 = vpop.f32.mrb[0].mxu0
    %v723 = vadd.f32 0.0, %v722
    %v724 = vpop.f32.mrb[0].mxu0
    %v725 = vpop.f32.mrb[0].mxu0
    %v726 = vadd.f32 0.0, %v725
    %v727 = vpop.f32.mrb[0].mxu0
    %728 = vdwg.mxu0
    %v729 = vpack.c.bf16 %v726, %v723
    %v732 = vunpack.c.l.b16 %v398
    %v733 = vunpack.c.l.b16 %v399
    %v734 = vpack.c.b16 %v733, %v732
    %v737 = vsel %vm244, %v729, 0
    %739 = vmatprep.subr.bf16.mxu0 0
    %740 = vmatpush1.bf16.msra.mxu0 %v734
    %741 = vmatprep.subr.bf16.mxu0 0
    %742 = vmatpush1.bf16.msra.mxu0 0
    %743 = vmatprep.subr.bf16.mxu0 0
    %744 = vmatpush1.bf16.msra.mxu0 0
    %745 = vmatprep.subr.bf16.mxu0 0
    %746 = vmatpush1.bf16.msra.mxu0 0
    %747 = vmatprep.subr.bf16.mxu0 0
    %748 = vmatpush1.bf16.msra.mxu0 0
    %749 = vmatprep.subr.bf16.mxu0 0
    %750 = vmatpush1.bf16.msra.mxu0 0
    %751 = vmatprep.subr.bf16.mxu0 0
    %752 = vmatpush1.bf16.msra.mxu0 0
    %753 = vmatprep.subr.bf16.mxu0 0
    %754 = vmatpush1.bf16.msra.mxu0 0
    %755 = vmatprep.subr.bf16.mxu0 0
    %756 = vmatpush1.bf16.msra.mxu0 0
    %757 = vmatprep.subr.bf16.mxu0 0
    %758 = vmatpush1.bf16.msra.mxu0 0
    %759 = vmatprep.subr.bf16.mxu0 0
    %760 = vmatpush1.bf16.msra.mxu0 0
    %761 = vmatprep.subr.bf16.mxu0 0
    %762 = vmatpush1.bf16.msra.mxu0 0
    %763 = vmatprep.subr.bf16.mxu0 0
    %764 = vmatpush1.bf16.msra.mxu0 0
    %765 = vmatprep.subr.bf16.mxu0 0
    %766 = vmatpush1.bf16.msra.mxu0 0
    %767 = vmatprep.subr.bf16.mxu0 0
    %768 = vmatpush1.bf16.msra.mxu0 0
    %769 = vmatprep.subr.bf16.mxu0 0
    %770 = vmatpush1.bf16.msra.mxu0 0
    %771 = vmatprep.mubr.bf16.mxu0 0
    %772 = vmatmul.mubr.bf16.gmra.mrb[0].mxu0 %v737
    %v773 = vpop.f32.mrb[0].mxu0
    %v774 = vadd.f32 0.0, %v773
    %v775 = vpop.f32.mrb[0].mxu0
    %v776 = vpop.f32.mrb[0].mxu0
    %v777 = vadd.f32 0.0, %v776
    %v778 = vpop.f32.mrb[0].mxu0
    %779 = vdwg.mxu0
    %v782 = vunpack.c.l.b16 %v396
    %v783 = vunpack.c.l.b16 %v397
    %v784 = vpack.c.b16 %v783, %v782
    %v787 = vsel %vm244, %v605, 0
    %789 = vmatprep.subr.bf16.mxu0 0
    %790 = vmatpush1.bf16.msra.mxu0 %v784
    %791 = vmatprep.subr.bf16.mxu0 0
    %792 = vmatpush1.bf16.msra.mxu0 0
    %793 = vmatprep.subr.bf16.mxu0 0
    %794 = vmatpush1.bf16.msra.mxu0 0
    %795 = vmatprep.subr.bf16.mxu0 0
    %796 = vmatpush1.bf16.msra.mxu0 0
    %797 = vmatprep.subr.bf16.mxu0 0
    %798 = vmatpush1.bf16.msra.mxu0 0
    %799 = vmatprep.subr.bf16.mxu0 0
    %800 = vmatpush1.bf16.msra.mxu0 0
    %801 = vmatprep.subr.bf16.mxu0 0
    %802 = vmatpush1.bf16.msra.mxu0 0
    %803 = vmatprep.subr.bf16.mxu0 0
    %804 = vmatpush1.bf16.msra.mxu0 0
    %805 = vmatprep.subr.bf16.mxu0 0
    %806 = vmatpush1.bf16.msra.mxu0 0
    %807 = vmatprep.subr.bf16.mxu0 0
    %808 = vmatpush1.bf16.msra.mxu0 0
    %809 = vmatprep.subr.bf16.mxu0 0
    %810 = vmatpush1.bf16.msra.mxu0 0
    %811 = vmatprep.subr.bf16.mxu0 0
    %812 = vmatpush1.bf16.msra.mxu0 0
    %813 = vmatprep.subr.bf16.mxu0 0
    %814 = vmatpush1.bf16.msra.mxu0 0
    %815 = vmatprep.subr.bf16.mxu0 0
    %816 = vmatpush1.bf16.msra.mxu0 0
    %817 = vmatprep.subr.bf16.mxu0 0
    %818 = vmatpush1.bf16.msra.mxu0 0
    %819 = vmatprep.subr.bf16.mxu0 0
    %820 = vmatpush1.bf16.msra.mxu0 0
    %821 = vmatprep.mubr.bf16.mxu0 0
    %822 = vmatmul.mubr.bf16.gmra.mrb[0].mxu0 %v787
    %v823 = vpop.f32.mrb[0].mxu0
    %v824 = vadd.f32 %v774, %v823
    %v825 = vpop.f32.mrb[0].mxu0
    %v826 = vpop.f32.mrb[0].mxu0
    %v827 = vadd.f32 %v777, %v826
    %v828 = vpop.f32.mrb[0].mxu0
    %829 = vdwg.mxu0
    %830 = vst.msk [vmem:[#allocation2] sm:$0xff] %vm300, %v824
    %831 = vst.msk [vmem:[#allocation2 + $0x8] sm:$0xff] %vm300, %v827
    %v832 = vpack.c.bf16 %v473, %v470
    %834 = vrot.lane.b32.xlu0 %v832, 96
    %v835 = vpop.permute.xlu0 %834
    %v837 = vsel %vm244, %v832, 0
    %v840 = vsel %vm244, %v835, 0
    %842 = vmatprep.subr.bf16.mxu0 0
    %843 = vmatpush1.bf16.xpose.msra.mxu0 %v840
    %844 = vmatprep.subr.bf16.mxu0 0
    %845 = vmatpush1.bf16.xpose.msra.mxu0 0
    %846 = vmatprep.subr.bf16.mxu0 0
    %847 = vmatpush1.bf16.xpose.msra.mxu0 0
    %848 = vmatprep.subr.bf16.mxu0 0
    %849 = vmatpush1.bf16.xpose.msra.mxu0 0
    %850 = vmatprep.subr.bf16.mxu0 0
    %851 = vmatpush1.bf16.xpose.msra.mxu0 0
    %852 = vmatprep.subr.bf16.mxu0 0
    %853 = vmatpush1.bf16.xpose.msra.mxu0 0
    %854 = vmatprep.subr.bf16.mxu0 0
    %855 = vmatpush1.bf16.xpose.msra.mxu0 0
    %856 = vmatprep.subr.bf16.mxu0 0
    %857 = vmatpush1.bf16.xpose.msra.mxu0 0
    %858 = vmatprep.subr.bf16.mxu0 0
    %859 = vmatpush1.bf16.xpose.msra.mxu0 0
    %860 = vmatprep.subr.bf16.mxu0 0
    %861 = vmatpush1.bf16.xpose.msra.mxu0 0
    %862 = vmatprep.subr.bf16.mxu0 0
    %863 = vmatpush1.bf16.xpose.msra.mxu0 0
    %864 = vmatprep.subr.bf16.mxu0 0
    %865 = vmatpush1.bf16.xpose.msra.mxu0 0
    %866 = vmatprep.subr.bf16.mxu0 0
    %867 = vmatpush1.bf16.xpose.msra.mxu0 0
    %868 = vmatprep.subr.bf16.mxu0 0
    %869 = vmatpush1.bf16.xpose.msra.mxu0 0
    %870 = vmatprep.subr.bf16.mxu0 0
    %871 = vmatpush1.bf16.xpose.msra.mxu0 0
    %872 = vmatprep.subr.bf16.mxu0 0
    %873 = vmatpush1.bf16.xpose.msra.mxu0 0
    %874 = vmatprep.mubr.bf16.mxu0 0
    %875 = vmatmul.mubr.bf16.gmra.mrb[0].mxu0 %v837
    %v876 = vpop.f32.mrb[0].mxu0
    %v877 = vadd.f32 0.0, %v876
    %v878 = vpop.f32.mrb[0].mxu0
    %v879 = vpop.f32.mrb[0].mxu0
    %v880 = vadd.f32 0.0, %v879
    %v881 = vpop.f32.mrb[0].mxu0
    %882 = vdwg.mxu0
    %v883 = vlaneseq
    %v884 = vshrl.u32 %v883, 7
    %v885 = vsub.s32 1, %v884
    %v886 = vrot.slane %v527, %v885
    %vm887 = vcmp.eq.s32.totalorder %v886, 1
    %v888 = vsel %vm887, -1e+30, %v877
    %v889 = vsel %vm887, -1e+30, %v880
    %v890 = vsel %vm244, %v888, -inf
    %891 = vmax.xlane.f32.xlu0 %v890
    %v892 = vpop.xlane.xlu0 %891
    %v893 = vsel %vm244, %v889, -inf
    %894 = vmax.xlane.f32.xlu0 %v893
    %v895 = vpop.xlane.xlu0 %894
    %v896 = vsub.f32 %v888, %v892
    %v897 = vsub.f32 %v889, %v895
    %v898 = vmul.f32 %v896, 1.442695
    %v899 = vpow.pop %v898
    %v900 = vmul.f32 %v897, 1.442695
    %v901 = vpow.pop %v900
    %v902 = vsel %vm244, %v899, 0.0
    %903 = vadd.xlane.f32.xlu0 %v902
    %v904 = vpop.xlane.xlu0 %903
    %v905 = vsel %vm244, %v901, 0.0
    %906 = vadd.xlane.f32.xlu0 %v905
    %v907 = vpop.xlane.xlu0 %906
    %v908 = vrcp.pop %v904
    %v909 = vrcp.pop %v907
    %v910 = vmul.f32 %v899, %v908
    %v911 = vmul.f32 %v901, %v909
    %v912 = vpack.c.bf16 %v911, %v910
    %913 = vrot.lane.b32.xlu0 %v832, 64
    %v914 = vpop.permute.xlu0 %913
    %v917 = vsel %vm244, %v912, 0
    %919 = vmatprep.subr.bf16.mxu0 0
    %920 = vmatpush1.bf16.msra.mxu0 %v914
    %921 = vmatprep.subr.bf16.mxu0 0
    %922 = vmatpush1.bf16.msra.mxu0 0
    %923 = vmatprep.subr.bf16.mxu0 0
    %924 = vmatpush1.bf16.msra.mxu0 0
    %925 = vmatprep.subr.bf16.mxu0 0
    %926 = vmatpush1.bf16.msra.mxu0 0
    %927 = vmatprep.subr.bf16.mxu0 0
    %928 = vmatpush1.bf16.msra.mxu0 0
    %929 = vmatprep.subr.bf16.mxu0 0
    %930 = vmatpush1.bf16.msra.mxu0 0
    %931 = vmatprep.subr.bf16.mxu0 0
    %932 = vmatpush1.bf16.msra.mxu0 0
    %933 = vmatprep.subr.bf16.mxu0 0
    %934 = vmatpush1.bf16.msra.mxu0 0
    %935 = vmatprep.subr.bf16.mxu0 0
    %936 = vmatpush1.bf16.msra.mxu0 0
    %937 = vmatprep.subr.bf16.mxu0 0
    %938 = vmatpush1.bf16.msra.mxu0 0
    %939 = vmatprep.subr.bf16.mxu0 0
    %940 = vmatpush1.bf16.msra.mxu0 0
    %941 = vmatprep.subr.bf16.mxu0 0
    %942 = vmatpush1.bf16.msra.mxu0 0
    %943 = vmatprep.subr.bf16.mxu0 0
    %944 = vmatpush1.bf16.msra.mxu0 0
    %945 = vmatprep.subr.bf16.mxu0 0
    %946 = vmatpush1.bf16.msra.mxu0 0
    %947 = vmatprep.subr.bf16.mxu0 0
    %948 = vmatpush1.bf16.msra.mxu0 0
    %949 = vmatprep.subr.bf16.mxu0 0
    %950 = vmatpush1.bf16.msra.mxu0 0
    %951 = vmatprep.mubr.bf16.mxu0 0
    %952 = vmatmul.mubr.bf16.gmra.mrb[0].mxu0 %v917
    %v953 = vpop.f32.mrb[0].mxu0
    %v954 = vadd.f32 0.0, %v953
    %v955 = vpop.f32.mrb[0].mxu0
    %v956 = vpop.f32.mrb[0].mxu0
    %v957 = vadd.f32 0.0, %v956
    %v958 = vpop.f32.mrb[0].mxu0
    %959 = vdwg.mxu0
    %v960 = vpack.c.bf16 %v957, %v954
    %961 = vrot.lane.b32.xlu0 %v832, 112
    %v962 = vpop.permute.xlu0 %961
    %963 = vrot.lane.b32.xlu0 %v832, 80
    %v964 = vpop.permute.xlu0 %963
    %v966 = vsel %vm244, %v962, 0
    %v969 = vsel %vm244, %v964, 0
    %971 = vmatprep.subr.bf16.mxu0 0
    %972 = vmatpush1.bf16.xpose.msra.mxu0 %v969
    %973 = vmatprep.subr.bf16.mxu0 0
    %974 = vmatpush1.bf16.xpose.msra.mxu0 0
    %975 = vmatprep.subr.bf16.mxu0 0
    %976 = vmatpush1.bf16.xpose.msra.mxu0 0
    %977 = vmatprep.subr.bf16.mxu0 0
    %978 = vmatpush1.bf16.xpose.msra.mxu0 0
    %979 = vmatprep.subr.bf16.mxu0 0
    %980 = vmatpush1.bf16.xpose.msra.mxu0 0
    %981 = vmatprep.subr.bf16.mxu0 0
    %982 = vmatpush1.bf16.xpose.msra.mxu0 0
    %983 = vmatprep.subr.bf16.mxu0 0
    %984 = vmatpush1.bf16.xpose.msra.mxu0 0
    %985 = vmatprep.subr.bf16.mxu0 0
    %986 = vmatpush1.bf16.xpose.msra.mxu0 0
    %987 = vmatprep.subr.bf16.mxu0 0
    %988 = vmatpush1.bf16.xpose.msra.mxu0 0
    %989 = vmatprep.subr.bf16.mxu0 0
    %990 = vmatpush1.bf16.xpose.msra.mxu0 0
    %991 = vmatprep.subr.bf16.mxu0 0
    %992 = vmatpush1.bf16.xpose.msra.mxu0 0
    %993 = vmatprep.subr.bf16.mxu0 0
    %994 = vmatpush1.bf16.xpose.msra.mxu0 0
    %995 = vmatprep.subr.bf16.mxu0 0
    %996 = vmatpush1.bf16.xpose.msra.mxu0 0
    %997 = vmatprep.subr.bf16.mxu0 0
    %998 = vmatpush1.bf16.xpose.msra.mxu0 0
    %999 = vmatprep.subr.bf16.mxu0 0
    %1000 = vmatpush1.bf16.xpose.msra.mxu0 0
    %1001 = vmatprep.subr.bf16.mxu0 0
    %1002 = vmatpush1.bf16.xpose.msra.mxu0 0
    %1003 = vmatprep.mubr.bf16.mxu0 0
    %1004 = vmatmul.mubr.bf16.gmra.mrb[0].mxu0 %v966
    %v1005 = vpop.f32.mrb[0].mxu0
    %v1006 = vadd.f32 0.0, %v1005
    %v1007 = vpop.f32.mrb[0].mxu0
    %v1008 = vpop.f32.mrb[0].mxu0
    %v1009 = vadd.f32 0.0, %v1008
    %v1010 = vpop.f32.mrb[0].mxu0
    %1011 = vdwg.mxu0
    %v1012 = vsel %vm887, -1e+30, %v1006
    %v1013 = vsel %vm887, -1e+30, %v1009
    %v1014 = vsel %vm244, %v1012, -inf
    %1015 = vmax.xlane.f32.xlu0 %v1014
    %v1016 = vpop.xlane.xlu0 %1015
    %v1017 = vsel %vm244, %v1013, -inf
    %1018 = vmax.xlane.f32.xlu0 %v1017
    %v1019 = vpop.xlane.xlu0 %1018
    %v1020 = vsub.f32 %v1012, %v1016
    %v1021 = vsub.f32 %v1013, %v1019
    %v1022 = vmul.f32 %v1020, 1.442695
    %v1023 = vpow.pop %v1022
    %v1024 = vmul.f32 %v1021, 1.442695
    %v1025 = vpow.pop %v1024
    %v1026 = vsel %vm244, %v1023, 0.0
    %1027 = vadd.xlane.f32.xlu0 %v1026
    %v1028 = vpop.xlane.xlu0 %1027
    %v1029 = vsel %vm244, %v1025, 0.0
    %1030 = vadd.xlane.f32.xlu0 %v1029
    %v1031 = vpop.xlane.xlu0 %1030
    %v1032 = vrcp.pop %v1028
    %v1033 = vrcp.pop %v1031
    %v1034 = vmul.f32 %v1023, %v1032
    %v1035 = vmul.f32 %v1025, %v1033
    %v1036 = vpack.c.bf16 %v1035, %v1034
    %1037 = vrot.lane.b32.xlu0 %v832, 48
    %v1038 = vpop.permute.xlu0 %1037
    %v1041 = vsel %vm244, %v1036, 0
    %1043 = vmatprep.subr.bf16.mxu0 0
    %1044 = vmatpush1.bf16.msra.mxu0 %v1038
    %1045 = vmatprep.subr.bf16.mxu0 0
    %1046 = vmatpush1.bf16.msra.mxu0 0
    %1047 = vmatprep.subr.bf16.mxu0 0
    %1048 = vmatpush1.bf16.msra.mxu0 0
    %1049 = vmatprep.subr.bf16.mxu0 0
    %1050 = vmatpush1.bf16.msra.mxu0 0
    %1051 = vmatprep.subr.bf16.mxu0 0
    %1052 = vmatpush1.bf16.msra.mxu0 0
    %1053 = vmatprep.subr.bf16.mxu0 0
    %1054 = vmatpush1.bf16.msra.mxu0 0
    %1055 = vmatprep.subr.bf16.mxu0 0
    %1056 = vmatpush1.bf16.msra.mxu0 0
    %1057 = vmatprep.subr.bf16.mxu0 0
    %1058 = vmatpush1.bf16.msra.mxu0 0
    %1059 = vmatprep.subr.bf16.mxu0 0
    %1060 = vmatpush1.bf16.msra.mxu0 0
    %1061 = vmatprep.subr.bf16.mxu0 0
    %1062 = vmatpush1.bf16.msra.mxu0 0
    %1063 = vmatprep.subr.bf16.mxu0 0
    %1064 = vmatpush1.bf16.msra.mxu0 0
    %1065 = vmatprep.subr.bf16.mxu0 0
    %1066 = vmatpush1.bf16.msra.mxu0 0
    %1067 = vmatprep.subr.bf16.mxu0 0
    %1068 = vmatpush1.bf16.msra.mxu0 0
    %1069 = vmatprep.subr.bf16.mxu0 0
    %1070 = vmatpush1.bf16.msra.mxu0 0
    %1071 = vmatprep.subr.bf16.mxu0 0
    %1072 = vmatpush1.bf16.msra.mxu0 0
    %1073 = vmatprep.subr.bf16.mxu0 0
    %1074 = vmatpush1.bf16.msra.mxu0 0
    %1075 = vmatprep.mubr.bf16.mxu0 0
    %1076 = vmatmul.mubr.bf16.gmra.mrb[0].mxu0 %v1041
    %v1077 = vpop.f32.mrb[0].mxu0
    %v1078 = vadd.f32 0.0, %v1077
    %v1079 = vpop.f32.mrb[0].mxu0
    %v1080 = vpop.f32.mrb[0].mxu0
    %v1081 = vadd.f32 0.0, %v1080
    %v1082 = vpop.f32.mrb[0].mxu0
    %1083 = vdwg.mxu0
    %v1084 = vpack.c.bf16 %v1081, %v1078
    %v1086 = vsel %vm244, %v1084, 0
    %1088 = vmatprep.subr.bf16.mxu0 0
    %1089 = vmatpush1.bf16.msra.mxu0 %v734
    %1090 = vmatprep.subr.bf16.mxu0 0
    %1091 = vmatpush1.bf16.msra.mxu0 0
    %1092 = vmatprep.subr.bf16.mxu0 0
    %1093 = vmatpush1.bf16.msra.mxu0 0
    %1094 = vmatprep.subr.bf16.mxu0 0
    %1095 = vmatpush1.bf16.msra.mxu0 0
    %1096 = vmatprep.subr.bf16.mxu0 0
    %1097 = vmatpush1.bf16.msra.mxu0 0
    %1098 = vmatprep.subr.bf16.mxu0 0
    %1099 = vmatpush1.bf16.msra.mxu0 0
    %1100 = vmatprep.subr.bf16.mxu0 0
    %1101 = vmatpush1.bf16.msra.mxu0 0
    %1102 = vmatprep.subr.bf16.mxu0 0
    %1103 = vmatpush1.bf16.msra.mxu0 0
    %1104 = vmatprep.subr.bf16.mxu0 0
    %1105 = vmatpush1.bf16.msra.mxu0 0
    %1106 = vmatprep.subr.bf16.mxu0 0
    %1107 = vmatpush1.bf16.msra.mxu0 0
    %1108 = vmatprep.subr.bf16.mxu0 0
    %1109 = vmatpush1.bf16.msra.mxu0 0
    %1110 = vmatprep.subr.bf16.mxu0 0
    %1111 = vmatpush1.bf16.msra.mxu0 0
    %1112 = vmatprep.subr.bf16.mxu0 0
    %1113 = vmatpush1.bf16.msra.mxu0 0
    %1114 = vmatprep.subr.bf16.mxu0 0
    %1115 = vmatpush1.bf16.msra.mxu0 0
    %1116 = vmatprep.subr.bf16.mxu0 0
    %1117 = vmatpush1.bf16.msra.mxu0 0
    %1118 = vmatprep.subr.bf16.mxu0 0
    %1119 = vmatpush1.bf16.msra.mxu0 0
    %1120 = vmatprep.mubr.bf16.mxu0 0
    %1121 = vmatmul.mubr.bf16.gmra.mrb[0].mxu0 %v1086
    %v1122 = vpop.f32.mrb[0].mxu0
    %v1123 = vadd.f32 0.0, %v1122
    %v1124 = vpop.f32.mrb[0].mxu0
    %v1125 = vpop.f32.mrb[0].mxu0
    %v1126 = vadd.f32 0.0, %v1125
    %v1127 = vpop.f32.mrb[0].mxu0
    %1128 = vdwg.mxu0
    %v1130 = vsel %vm244, %v960, 0
    %1132 = vmatprep.subr.bf16.mxu0 0
    %1133 = vmatpush1.bf16.msra.mxu0 %v784
    %1134 = vmatprep.subr.bf16.mxu0 0
    %1135 = vmatpush1.bf16.msra.mxu0 0
    %1136 = vmatprep.subr.bf16.mxu0 0
    %1137 = vmatpush1.bf16.msra.mxu0 0
    %1138 = vmatprep.subr.bf16.mxu0 0
    %1139 = vmatpush1.bf16.msra.mxu0 0
    %1140 = vmatprep.subr.bf16.mxu0 0
    %1141 = vmatpush1.bf16.msra.mxu0 0
    %1142 = vmatprep.subr.bf16.mxu0 0
    %1143 = vmatpush1.bf16.msra.mxu0 0
    %1144 = vmatprep.subr.bf16.mxu0 0
    %1145 = vmatpush1.bf16.msra.mxu0 0
    %1146 = vmatprep.subr.bf16.mxu0 0
    %1147 = vmatpush1.bf16.msra.mxu0 0
    %1148 = vmatprep.subr.bf16.mxu0 0
    %1149 = vmatpush1.bf16.msra.mxu0 0
    %1150 = vmatprep.subr.bf16.mxu0 0
    %1151 = vmatpush1.bf16.msra.mxu0 0
    %1152 = vmatprep.subr.bf16.mxu0 0
    %1153 = vmatpush1.bf16.msra.mxu0 0
    %1154 = vmatprep.subr.bf16.mxu0 0
    %1155 = vmatpush1.bf16.msra.mxu0 0
    %1156 = vmatprep.subr.bf16.mxu0 0
    %1157 = vmatpush1.bf16.msra.mxu0 0
    %1158 = vmatprep.subr.bf16.mxu0 0
    %1159 = vmatpush1.bf16.msra.mxu0 0
    %1160 = vmatprep.subr.bf16.mxu0 0
    %1161 = vmatpush1.bf16.msra.mxu0 0
    %1162 = vmatprep.subr.bf16.mxu0 0
    %1163 = vmatpush1.bf16.msra.mxu0 0
    %1164 = vmatprep.mubr.bf16.mxu0 0
    %1165 = vmatmul.mubr.bf16.gmra.mrb[0].mxu0 %v1130
    %v1166 = vpop.f32.mrb[0].mxu0
    %v1167 = vadd.f32 %v1123, %v1166
    %v1168 = vpop.f32.mrb[0].mxu0
    %v1169 = vpop.f32.mrb[0].mxu0
    %v1170 = vadd.f32 %v1126, %v1169
    %v1171 = vpop.f32.mrb[0].mxu0
    %1172 = vdwg.mxu0
    %1173 = vst.msk [vmem:[#allocation2 + $0x10] sm:$0xff] %vm300, %v1167
    %1174 = vst.msk [vmem:[#allocation2 + $0x18] sm:$0xff] %vm300, %v1170
    %v1175 = vld [vmem:[#allocation2] sm:$0xff]
    %v1176 = vld [vmem:[#allocation2 + $0x8] sm:$0xff]
    %v1177 = vld [vmem:[#allocation2 + $0x10] sm:$0xff]
    %v1178 = vld [vmem:[#allocation2 + $0x18] sm:$0xff]
    %v1180 = vlaneseq
    %v1181 = vshrl.u32 %v1180, 7
    %v1182 = vsub.s32 0, %v1181
    %v1183 = vrot.slane %v400, %v1182
    %v1185 = vadd.f32 %v1175, %v1183
    %v1186 = vadd.f32 %v1176, %v1183
    %v1187 = vadd.f32 %v1177, %v1183
    %v1188 = vadd.f32 %v1178, %v1183
    %v1189 = vadd.f32 %v1185, %v383
    %v1190 = vadd.f32 %v1186, %v384
    %v1191 = vadd.f32 %v1187, %v385
    %v1192 = vadd.f32 %v1188, %v386
    %v1193 = vsel %vm300, %v1189, 0.0
    %1194 = vadd.xlane.f32.xlu0 %v1193
    %v1195 = vpop.xlane.xlu0 %1194
    %v1196 = vsel %vm300, %v1190, 0.0
    %1197 = vadd.xlane.f32.xlu0 %v1196
    %v1198 = vpop.xlane.xlu0 %1197
    %v1199 = vsel %vm300, %v1191, 0.0
    %1200 = vadd.xlane.f32.xlu0 %v1199
    %v1201 = vpop.xlane.xlu0 %1200
    %v1202 = vsel %vm300, %v1192, 0.0
    %1203 = vadd.xlane.f32.xlu0 %v1202
    %v1204 = vpop.xlane.xlu0 %1203
    %v1205 = vrcp.pop 32.0
    %v1206 = vmul.f32 %v1195, %v1205
    %v1207 = vmul.f32 %v1198, %v1205
    %v1208 = vmul.f32 %v1201, %v1205
    %v1209 = vmul.f32 %v1204, %v1205
    %v1210 = vsub.f32 %v1189, %v1206
    %v1211 = vsub.f32 %v1190, %v1207
    %v1212 = vsub.f32 %v1191, %v1208
    %v1213 = vsub.f32 %v1192, %v1209
    %v1214 = vmul.f32 %v1210, %v1210
    %v1215 = vmul.f32 %v1211, %v1211
    %v1216 = vmul.f32 %v1212, %v1212
    %v1217 = vmul.f32 %v1213, %v1213
    %v1218 = vsel %vm300, %v1214, 0.0
    %1219 = vadd.xlane.f32.xlu0 %v1218
    %v1220 = vpop.xlane.xlu0 %1219
    %v1221 = vsel %vm300, %v1215, 0.0
    %1222 = vadd.xlane.f32.xlu0 %v1221
    %v1223 = vpop.xlane.xlu0 %1222
    %v1224 = vsel %vm300, %v1216, 0.0
    %1225 = vadd.xlane.f32.xlu0 %v1224
    %v1226 = vpop.xlane.xlu0 %1225
    %v1227 = vsel %vm300, %v1217, 0.0
    %1228 = vadd.xlane.f32.xlu0 %v1227
    %v1229 = vpop.xlane.xlu0 %1228
    %v1230 = vmul.f32 %v1220, %v1205
    %v1231 = vmul.f32 %v1223, %v1205
    %v1232 = vmul.f32 %v1226, %v1205
    %v1233 = vmul.f32 %v1229, %v1205
    %v1234 = vadd.f32 %v1230, 1e-05
    %v1235 = vadd.f32 %v1231, 1e-05
    %v1236 = vadd.f32 %v1232, 1e-05
    %v1237 = vadd.f32 %v1233, 1e-05
    %v1238 = vrsqrt.pop %v1234
    %v1239 = vrsqrt.pop %v1235
    %v1240 = vrsqrt.pop %v1236
    %v1241 = vrsqrt.pop %v1237
    %v1242 = vmul.f32 %v1210, %v1238
    %v1243 = vmul.f32 %v1211, %v1239
    %v1244 = vmul.f32 %v1212, %v1240
    %v1245 = vmul.f32 %v1213, %v1241
    %v1246 = vld [vmem:[%s8] sm:$0x1]
    %v1248 = vlaneseq
    %v1249 = vshrl.u32 %v1248, 7
    %v1250 = vsub.s32 0, %v1249
    %v1251 = vrot.slane %v1246, %v1250
    %v1253 = vmul.f32 %v1242, %v1251
    %v1254 = vmul.f32 %v1243, %v1251
    %v1255 = vmul.f32 %v1244, %v1251
    %v1256 = vmul.f32 %v1245, %v1251
    %v1257 = vld [vmem:[%s9] sm:$0x1]
    %v1259 = vlaneseq
    %v1260 = vshrl.u32 %v1259, 7
    %v1261 = vsub.s32 0, %v1260
    %v1262 = vrot.slane %v1257, %v1261
    %v1264 = vadd.f32 %v1253, %v1262
    %v1265 = vadd.f32 %v1254, %v1262
    %v1266 = vadd.f32 %v1255, %v1262
    %v1267 = vadd.f32 %v1256, %v1262
    %1269 = vset.pattern.permute.xlu0 0
    %1270 = vperm.xlu0 %1269, %v387
    %v1271 = vpop.permute.xlu0 %1270
    %1274 = vset.pattern.permute.xlu0 0
    %1275 = vperm.xlu0 %1274, %v388
    %v1276 = vpop.permute.xlu0 %1275
    %1279 = vset.pattern.permute.xlu0 0
    %1280 = vperm.xlu0 %1279, %v389
    %v1281 = vpop.permute.xlu0 %1280
    %1284 = vset.pattern.permute.xlu0 0
    %1285 = vperm.xlu0 %1284, %v390
    %v1286 = vpop.permute.xlu0 %1285
    %v1288 = vmul.f32 %v1264, %v1271
    %v1289 = vmul.f32 %v1265, %v1276
    %v1290 = vmul.f32 %v1266, %v1281
    %v1291 = vmul.f32 %v1267, %v1286
    %v1292 = vpack.c.bf16 %v1289, %v1288
    %v1293 = vpack.c.bf16 %v1291, %v1290
    %v1294 = vld [vmem:[#allocation16] sm:$0xf]
    %v1295 = vld [vmem:[#allocation16 + $0x4] sm:$0xf]
    %v1296 = vld [vmem:[#allocation16 + $0x8] sm:$0xf]
    %v1297 = vld [vmem:[#allocation16 + $0xc] sm:$0xf]
    %v1298 = vld [vmem:[#allocation17] sm:$0x1]
    %v1300 = vlaneseq
    %v1301 = vshrl.u32 %v1300, 7
    %v1302 = vsub.s32 0, %v1301
    %v1303 = vrot.slane %v1298, %v1302
    %v1309 = vunpack.c.l.b16 %v1294
    %v1310 = vunpack.c.l.b16 %v1295
    %v1311 = vunpack.c.l.b16 %v1296
    %v1312 = vunpack.c.l.b16 %v1297
    %v1313 = vpack.c.b16 %v1310, %v1309
    %v1314 = vpack.c.b16 %v1312, %v1311
    %v1318 = vsel %vm300, %v1292, 0
    %v1321 = vsel %vm300, %v1293, 0
    %1323 = vmatprep.subr.bf16.mxu0 0
    %1324 = vmatpush1.bf16.msra.mxu0 %v1313
    %1325 = vmatprep.subr.bf16.mxu0 0
    %1326 = vmatpush1.bf16.msra.mxu0 %v1314
    %1327 = vmatprep.subr.bf16.mxu0 0
    %1328 = vmatpush1.bf16.msra.mxu0 0
    %1329 = vmatprep.subr.bf16.mxu0 0
    %1330 = vmatpush1.bf16.msra.mxu0 0
    %1331 = vmatprep.subr.bf16.mxu0 0
    %1332 = vmatpush1.bf16.msra.mxu0 0
    %1333 = vmatprep.subr.bf16.mxu0 0
    %1334 = vmatpush1.bf16.msra.mxu0 0
    %1335 = vmatprep.subr.bf16.mxu0 0
    %1336 = vmatpush1.bf16.msra.mxu0 0
    %1337 = vmatprep.subr.bf16.mxu0 0
    %1338 = vmatpush1.bf16.msra.mxu0 0
    %1339 = vmatprep.subr.bf16.mxu0 0
    %1340 = vmatpush1.bf16.msra.mxu0 0
    %1341 = vmatprep.subr.bf16.mxu0 0
    %1342 = vmatpush1.bf16.msra.mxu0 0
    %1343 = vmatprep.subr.bf16.mxu0 0
    %1344 = vmatpush1.bf16.msra.mxu0 0
    %1345 = vmatprep.subr.bf16.mxu0 0
    %1346 = vmatpush1.bf16.msra.mxu0 0
    %1347 = vmatprep.subr.bf16.mxu0 0
    %1348 = vmatpush1.bf16.msra.mxu0 0
    %1349 = vmatprep.subr.bf16.mxu0 0
    %1350 = vmatpush1.bf16.msra.mxu0 0
    %1351 = vmatprep.subr.bf16.mxu0 0
    %1352 = vmatpush1.bf16.msra.mxu0 0
    %1353 = vmatprep.subr.bf16.mxu0 0
    %1354 = vmatpush1.bf16.msra.mxu0 0
    %1355 = vmatprep.mubr.bf16.mxu0 0
    %1356 = vmatmul.mubr.bf16.gmra.mrb[0].mxu0 %v1318
    %v1357 = vpop.f32.mrb[0].mxu0
    %v1358 = vadd.f32 %v1303, %v1357
    %v1359 = vpop.f32.mrb[0].mxu0
    %v1360 = vpop.f32.mrb[0].mxu0
    %v1361 = vadd.f32 %v1303, %v1360
    %v1362 = vpop.f32.mrb[0].mxu0
    %1363 = vmatprep.mubr.bf16.mxu0 0
    %1364 = vmatmul.mubr.bf16.gmra.mrb[0].mxu0 %v1321
    %v1365 = vpop.f32.mrb[0].mxu0
    %v1366 = vadd.f32 %v1303, %v1365
    %v1367 = vpop.f32.mrb[0].mxu0
    %v1368 = vpop.f32.mrb[0].mxu0
    %v1369 = vadd.f32 %v1303, %v1368
    %v1370 = vpop.f32.mrb[0].mxu0
    %1371 = vdwg.mxu0
    %v1372 = vmax.f32 %v1358, 0.0
    %v1373 = vmax.f32 %v1361, 0.0
    %v1374 = vmax.f32 %v1366, 0.0
    %v1375 = vmax.f32 %v1369, 0.0
    %v1376 = vpack.c.bf16 %v1373, %v1372
    %v1377 = vpack.c.bf16 %v1375, %v1374
    %v1378 = vld [vmem:[%s12] sm:$0xf]
    %v1379 = vld [vmem:[%s12 + $0x4] sm:$0xf]
    %v1380 = vld [vmem:[%s12 + $0x8] sm:$0xf]
    %v1381 = vld [vmem:[%s12 + $0xc] sm:$0xf]
    %v1382 = vld [vmem:[%s12 + $0x10] sm:$0xf]
    %v1383 = vld [vmem:[%s12 + $0x14] sm:$0xf]
    %v1384 = vld [vmem:[%s12 + $0x18] sm:$0xf]
    %v1385 = vld [vmem:[%s12 + $0x1c] sm:$0xf]
    %v1386 = vld [vmem:[#allocation19] sm:$0x1]
    %v1388 = vlaneseq
    %v1389 = vshrl.u32 %v1388, 7
    %v1390 = vsub.s32 0, %v1389
    %v1391 = vrot.slane %v1386, %v1390
    %v1401 = vunpack.c.l.b16 %v1378
    %v1402 = vunpack.c.l.b16 %v1379
    %v1403 = vunpack.c.l.b16 %v1380
    %v1404 = vunpack.c.l.b16 %v1381
    %v1405 = vunpack.c.l.b16 %v1382
    %v1406 = vunpack.c.l.b16 %v1383
    %v1407 = vunpack.c.l.b16 %v1384
    %v1408 = vunpack.c.l.b16 %v1385
    %v1409 = vpack.c.b16 %v1402, %v1401
    %v1410 = vpack.c.b16 %v1404, %v1403
    %v1411 = vpack.c.b16 %v1406, %v1405
    %v1412 = vpack.c.b16 %v1408, %v1407
    %vm1417 = vcmask 523264
    %v1419 = vsel %vm1417, %v1376, 0
    %v1422 = vsel %vm1417, %v1377, 0
    %1424 = vmatprep.subr.bf16.mxu0 0
    %1425 = vmatpush1.bf16.msra.mxu0 %v1409
    %1426 = vmatprep.subr.bf16.mxu0 0
    %1427 = vmatpush1.bf16.msra.mxu0 %v1410
    %1428 = vmatprep.subr.bf16.mxu0 0
    %1429 = vmatpush1.bf16.msra.mxu0 %v1411
    %1430 = vmatprep.subr.bf16.mxu0 0
    %1431 = vmatpush1.bf16.msra.mxu0 %v1412
    %1432 = vmatprep.subr.bf16.mxu0 0
    %1433 = vmatpush1.bf16.msra.mxu0 0
    %1434 = vmatprep.subr.bf16.mxu0 0
    %1435 = vmatpush1.bf16.msra.mxu0 0
    %1436 = vmatprep.subr.bf16.mxu0 0
    %1437 = vmatpush1.bf16.msra.mxu0 0
    %1438 = vmatprep.subr.bf16.mxu0 0
    %1439 = vmatpush1.bf16.msra.mxu0 0
    %1440 = vmatprep.subr.bf16.mxu0 0
    %1441 = vmatpush1.bf16.msra.mxu0 0
    %1442 = vmatprep.subr.bf16.mxu0 0
    %1443 = vmatpush1.bf16.msra.mxu0 0
    %1444 = vmatprep.subr.bf16.mxu0 0
    %1445 = vmatpush1.bf16.msra.mxu0 0
    %1446 = vmatprep.subr.bf16.mxu0 0
    %1447 = vmatpush1.bf16.msra.mxu0 0
    %1448 = vmatprep.subr.bf16.mxu0 0
    %1449 = vmatpush1.bf16.msra.mxu0 0
    %1450 = vmatprep.subr.bf16.mxu0 0
    %1451 = vmatpush1.bf16.msra.mxu0 0
    %1452 = vmatprep.subr.bf16.mxu0 0
    %1453 = vmatpush1.bf16.msra.mxu0 0
    %1454 = vmatprep.subr.bf16.mxu0 0
    %1455 = vmatpush1.bf16.msra.mxu0 0
    %1456 = vmatprep.mubr.bf16.mxu0 0
    %1457 = vmatmul.mubr.bf16.gmra.mrb[0].mxu0 %v1419
    %v1458 = vpop.f32.mrb[0].mxu0
    %v1459 = vadd.f32 %v1391, %v1458
    %v1460 = vpop.f32.mrb[0].mxu0
    %v1461 = vpop.f32.mrb[0].mxu0
    %v1462 = vadd.f32 %v1391, %v1461
    %v1463 = vpop.f32.mrb[0].mxu0
    %1464 = vmatprep.mubr.bf16.mxu0 0
    %1465 = vmatmul.mubr.bf16.gmra.mrb[0].mxu0 %v1422
    %v1466 = vpop.f32.mrb[0].mxu0
    %v1467 = vadd.f32 %v1391, %v1466
    %v1468 = vpop.f32.mrb[0].mxu0
    %v1469 = vpop.f32.mrb[0].mxu0
    %v1470 = vadd.f32 %v1391, %v1469
    %v1471 = vpop.f32.mrb[0].mxu0
    %1472 = vdwg.mxu0
    %v1473 = vadd.f32 %v1459, %v1288
    %v1474 = vadd.f32 %v1462, %v1289
    %v1475 = vadd.f32 %v1467, %v1290
    %v1476 = vadd.f32 %v1470, %v1291
    %v1477 = vsel %vm300, %v1473, 0.0
    %1478 = vadd.xlane.f32.xlu0 %v1477
    %v1479 = vpop.xlane.xlu0 %1478
    %v1480 = vsel %vm300, %v1474, 0.0
    %1481 = vadd.xlane.f32.xlu0 %v1480
    %v1482 = vpop.xlane.xlu0 %1481
    %v1483 = vsel %vm300, %v1475, 0.0
    %1484 = vadd.xlane.f32.xlu0 %v1483
    %v1485 = vpop.xlane.xlu0 %1484
    %v1486 = vsel %vm300, %v1476, 0.0
    %1487 = vadd.xlane.f32.xlu0 %v1486
    %v1488 = vpop.xlane.xlu0 %1487
    %v1489 = vmul.f32 %v1479, %v1205
    %v1490 = vmul.f32 %v1482, %v1205
    %v1491 = vmul.f32 %v1485, %v1205
    %v1492 = vmul.f32 %v1488, %v1205
    %v1493 = vsub.f32 %v1473, %v1489
    %v1494 = vsub.f32 %v1474, %v1490
    %v1495 = vsub.f32 %v1475, %v1491
    %v1496 = vsub.f32 %v1476, %v1492
    %v1497 = vmul.f32 %v1493, %v1493
    %v1498 = vmul.f32 %v1494, %v1494
    %v1499 = vmul.f32 %v1495, %v1495
    %v1500 = vmul.f32 %v1496, %v1496
    %v1501 = vsel %vm300, %v1497, 0.0
    %1502 = vadd.xlane.f32.xlu0 %v1501
    %v1503 = vpop.xlane.xlu0 %1502
    %v1504 = vsel %vm300, %v1498, 0.0
    %1505 = vadd.xlane.f32.xlu0 %v1504
    %v1506 = vpop.xlane.xlu0 %1505
    %v1507 = vsel %vm300, %v1499, 0.0
    %1508 = vadd.xlane.f32.xlu0 %v1507
    %v1509 = vpop.xlane.xlu0 %1508
    %v1510 = vsel %vm300, %v1500, 0.0
    %1511 = vadd.xlane.f32.xlu0 %v1510
    %v1512 = vpop.xlane.xlu0 %1511
    %v1513 = vmul.f32 %v1503, %v1205
    %v1514 = vmul.f32 %v1506, %v1205
    %v1515 = vmul.f32 %v1509, %v1205
    %v1516 = vmul.f32 %v1512, %v1205
    %v1517 = vadd.f32 %v1513, 1e-05
    %v1518 = vadd.f32 %v1514, 1e-05
    %v1519 = vadd.f32 %v1515, 1e-05
    %v1520 = vadd.f32 %v1516, 1e-05
    %v1521 = vrsqrt.pop %v1517
    %v1522 = vrsqrt.pop %v1518
    %v1523 = vrsqrt.pop %v1519
    %v1524 = vrsqrt.pop %v1520
    %v1525 = vmul.f32 %v1493, %v1521
    %v1526 = vmul.f32 %v1494, %v1522
    %v1527 = vmul.f32 %v1495, %v1523
    %v1528 = vmul.f32 %v1496, %v1524
    %v1529 = vld [vmem:[%s14] sm:$0x1]
    %v1531 = vlaneseq
    %v1532 = vshrl.u32 %v1531, 7
    %v1533 = vsub.s32 0, %v1532
    %v1534 = vrot.slane %v1529, %v1533
    %v1536 = vmul.f32 %v1525, %v1534
    %v1537 = vmul.f32 %v1526, %v1534
    %v1538 = vmul.f32 %v1527, %v1534
    %v1539 = vmul.f32 %v1528, %v1534
    %v1540 = vld [vmem:[%s15] sm:$0x1]
    %v1542 = vlaneseq
    %v1543 = vshrl.u32 %v1542, 7
    %v1544 = vsub.s32 0, %v1543
    %v1545 = vrot.slane %v1540, %v1544
    %v1547 = vadd.f32 %v1536, %v1545
    %v1548 = vadd.f32 %v1537, %v1545
    %v1549 = vadd.f32 %v1538, %v1545
    %v1550 = vadd.f32 %v1539, %v1545
    %v1551 = vmul.f32 %v1547, %v1271
    %v1552 = vmul.f32 %v1548, %v1276
    %v1553 = vmul.f32 %v1549, %v1281
    %v1554 = vmul.f32 %v1550, %v1286
    %s1555 = scalar_lea.vmem [#allocation10], 16
    %v1556 = vld [vmem:[%s1555] sm:$0xf]
    %v1557 = vld [vmem:[%s1555 + $0x4] sm:$0xf]
    %v1558 = vld [vmem:[%s1555 + $0x8] sm:$0xf]
    %v1559 = vld [vmem:[%s1555 + $0xc] sm:$0xf]
    %s1560 = scalar_lea.vmem [#allocation11], 1
    %v1561 = vld [vmem:[%s1560] sm:$0x1]
    %s1562 = scalar_lea.vmem [#allocation13], 16
    %v1563 = vld [vmem:[%s1562] sm:$0xf]
    %v1564 = vld [vmem:[%s1562 + $0x4] sm:$0xf]
    %v1565 = vld [vmem:[%s1562 + $0x8] sm:$0xf]
    %v1566 = vld [vmem:[%s1562 + $0xc] sm:$0xf]
    %s1567 = scalar_lea.vmem [#allocation14], 1
    %v1568 = vld [vmem:[%s1567] sm:$0x1]
    %v1569 = vpack.c.bf16 %v1552, %v1551
    %v1570 = vpack.c.bf16 %v1554, %v1553
    %v1572 = vlaneseq
    %v1573 = vshrl.u32 %v1572, 7
    %v1574 = vsub.s32 0, %v1573
    %v1575 = vrot.slane %v1561, %v1574
    %v1581 = vunpack.c.l.b16 %v1556
    %v1582 = vunpack.c.l.b16 %v1557
    %v1583 = vunpack.c.l.b16 %v1558
    %v1584 = vunpack.c.l.b16 %v1559
    %v1585 = vpack.c.b16 %v1582, %v1581
    %v1586 = vpack.c.b16 %v1584, %v1583
    %v1590 = vsel %vm300, %v1569, 0
    %v1593 = vsel %vm300, %v1570, 0
    %1595 = vmatprep.subr.bf16.mxu0 0
    %1596 = vmatpush1.bf16.msra.mxu0 %v1585
    %1597 = vmatprep.subr.bf16.mxu0 0
    %1598 = vmatpush1.bf16.msra.mxu0 %v1586
    %1599 = vmatprep.subr.bf16.mxu0 0
    %1600 = vmatpush1.bf16.msra.mxu0 0
    %1601 = vmatprep.subr.bf16.mxu0 0
    %1602 = vmatpush1.bf16.msra.mxu0 0
    %1603 = vmatprep.subr.bf16.mxu0 0
    %1604 = vmatpush1.bf16.msra.mxu0 0
    %1605 = vmatprep.subr.bf16.mxu0 0
    %1606 = vmatpush1.bf16.msra.mxu0 0
    %1607 = vmatprep.subr.bf16.mxu0 0
    %1608 = vmatpush1.bf16.msra.mxu0 0
    %1609 = vmatprep.subr.bf16.mxu0 0
    %1610 = vmatpush1.bf16.msra.mxu0 0
    %1611 = vmatprep.subr.bf16.mxu0 0
    %1612 = vmatpush1.bf16.msra.mxu0 0
    %1613 = vmatprep.subr.bf16.mxu0 0
    %1614 = vmatpush1.bf16.msra.mxu0 0
    %1615 = vmatprep.subr.bf16.mxu0 0
    %1616 = vmatpush1.bf16.msra.mxu0 0
    %1617 = vmatprep.subr.bf16.mxu0 0
    %1618 = vmatpush1.bf16.msra.mxu0 0
    %1619 = vmatprep.subr.bf16.mxu0 0
    %1620 = vmatpush1.bf16.msra.mxu0 0
    %1621 = vmatprep.subr.bf16.mxu0 0
    %1622 = vmatpush1.bf16.msra.mxu0 0
    %1623 = vmatprep.subr.bf16.mxu0 0
    %1624 = vmatpush1.bf16.msra.mxu0 0
    %1625 = vmatprep.subr.bf16.mxu0 0
    %1626 = vmatpush1.bf16.msra.mxu0 0
    %1627 = vmatprep.mubr.bf16.mxu0 0
    %1628 = vmatmul.mubr.bf16.gmra.mrb[0].mxu0 %v1590
    %v1629 = vpop.f32.mrb[0].mxu0
    %v1630 = vadd.f32 %v1575, %v1629
    %v1631 = vpop.f32.mrb[0].mxu0
    %v1632 = vpop.f32.mrb[0].mxu0
    %v1633 = vadd.f32 %v1575, %v1632
    %v1634 = vpop.f32.mrb[0].mxu0
    %1635 = vmatprep.mubr.bf16.mxu0 0
    %1636 = vmatmul.mubr.bf16.gmra.mrb[0].mxu0 %v1593
    %v1637 = vpop.f32.mrb[0].mxu0
    %v1638 = vadd.f32 %v1575, %v1637
    %v1639 = vpop.f32.mrb[0].mxu0
    %v1640 = vpop.f32.mrb[0].mxu0
    %v1641 = vadd.f32 %v1575, %v1640
    %v1642 = vpop.f32.mrb[0].mxu0
    %1643 = vdwg.mxu0
    %v1644 = vpack.c.bf16 %v1633, %v1630
    %1646 = vrot.lane.b32.xlu0 %v1644, 96
    %v1647 = vpop.permute.xlu0 %1646
    %v1649 = vsel %vm244, %v1644, 0
    %v1652 = vsel %vm244, %v1647, 0
    %1654 = vmatprep.subr.bf16.mxu0 0
    %1655 = vmatpush1.bf16.xpose.msra.mxu0 %v1652
    %1656 = vmatprep.subr.bf16.mxu0 0
    %1657 = vmatpush1.bf16.xpose.msra.mxu0 0
    %1658 = vmatprep.subr.bf16.mxu0 0
    %1659 = vmatpush1.bf16.xpose.msra.mxu0 0
    %1660 = vmatprep.subr.bf16.mxu0 0
    %1661 = vmatpush1.bf16.xpose.msra.mxu0 0
    %1662 = vmatprep.subr.bf16.mxu0 0
    %1663 = vmatpush1.bf16.xpose.msra.mxu0 0
    %1664 = vmatprep.subr.bf16.mxu0 0
    %1665 = vmatpush1.bf16.xpose.msra.mxu0 0
    %1666 = vmatprep.subr.bf16.mxu0 0
    %1667 = vmatpush1.bf16.xpose.msra.mxu0 0
    %1668 = vmatprep.subr.bf16.mxu0 0
    %1669 = vmatpush1.bf16.xpose.msra.mxu0 0
    %1670 = vmatprep.subr.bf16.mxu0 0
    %1671 = vmatpush1.bf16.xpose.msra.mxu0 0
    %1672 = vmatprep.subr.bf16.mxu0 0
    %1673 = vmatpush1.bf16.xpose.msra.mxu0 0
    %1674 = vmatprep.subr.bf16.mxu0 0
    %1675 = vmatpush1.bf16.xpose.msra.mxu0 0
    %1676 = vmatprep.subr.bf16.mxu0 0
    %1677 = vmatpush1.bf16.xpose.msra.mxu0 0
    %1678 = vmatprep.subr.bf16.mxu0 0
    %1679 = vmatpush1.bf16.xpose.msra.mxu0 0
    %1680 = vmatprep.subr.bf16.mxu0 0
    %1681 = vmatpush1.bf16.xpose.msra.mxu0 0
    %1682 = vmatprep.subr.bf16.mxu0 0
    %1683 = vmatpush1.bf16.xpose.msra.mxu0 0
    %1684 = vmatprep.subr.bf16.mxu0 0
    %1685 = vmatpush1.bf16.xpose.msra.mxu0 0
    %1686 = vmatprep.mubr.bf16.mxu0 0
    %1687 = vmatmul.mubr.bf16.gmra.mrb[0].mxu0 %v1649
    %v1688 = vpop.f32.mrb[0].mxu0
    %v1689 = vadd.f32 0.0, %v1688
    %v1690 = vpop.f32.mrb[0].mxu0
    %v1691 = vpop.f32.mrb[0].mxu0
    %v1692 = vadd.f32 0.0, %v1691
    %v1693 = vpop.f32.mrb[0].mxu0
    %1694 = vdwg.mxu0
    %v1695 = vsel %vm532, -1e+30, %v1689
    %v1696 = vsel %vm532, -1e+30, %v1692
    %v1697 = vsel %vm244, %v1695, -inf
    %1698 = vmax.xlane.f32.xlu0 %v1697
    %v1699 = vpop.xlane.xlu0 %1698
    %v1700 = vsel %vm244, %v1696, -inf
    %1701 = vmax.xlane.f32.xlu0 %v1700
    %v1702 = vpop.xlane.xlu0 %1701
    %v1703 = vsub.f32 %v1695, %v1699
    %v1704 = vsub.f32 %v1696, %v1702
    %v1705 = vmul.f32 %v1703, 1.442695
    %v1706 = vpow.pop %v1705
    %v1707 = vmul.f32 %v1704, 1.442695
    %v1708 = vpow.pop %v1707
    %v1709 = vsel %vm244, %v1706, 0.0
    %1710 = vadd.xlane.f32.xlu0 %v1709
    %v1711 = vpop.xlane.xlu0 %1710
    %v1712 = vsel %vm244, %v1708, 0.0
    %1713 = vadd.xlane.f32.xlu0 %v1712
    %v1714 = vpop.xlane.xlu0 %1713
    %v1715 = vrcp.pop %v1711
    %v1716 = vrcp.pop %v1714
    %v1717 = vmul.f32 %v1706, %v1715
    %v1718 = vmul.f32 %v1708, %v1716
    %v1719 = vpack.c.bf16 %v1718, %v1717
    %1720 = vrot.lane.b32.xlu0 %v1644, 64
    %v1721 = vpop.permute.xlu0 %1720
    %v1724 = vsel %vm244, %v1719, 0
    %1726 = vmatprep.subr.bf16.mxu0 0
    %1727 = vmatpush1.bf16.msra.mxu0 %v1721
    %1728 = vmatprep.subr.bf16.mxu0 0
    %1729 = vmatpush1.bf16.msra.mxu0 0
    %1730 = vmatprep.subr.bf16.mxu0 0
    %1731 = vmatpush1.bf16.msra.mxu0 0
    %1732 = vmatprep.subr.bf16.mxu0 0
    %1733 = vmatpush1.bf16.msra.mxu0 0
    %1734 = vmatprep.subr.bf16.mxu0 0
    %1735 = vmatpush1.bf16.msra.mxu0 0
    %1736 = vmatprep.subr.bf16.mxu0 0
    %1737 = vmatpush1.bf16.msra.mxu0 0
    %1738 = vmatprep.subr.bf16.mxu0 0
    %1739 = vmatpush1.bf16.msra.mxu0 0
    %1740 = vmatprep.subr.bf16.mxu0 0
    %1741 = vmatpush1.bf16.msra.mxu0 0
    %1742 = vmatprep.subr.bf16.mxu0 0
    %1743 = vmatpush1.bf16.msra.mxu0 0
    %1744 = vmatprep.subr.bf16.mxu0 0
    %1745 = vmatpush1.bf16.msra.mxu0 0
    %1746 = vmatprep.subr.bf16.mxu0 0
    %1747 = vmatpush1.bf16.msra.mxu0 0
    %1748 = vmatprep.subr.bf16.mxu0 0
    %1749 = vmatpush1.bf16.msra.mxu0 0
    %1750 = vmatprep.subr.bf16.mxu0 0
    %1751 = vmatpush1.bf16.msra.mxu0 0
    %1752 = vmatprep.subr.bf16.mxu0 0
    %1753 = vmatpush1.bf16.msra.mxu0 0
    %1754 = vmatprep.subr.bf16.mxu0 0
    %1755 = vmatpush1.bf16.msra.mxu0 0
    %1756 = vmatprep.subr.bf16.mxu0 0
    %1757 = vmatpush1.bf16.msra.mxu0 0
    %1758 = vmatprep.mubr.bf16.mxu0 0
    %1759 = vmatmul.mubr.bf16.gmra.mrb[0].mxu0 %v1724
    %v1760 = vpop.f32.mrb[0].mxu0
    %v1761 = vadd.f32 0.0, %v1760
    %v1762 = vpop.f32.mrb[0].mxu0
    %v1763 = vpop.f32.mrb[0].mxu0
    %v1764 = vadd.f32 0.0, %v1763
    %v1765 = vpop.f32.mrb[0].mxu0
    %1766 = vdwg.mxu0
    %v1767 = vpack.c.bf16 %v1764, %v1761
    %1768 = vrot.lane.b32.xlu0 %v1644, 112
    %v1769 = vpop.permute.xlu0 %1768
    %1770 = vrot.lane.b32.xlu0 %v1644, 80
    %v1771 = vpop.permute.xlu0 %1770
    %v1773 = vsel %vm244, %v1769, 0
    %v1776 = vsel %vm244, %v1771, 0
    %1778 = vmatprep.subr.bf16.mxu0 0
    %1779 = vmatpush1.bf16.xpose.msra.mxu0 %v1776
    %1780 = vmatprep.subr.bf16.mxu0 0
    %1781 = vmatpush1.bf16.xpose.msra.mxu0 0
    %1782 = vmatprep.subr.bf16.mxu0 0
    %1783 = vmatpush1.bf16.xpose.msra.mxu0 0
    %1784 = vmatprep.subr.bf16.mxu0 0
    %1785 = vmatpush1.bf16.xpose.msra.mxu0 0
    %1786 = vmatprep.subr.bf16.mxu0 0
    %1787 = vmatpush1.bf16.xpose.msra.mxu0 0
    %1788 = vmatprep.subr.bf16.mxu0 0
    %1789 = vmatpush1.bf16.xpose.msra.mxu0 0
    %1790 = vmatprep.subr.bf16.mxu0 0
    %1791 = vmatpush1.bf16.xpose.msra.mxu0 0
    %1792 = vmatprep.subr.bf16.mxu0 0
    %1793 = vmatpush1.bf16.xpose.msra.mxu0 0
    %1794 = vmatprep.subr.bf16.mxu0 0
    %1795 = vmatpush1.bf16.xpose.msra.mxu0 0
    %1796 = vmatprep.subr.bf16.mxu0 0
    %1797 = vmatpush1.bf16.xpose.msra.mxu0 0
    %1798 = vmatprep.subr.bf16.mxu0 0
    %1799 = vmatpush1.bf16.xpose.msra.mxu0 0
    %1800 = vmatprep.subr.bf16.mxu0 0
    %1801 = vmatpush1.bf16.xpose.msra.mxu0 0
    %1802 = vmatprep.subr.bf16.mxu0 0
    %1803 = vmatpush1.bf16.xpose.msra.mxu0 0
    %1804 = vmatprep.subr.bf16.mxu0 0
    %1805 = vmatpush1.bf16.xpose.msra.mxu0 0
    %1806 = vmatprep.subr.bf16.mxu0 0
    %1807 = vmatpush1.bf16.xpose.msra.mxu0 0
    %1808 = vmatprep.subr.bf16.mxu0 0
    %1809 = vmatpush1.bf16.xpose.msra.mxu0 0
    %1810 = vmatprep.mubr.bf16.mxu0 0
    %1811 = vmatmul.mubr.bf16.gmra.mrb[0].mxu0 %v1773
    %v1812 = vpop.f32.mrb[0].mxu0
    %v1813 = vadd.f32 0.0, %v1812
    %v1814 = vpop.f32.mrb[0].mxu0
    %v1815 = vpop.f32.mrb[0].mxu0
    %v1816 = vadd.f32 0.0, %v1815
    %v1817 = vpop.f32.mrb[0].mxu0
    %1818 = vdwg.mxu0
    %v1819 = vsel %vm532, -1e+30, %v1813
    %v1820 = vsel %vm532, -1e+30, %v1816
    %v1821 = vsel %vm244, %v1819, -inf
    %1822 = vmax.xlane.f32.xlu0 %v1821
    %v1823 = vpop.xlane.xlu0 %1822
    %v1824 = vsel %vm244, %v1820, -inf
    %1825 = vmax.xlane.f32.xlu0 %v1824
    %v1826 = vpop.xlane.xlu0 %1825
    %v1827 = vsub.f32 %v1819, %v1823
    %v1828 = vsub.f32 %v1820, %v1826
    %v1829 = vmul.f32 %v1827, 1.442695
    %v1830 = vpow.pop %v1829
    %v1831 = vmul.f32 %v1828, 1.442695
    %v1832 = vpow.pop %v1831
    %v1833 = vsel %vm244, %v1830, 0.0
    %1834 = vadd.xlane.f32.xlu0 %v1833
    %v1835 = vpop.xlane.xlu0 %1834
    %v1836 = vsel %vm244, %v1832, 0.0
    %1837 = vadd.xlane.f32.xlu0 %v1836
    %v1838 = vpop.xlane.xlu0 %1837
    %v1839 = vrcp.pop %v1835
    %v1840 = vrcp.pop %v1838
    %v1841 = vmul.f32 %v1830, %v1839
    %v1842 = vmul.f32 %v1832, %v1840
    %v1843 = vpack.c.bf16 %v1842, %v1841
    %1844 = vrot.lane.b32.xlu0 %v1644, 48
    %v1845 = vpop.permute.xlu0 %1844
    %v1848 = vsel %vm244, %v1843, 0
    %1850 = vmatprep.subr.bf16.mxu0 0
    %1851 = vmatpush1.bf16.msra.mxu0 %v1845
    %1852 = vmatprep.subr.bf16.mxu0 0
    %1853 = vmatpush1.bf16.msra.mxu0 0
    %1854 = vmatprep.subr.bf16.mxu0 0
    %1855 = vmatpush1.bf16.msra.mxu0 0
    %1856 = vmatprep.subr.bf16.mxu0 0
    %1857 = vmatpush1.bf16.msra.mxu0 0
    %1858 = vmatprep.subr.bf16.mxu0 0
    %1859 = vmatpush1.bf16.msra.mxu0 0
    %1860 = vmatprep.subr.bf16.mxu0 0
    %1861 = vmatpush1.bf16.msra.mxu0 0
    %1862 = vmatprep.subr.bf16.mxu0 0
    %1863 = vmatpush1.bf16.msra.mxu0 0
    %1864 = vmatprep.subr.bf16.mxu0 0
    %1865 = vmatpush1.bf16.msra.mxu0 0
    %1866 = vmatprep.subr.bf16.mxu0 0
    %1867 = vmatpush1.bf16.msra.mxu0 0
    %1868 = vmatprep.subr.bf16.mxu0 0
    %1869 = vmatpush1.bf16.msra.mxu0 0
    %1870 = vmatprep.subr.bf16.mxu0 0
    %1871 = vmatpush1.bf16.msra.mxu0 0
    %1872 = vmatprep.subr.bf16.mxu0 0
    %1873 = vmatpush1.bf16.msra.mxu0 0
    %1874 = vmatprep.subr.bf16.mxu0 0
    %1875 = vmatpush1.bf16.msra.mxu0 0
    %1876 = vmatprep.subr.bf16.mxu0 0
    %1877 = vmatpush1.bf16.msra.mxu0 0
    %1878 = vmatprep.subr.bf16.mxu0 0
    %1879 = vmatpush1.bf16.msra.mxu0 0
    %1880 = vmatprep.subr.bf16.mxu0 0
    %1881 = vmatpush1.bf16.msra.mxu0 0
    %1882 = vmatprep.mubr.bf16.mxu0 0
    %1883 = vmatmul.mubr.bf16.gmra.mrb[0].mxu0 %v1848
    %v1884 = vpop.f32.mrb[0].mxu0
    %v1885 = vadd.f32 0.0, %v1884
    %v1886 = vpop.f32.mrb[0].mxu0
    %v1887 = vpop.f32.mrb[0].mxu0
    %v1888 = vadd.f32 0.0, %v1887
    %v1889 = vpop.f32.mrb[0].mxu0
    %1890 = vdwg.mxu0
    %v1891 = vpack.c.bf16 %v1888, %v1885
    %v1894 = vunpack.c.l.b16 %v1565
    %v1895 = vunpack.c.l.b16 %v1566
    %v1896 = vpack.c.b16 %v1895, %v1894
    %v1899 = vsel %vm244, %v1891, 0
    %1901 = vmatprep.subr.bf16.mxu0 0
    %1902 = vmatpush1.bf16.msra.mxu0 %v1896
    %1903 = vmatprep.subr.bf16.mxu0 0
    %1904 = vmatpush1.bf16.msra.mxu0 0
    %1905 = vmatprep.subr.bf16.mxu0 0
    %1906 = vmatpush1.bf16.msra.mxu0 0
    %1907 = vmatprep.subr.bf16.mxu0 0
    %1908 = vmatpush1.bf16.msra.mxu0 0
    %1909 = vmatprep.subr.bf16.mxu0 0
    %1910 = vmatpush1.bf16.msra.mxu0 0
    %1911 = vmatprep.subr.bf16.mxu0 0
    %1912 = vmatpush1.bf16.msra.mxu0 0
    %1913 = vmatprep.subr.bf16.mxu0 0
    %1914 = vmatpush1.bf16.msra.mxu0 0
    %1915 = vmatprep.subr.bf16.mxu0 0
    %1916 = vmatpush1.bf16.msra.mxu0 0
    %1917 = vmatprep.subr.bf16.mxu0 0
    %1918 = vmatpush1.bf16.msra.mxu0 0
    %1919 = vmatprep.subr.bf16.mxu0 0
    %1920 = vmatpush1.bf16.msra.mxu0 0
    %1921 = vmatprep.subr.bf16.mxu0 0
    %1922 = vmatpush1.bf16.msra.mxu0 0
    %1923 = vmatprep.subr.bf16.mxu0 0
    %1924 = vmatpush1.bf16.msra.mxu0 0
    %1925 = vmatprep.subr.bf16.mxu0 0
    %1926 = vmatpush1.bf16.msra.mxu0 0
    %1927 = vmatprep.subr.bf16.mxu0 0
    %1928 = vmatpush1.bf16.msra.mxu0 0
    %1929 = vmatprep.subr.bf16.mxu0 0
    %1930 = vmatpush1.bf16.msra.mxu0 0
    %1931 = vmatprep.subr.bf16.mxu0 0
    %1932 = vmatpush1.bf16.msra.mxu0 0
    %1933 = vmatprep.mubr.bf16.mxu0 0
    %1934 = vmatmul.mubr.bf16.gmra.mrb[0].mxu0 %v1899
    %v1935 = vpop.f32.mrb[0].mxu0
    %v1936 = vadd.f32 0.0, %v1935
    %v1937 = vpop.f32.mrb[0].mxu0
    %v1938 = vpop.f32.mrb[0].mxu0
    %v1939 = vadd.f32 0.0, %v1938
    %v1940 = vpop.f32.mrb[0].mxu0
    %1941 = vdwg.mxu0
    %v1944 = vunpack.c.l.b16 %v1563
    %v1945 = vunpack.c.l.b16 %v1564
    %v1946 = vpack.c.b16 %v1945, %v1944
    %v1949 = vsel %vm244, %v1767, 0
    %1951 = vmatprep.subr.bf16.mxu0 0
    %1952 = vmatpush1.bf16.msra.mxu0 %v1946
    %1953 = vmatprep.subr.bf16.mxu0 0
    %1954 = vmatpush1.bf16.msra.mxu0 0
    %1955 = vmatprep.subr.bf16.mxu0 0
    %1956 = vmatpush1.bf16.msra.mxu0 0
    %1957 = vmatprep.subr.bf16.mxu0 0
    %1958 = vmatpush1.bf16.msra.mxu0 0
    %1959 = vmatprep.subr.bf16.mxu0 0
    %1960 = vmatpush1.bf16.msra.mxu0 0
    %1961 = vmatprep.subr.bf16.mxu0 0
    %1962 = vmatpush1.bf16.msra.mxu0 0
    %1963 = vmatprep.subr.bf16.mxu0 0
    %1964 = vmatpush1.bf16.msra.mxu0 0
    %1965 = vmatprep.subr.bf16.mxu0 0
    %1966 = vmatpush1.bf16.msra.mxu0 0
    %1967 = vmatprep.subr.bf16.mxu0 0
    %1968 = vmatpush1.bf16.msra.mxu0 0
    %1969 = vmatprep.subr.bf16.mxu0 0
    %1970 = vmatpush1.bf16.msra.mxu0 0
    %1971 = vmatprep.subr.bf16.mxu0 0
    %1972 = vmatpush1.bf16.msra.mxu0 0
    %1973 = vmatprep.subr.bf16.mxu0 0
    %1974 = vmatpush1.bf16.msra.mxu0 0
    %1975 = vmatprep.subr.bf16.mxu0 0
    %1976 = vmatpush1.bf16.msra.mxu0 0
    %1977 = vmatprep.subr.bf16.mxu0 0
    %1978 = vmatpush1.bf16.msra.mxu0 0
    %1979 = vmatprep.subr.bf16.mxu0 0
    %1980 = vmatpush1.bf16.msra.mxu0 0
    %1981 = vmatprep.subr.bf16.mxu0 0
    %1982 = vmatpush1.bf16.msra.mxu0 0
    %1983 = vmatprep.mubr.bf16.mxu0 0
    %1984 = vmatmul.mubr.bf16.gmra.mrb[0].mxu0 %v1949
    %v1985 = vpop.f32.mrb[0].mxu0
    %v1986 = vadd.f32 %v1936, %v1985
    %v1987 = vpop.f32.mrb[0].mxu0
    %v1988 = vpop.f32.mrb[0].mxu0
    %v1989 = vadd.f32 %v1939, %v1988
    %v1990 = vpop.f32.mrb[0].mxu0
    %1991 = vdwg.mxu0
    %1992 = vst.msk [vmem:[#allocation2] sm:$0xff] %vm300, %v1986
    %1993 = vst.msk [vmem:[#allocation2 + $0x8] sm:$0xff] %vm300, %v1989
    %v1994 = vpack.c.bf16 %v1641, %v1638
    %1996 = vrot.lane.b32.xlu0 %v1994, 96
    %v1997 = vpop.permute.xlu0 %1996
    %v1999 = vsel %vm244, %v1994, 0
    %v2002 = vsel %vm244, %v1997, 0
    %2004 = vmatprep.subr.bf16.mxu0 0
    %2005 = vmatpush1.bf16.xpose.msra.mxu0 %v2002
    %2006 = vmatprep.subr.bf16.mxu0 0
    %2007 = vmatpush1.bf16.xpose.msra.mxu0 0
    %2008 = vmatprep.subr.bf16.mxu0 0
    %2009 = vmatpush1.bf16.xpose.msra.mxu0 0
    %2010 = vmatprep.subr.bf16.mxu0 0
    %2011 = vmatpush1.bf16.xpose.msra.mxu0 0
    %2012 = vmatprep.subr.bf16.mxu0 0
    %2013 = vmatpush1.bf16.xpose.msra.mxu0 0
    %2014 = vmatprep.subr.bf16.mxu0 0
    %2015 = vmatpush1.bf16.xpose.msra.mxu0 0
    %2016 = vmatprep.subr.bf16.mxu0 0
    %2017 = vmatpush1.bf16.xpose.msra.mxu0 0
    %2018 = vmatprep.subr.bf16.mxu0 0
    %2019 = vmatpush1.bf16.xpose.msra.mxu0 0
    %2020 = vmatprep.subr.bf16.mxu0 0
    %2021 = vmatpush1.bf16.xpose.msra.mxu0 0
    %2022 = vmatprep.subr.bf16.mxu0 0
    %2023 = vmatpush1.bf16.xpose.msra.mxu0 0
    %2024 = vmatprep.subr.bf16.mxu0 0
    %2025 = vmatpush1.bf16.xpose.msra.mxu0 0
    %2026 = vmatprep.subr.bf16.mxu0 0
    %2027 = vmatpush1.bf16.xpose.msra.mxu0 0
    %2028 = vmatprep.subr.bf16.mxu0 0
    %2029 = vmatpush1.bf16.xpose.msra.mxu0 0
    %2030 = vmatprep.subr.bf16.mxu0 0
    %2031 = vmatpush1.bf16.xpose.msra.mxu0 0
    %2032 = vmatprep.subr.bf16.mxu0 0
    %2033 = vmatpush1.bf16.xpose.msra.mxu0 0
    %2034 = vmatprep.subr.bf16.mxu0 0
    %2035 = vmatpush1.bf16.xpose.msra.mxu0 0
    %2036 = vmatprep.mubr.bf16.mxu0 0
    %2037 = vmatmul.mubr.bf16.gmra.mrb[0].mxu0 %v1999
    %v2038 = vpop.f32.mrb[0].mxu0
    %v2039 = vadd.f32 0.0, %v2038
    %v2040 = vpop.f32.mrb[0].mxu0
    %v2041 = vpop.f32.mrb[0].mxu0
    %v2042 = vadd.f32 0.0, %v2041
    %v2043 = vpop.f32.mrb[0].mxu0
    %2044 = vdwg.mxu0
    %v2045 = vsel %vm887, -1e+30, %v2039
    %v2046 = vsel %vm887, -1e+30, %v2042
    %v2047 = vsel %vm244, %v2045, -inf
    %2048 = vmax.xlane.f32.xlu0 %v2047
    %v2049 = vpop.xlane.xlu0 %2048
    %v2050 = vsel %vm244, %v2046, -inf
    %2051 = vmax.xlane.f32.xlu0 %v2050
    %v2052 = vpop.xlane.xlu0 %2051
    %v2053 = vsub.f32 %v2045, %v2049
    %v2054 = vsub.f32 %v2046, %v2052
    %v2055 = vmul.f32 %v2053, 1.442695
    %v2056 = vpow.pop %v2055
    %v2057 = vmul.f32 %v2054, 1.442695
    %v2058 = vpow.pop %v2057
    %v2059 = vsel %vm244, %v2056, 0.0
    %2060 = vadd.xlane.f32.xlu0 %v2059
    %v2061 = vpop.xlane.xlu0 %2060
    %v2062 = vsel %vm244, %v2058, 0.0
    %2063 = vadd.xlane.f32.xlu0 %v2062
    %v2064 = vpop.xlane.xlu0 %2063
    %v2065 = vrcp.pop %v2061
    %v2066 = vrcp.pop %v2064
    %v2067 = vmul.f32 %v2056, %v2065
    %v2068 = vmul.f32 %v2058, %v2066
    %v2069 = vpack.c.bf16 %v2068, %v2067
    %2070 = vrot.lane.b32.xlu0 %v1994, 64
    %v2071 = vpop.permute.xlu0 %2070
    %v2074 = vsel %vm244, %v2069, 0
    %2076 = vmatprep.subr.bf16.mxu0 0
    %2077 = vmatpush1.bf16.msra.mxu0 %v2071
    %2078 = vmatprep.subr.bf16.mxu0 0
    %2079 = vmatpush1.bf16.msra.mxu0 0
    %2080 = vmatprep.subr.bf16.mxu0 0
    %2081 = vmatpush1.bf16.msra.mxu0 0
    %2082 = vmatprep.subr.bf16.mxu0 0
    %2083 = vmatpush1.bf16.msra.mxu0 0
    %2084 = vmatprep.subr.bf16.mxu0 0
    %2085 = vmatpush1.bf16.msra.mxu0 0
    %2086 = vmatprep.subr.bf16.mxu0 0
    %2087 = vmatpush1.bf16.msra.mxu0 0
    %2088 = vmatprep.subr.bf16.mxu0 0
    %2089 = vmatpush1.bf16.msra.mxu0 0
    %2090 = vmatprep.subr.bf16.mxu0 0
    %2091 = vmatpush1.bf16.msra.mxu0 0
    %2092 = vmatprep.subr.bf16.mxu0 0
    %2093 = vmatpush1.bf16.msra.mxu0 0
    %2094 = vmatprep.subr.bf16.mxu0 0
    %2095 = vmatpush1.bf16.msra.mxu0 0
    %2096 = vmatprep.subr.bf16.mxu0 0
    %2097 = vmatpush1.bf16.msra.mxu0 0
    %2098 = vmatprep.subr.bf16.mxu0 0
    %2099 = vmatpush1.bf16.msra.mxu0 0
    %2100 = vmatprep.subr.bf16.mxu0 0
    %2101 = vmatpush1.bf16.msra.mxu0 0
    %2102 = vmatprep.subr.bf16.mxu0 0
    %2103 = vmatpush1.bf16.msra.mxu0 0
    %2104 = vmatprep.subr.bf16.mxu0 0
    %2105 = vmatpush1.bf16.msra.mxu0 0
    %2106 = vmatprep.subr.bf16.mxu0 0
    %2107 = vmatpush1.bf16.msra.mxu0 0
    %2108 = vmatprep.mubr.bf16.mxu0 0
    %2109 = vmatmul.mubr.bf16.gmra.mrb[0].mxu0 %v2074
    %v2110 = vpop.f32.mrb[0].mxu0
    %v2111 = vadd.f32 0.0, %v2110
    %v2112 = vpop.f32.mrb[0].mxu0
    %v2113 = vpop.f32.mrb[0].mxu0
    %v2114 = vadd.f32 0.0, %v2113
    %v2115 = vpop.f32.mrb[0].mxu0
    %2116 = vdwg.mxu0
    %v2117 = vpack.c.bf16 %v2114, %v2111
    %2118 = vrot.lane.b32.xlu0 %v1994, 112
    %v2119 = vpop.permute.xlu0 %2118
    %2120 = vrot.lane.b32.xlu0 %v1994, 80
    %v2121 = vpop.permute.xlu0 %2120
    %v2123 = vsel %vm244, %v2119, 0
    %v2126 = vsel %vm244, %v2121, 0
    %2128 = vmatprep.subr.bf16.mxu0 0
    %2129 = vmatpush1.bf16.xpose.msra.mxu0 %v2126
    %2130 = vmatprep.subr.bf16.mxu0 0
    %2131 = vmatpush1.bf16.xpose.msra.mxu0 0
    %2132 = vmatprep.subr.bf16.mxu0 0
    %2133 = vmatpush1.bf16.xpose.msra.mxu0 0
    %2134 = vmatprep.subr.bf16.mxu0 0
    %2135 = vmatpush1.bf16.xpose.msra.mxu0 0
    %2136 = vmatprep.subr.bf16.mxu0 0
    %2137 = vmatpush1.bf16.xpose.msra.mxu0 0
    %2138 = vmatprep.subr.bf16.mxu0 0
    %2139 = vmatpush1.bf16.xpose.msra.mxu0 0
    %2140 = vmatprep.subr.bf16.mxu0 0
    %2141 = vmatpush1.bf16.xpose.msra.mxu0 0
    %2142 = vmatprep.subr.bf16.mxu0 0
    %2143 = vmatpush1.bf16.xpose.msra.mxu0 0
    %2144 = vmatprep.subr.bf16.mxu0 0
    %2145 = vmatpush1.bf16.xpose.msra.mxu0 0
    %2146 = vmatprep.subr.bf16.mxu0 0
    %2147 = vmatpush1.bf16.xpose.msra.mxu0 0
    %2148 = vmatprep.subr.bf16.mxu0 0
    %2149 = vmatpush1.bf16.xpose.msra.mxu0 0
    %2150 = vmatprep.subr.bf16.mxu0 0
    %2151 = vmatpush1.bf16.xpose.msra.mxu0 0
    %2152 = vmatprep.subr.bf16.mxu0 0
    %2153 = vmatpush1.bf16.xpose.msra.mxu0 0
    %2154 = vmatprep.subr.bf16.mxu0 0
    %2155 = vmatpush1.bf16.xpose.msra.mxu0 0
    %2156 = vmatprep.subr.bf16.mxu0 0
    %2157 = vmatpush1.bf16.xpose.msra.mxu0 0
    %2158 = vmatprep.subr.bf16.mxu0 0
    %2159 = vmatpush1.bf16.xpose.msra.mxu0 0
    %2160 = vmatprep.mubr.bf16.mxu0 0
    %2161 = vmatmul.mubr.bf16.gmra.mrb[0].mxu0 %v2123
    %v2162 = vpop.f32.mrb[0].mxu0
    %v2163 = vadd.f32 0.0, %v2162
    %v2164 = vpop.f32.mrb[0].mxu0
    %v2165 = vpop.f32.mrb[0].mxu0
    %v2166 = vadd.f32 0.0, %v2165
    %v2167 = vpop.f32.mrb[0].mxu0
    %2168 = vdwg.mxu0
    %v2169 = vsel %vm887, -1e+30, %v2163
    %v2170 = vsel %vm887, -1e+30, %v2166
    %v2171 = vsel %vm244, %v2169, -inf
    %2172 = vmax.xlane.f32.xlu0 %v2171
    %v2173 = vpop.xlane.xlu0 %2172
    %v2174 = vsel %vm244, %v2170, -inf
    %2175 = vmax.xlane.f32.xlu0 %v2174
    %v2176 = vpop.xlane.xlu0 %2175
    %v2177 = vsub.f32 %v2169, %v2173
    %v2178 = vsub.f32 %v2170, %v2176
    %v2179 = vmul.f32 %v2177, 1.442695
    %v2180 = vpow.pop %v2179
    %v2181 = vmul.f32 %v2178, 1.442695
    %v2182 = vpow.pop %v2181
    %v2183 = vsel %vm244, %v2180, 0.0
    %2184 = vadd.xlane.f32.xlu0 %v2183
    %v2185 = vpop.xlane.xlu0 %2184
    %v2186 = vsel %vm244, %v2182, 0.0
    %2187 = vadd.xlane.f32.xlu0 %v2186
    %v2188 = vpop.xlane.xlu0 %2187
    %v2189 = vrcp.pop %v2185
    %v2190 = vrcp.pop %v2188
    %v2191 = vmul.f32 %v2180, %v2189
    %v2192 = vmul.f32 %v2182, %v2190
    %v2193 = vpack.c.bf16 %v2192, %v2191
    %2194 = vrot.lane.b32.xlu0 %v1994, 48
    %v2195 = vpop.permute.xlu0 %2194
    %v2198 = vsel %vm244, %v2193, 0
    %2200 = vmatprep.subr.bf16.mxu0 0
    %2201 = vmatpush1.bf16.msra.mxu0 %v2195
    %2202 = vmatprep.subr.bf16.mxu0 0
    %2203 = vmatpush1.bf16.msra.mxu0 0
    %2204 = vmatprep.subr.bf16.mxu0 0
    %2205 = vmatpush1.bf16.msra.mxu0 0
    %2206 = vmatprep.subr.bf16.mxu0 0
    %2207 = vmatpush1.bf16.msra.mxu0 0
    %2208 = vmatprep.subr.bf16.mxu0 0
    %2209 = vmatpush1.bf16.msra.mxu0 0
    %2210 = vmatprep.subr.bf16.mxu0 0
    %2211 = vmatpush1.bf16.msra.mxu0 0
    %2212 = vmatprep.subr.bf16.mxu0 0
    %2213 = vmatpush1.bf16.msra.mxu0 0
    %2214 = vmatprep.subr.bf16.mxu0 0
    %2215 = vmatpush1.bf16.msra.mxu0 0
    %2216 = vmatprep.subr.bf16.mxu0 0
    %2217 = vmatpush1.bf16.msra.mxu0 0
    %2218 = vmatprep.subr.bf16.mxu0 0
    %2219 = vmatpush1.bf16.msra.mxu0 0
    %2220 = vmatprep.subr.bf16.mxu0 0
    %2221 = vmatpush1.bf16.msra.mxu0 0
    %2222 = vmatprep.subr.bf16.mxu0 0
    %2223 = vmatpush1.bf16.msra.mxu0 0
    %2224 = vmatprep.subr.bf16.mxu0 0
    %2225 = vmatpush1.bf16.msra.mxu0 0
    %2226 = vmatprep.subr.bf16.mxu0 0
    %2227 = vmatpush1.bf16.msra.mxu0 0
    %2228 = vmatprep.subr.bf16.mxu0 0
    %2229 = vmatpush1.bf16.msra.mxu0 0
    %2230 = vmatprep.subr.bf16.mxu0 0
    %2231 = vmatpush1.bf16.msra.mxu0 0
    %2232 = vmatprep.mubr.bf16.mxu0 0
    %2233 = vmatmul.mubr.bf16.gmra.mrb[0].mxu0 %v2198
    %v2234 = vpop.f32.mrb[0].mxu0
    %v2235 = vadd.f32 0.0, %v2234
    %v2236 = vpop.f32.mrb[0].mxu0
    %v2237 = vpop.f32.mrb[0].mxu0
    %v2238 = vadd.f32 0.0, %v2237
    %v2239 = vpop.f32.mrb[0].mxu0
    %2240 = vdwg.mxu0
    %v2241 = vpack.c.bf16 %v2238, %v2235
    %v2243 = vsel %vm244, %v2241, 0
    %2245 = vmatprep.subr.bf16.mxu0 0
    %2246 = vmatpush1.bf16.msra.mxu0 %v1896
    %2247 = vmatprep.subr.bf16.mxu0 0
    %2248 = vmatpush1.bf16.msra.mxu0 0
    %2249 = vmatprep.subr.bf16.mxu0 0
    %2250 = vmatpush1.bf16.msra.mxu0 0
    %2251 = vmatprep.subr.bf16.mxu0 0
    %2252 = vmatpush1.bf16.msra.mxu0 0
    %2253 = vmatprep.subr.bf16.mxu0 0
    %2254 = vmatpush1.bf16.msra.mxu0 0
    %2255 = vmatprep.subr.bf16.mxu0 0
    %2256 = vmatpush1.bf16.msra.mxu0 0
    %2257 = vmatprep.subr.bf16.mxu0 0
    %2258 = vmatpush1.bf16.msra.mxu0 0
    %2259 = vmatprep.subr.bf16.mxu0 0
    %2260 = vmatpush1.bf16.msra.mxu0 0
    %2261 = vmatprep.subr.bf16.mxu0 0
    %2262 = vmatpush1.bf16.msra.mxu0 0
    %2263 = vmatprep.subr.bf16.mxu0 0
    %2264 = vmatpush1.bf16.msra.mxu0 0
    %2265 = vmatprep.subr.bf16.mxu0 0
    %2266 = vmatpush1.bf16.msra.mxu0 0
    %2267 = vmatprep.subr.bf16.mxu0 0
    %2268 = vmatpush1.bf16.msra.mxu0 0
    %2269 = vmatprep.subr.bf16.mxu0 0
    %2270 = vmatpush1.bf16.msra.mxu0 0
    %2271 = vmatprep.subr.bf16.mxu0 0
    %2272 = vmatpush1.bf16.msra.mxu0 0
    %2273 = vmatprep.subr.bf16.mxu0 0
    %2274 = vmatpush1.bf16.msra.mxu0 0
    %2275 = vmatprep.subr.bf16.mxu0 0
    %2276 = vmatpush1.bf16.msra.mxu0 0
    %2277 = vmatprep.mubr.bf16.mxu0 0
    %2278 = vmatmul.mubr.bf16.gmra.mrb[0].mxu0 %v2243
    %v2279 = vpop.f32.mrb[0].mxu0
    %v2280 = vadd.f32 0.0, %v2279
    %v2281 = vpop.f32.mrb[0].mxu0
    %v2282 = vpop.f32.mrb[0].mxu0
    %v2283 = vadd.f32 0.0, %v2282
    %v2284 = vpop.f32.mrb[0].mxu0
    %2285 = vdwg.mxu0
    %v2287 = vsel %vm244, %v2117, 0
    %2289 = vmatprep.subr.bf16.mxu0 0
    %2290 = vmatpush1.bf16.msra.mxu0 %v1946
    %2291 = vmatprep.subr.bf16.mxu0 0
    %2292 = vmatpush1.bf16.msra.mxu0 0
    %2293 = vmatprep.subr.bf16.mxu0 0
    %2294 = vmatpush1.bf16.msra.mxu0 0
    %2295 = vmatprep.subr.bf16.mxu0 0
    %2296 = vmatpush1.bf16.msra.mxu0 0
    %2297 = vmatprep.subr.bf16.mxu0 0
    %2298 = vmatpush1.bf16.msra.mxu0 0
    %2299 = vmatprep.subr.bf16.mxu0 0
    %2300 = vmatpush1.bf16.msra.mxu0 0
    %2301 = vmatprep.subr.bf16.mxu0 0
    %2302 = vmatpush1.bf16.msra.mxu0 0
    %2303 = vmatprep.subr.bf16.mxu0 0
    %2304 = vmatpush1.bf16.msra.mxu0 0
    %2305 = vmatprep.subr.bf16.mxu0 0
    %2306 = vmatpush1.bf16.msra.mxu0 0
    %2307 = vmatprep.subr.bf16.mxu0 0
    %2308 = vmatpush1.bf16.msra.mxu0 0
    %2309 = vmatprep.subr.bf16.mxu0 0
    %2310 = vmatpush1.bf16.msra.mxu0 0
    %2311 = vmatprep.subr.bf16.mxu0 0
    %2312 = vmatpush1.bf16.msra.mxu0 0
    %2313 = vmatprep.subr.bf16.mxu0 0
    %2314 = vmatpush1.bf16.msra.mxu0 0
    %2315 = vmatprep.subr.bf16.mxu0 0
    %2316 = vmatpush1.bf16.msra.mxu0 0
    %2317 = vmatprep.subr.bf16.mxu0 0
    %2318 = vmatpush1.bf16.msra.mxu0 0
    %2319 = vmatprep.subr.bf16.mxu0 0
    %2320 = vmatpush1.bf16.msra.mxu0 0
    %2321 = vmatprep.mubr.bf16.mxu0 0
    %2322 = vmatmul.mubr.bf16.gmra.mrb[0].mxu0 %v2287
    %v2323 = vpop.f32.mrb[0].mxu0
    %v2324 = vadd.f32 %v2280, %v2323
    %v2325 = vpop.f32.mrb[0].mxu0
    %v2326 = vpop.f32.mrb[0].mxu0
    %v2327 = vadd.f32 %v2283, %v2326
    %v2328 = vpop.f32.mrb[0].mxu0
    %2329 = vdwg.mxu0
    %2330 = vst.msk [vmem:[#allocation2 + $0x10] sm:$0xff] %vm300, %v2324
    %2331 = vst.msk [vmem:[#allocation2 + $0x18] sm:$0xff] %vm300, %v2327
    %v2332 = vld [vmem:[#allocation2] sm:$0xff]
    %v2333 = vld [vmem:[#allocation2 + $0x8] sm:$0xff]
    %v2334 = vld [vmem:[#allocation2 + $0x10] sm:$0xff]
    %v2335 = vld [vmem:[#allocation2 + $0x18] sm:$0xff]
    %v2337 = vlaneseq
    %v2338 = vshrl.u32 %v2337, 7
    %v2339 = vsub.s32 0, %v2338
    %v2340 = vrot.slane %v1568, %v2339
    %v2342 = vadd.f32 %v2332, %v2340
    %v2343 = vadd.f32 %v2333, %v2340
    %v2344 = vadd.f32 %v2334, %v2340
    %v2345 = vadd.f32 %v2335, %v2340
    %v2346 = vadd.f32 %v2342, %v1551
    %v2347 = vadd.f32 %v2343, %v1552
    %v2348 = vadd.f32 %v2344, %v1553
    %v2349 = vadd.f32 %v2345, %v1554
    %v2350 = vsel %vm300, %v2346, 0.0
    %2351 = vadd.xlane.f32.xlu0 %v2350
    %v2352 = vpop.xlane.xlu0 %2351
    %v2353 = vsel %vm300, %v2347, 0.0
    %2354 = vadd.xlane.f32.xlu0 %v2353
    %v2355 = vpop.xlane.xlu0 %2354
    %v2356 = vsel %vm300, %v2348, 0.0
    %2357 = vadd.xlane.f32.xlu0 %v2356
    %v2358 = vpop.xlane.xlu0 %2357
    %v2359 = vsel %vm300, %v2349, 0.0
    %2360 = vadd.xlane.f32.xlu0 %v2359
    %v2361 = vpop.xlane.xlu0 %2360
    %v2362 = vmul.f32 %v2352, %v1205
    %v2363 = vmul.f32 %v2355, %v1205
    %v2364 = vmul.f32 %v2358, %v1205
    %v2365 = vmul.f32 %v2361, %v1205
    %v2366 = vsub.f32 %v2346, %v2362
    %v2367 = vsub.f32 %v2347, %v2363
    %v2368 = vsub.f32 %v2348, %v2364
    %v2369 = vsub.f32 %v2349, %v2365
    %v2370 = vmul.f32 %v2366, %v2366
    %v2371 = vmul.f32 %v2367, %v2367
    %v2372 = vmul.f32 %v2368, %v2368
    %v2373 = vmul.f32 %v2369, %v2369
    %v2374 = vsel %vm300, %v2370, 0.0
    %2375 = vadd.xlane.f32.xlu0 %v2374
    %v2376 = vpop.xlane.xlu0 %2375
    %v2377 = vsel %vm300, %v2371, 0.0
    %2378 = vadd.xlane.f32.xlu0 %v2377
    %v2379 = vpop.xlane.xlu0 %2378
    %v2380 = vsel %vm300, %v2372, 0.0
    %2381 = vadd.xlane.f32.xlu0 %v2380
    %v2382 = vpop.xlane.xlu0 %2381
    %v2383 = vsel %vm300, %v2373, 0.0
    %2384 = vadd.xlane.f32.xlu0 %v2383
    %v2385 = vpop.xlane.xlu0 %2384
    %v2386 = vmul.f32 %v2376, %v1205
    %v2387 = vmul.f32 %v2379, %v1205
    %v2388 = vmul.f32 %v2382, %v1205
    %v2389 = vmul.f32 %v2385, %v1205
    %v2390 = vadd.f32 %v2386, 1e-05
    %v2391 = vadd.f32 %v2387, 1e-05
    %v2392 = vadd.f32 %v2388, 1e-05
    %v2393 = vadd.f32 %v2389, 1e-05
    %v2394 = vrsqrt.pop %v2390
    %v2395 = vrsqrt.pop %v2391
    %v2396 = vrsqrt.pop %v2392
    %v2397 = vrsqrt.pop %v2393
    %v2398 = vmul.f32 %v2366, %v2394
    %v2399 = vmul.f32 %v2367, %v2395
    %v2400 = vmul.f32 %v2368, %v2396
    %v2401 = vmul.f32 %v2369, %v2397
    %s2402 = scalar_lea.vmem %s8, 1
    %v2403 = vld [vmem:[%s2402] sm:$0x1]
    %v2405 = vlaneseq
    %v2406 = vshrl.u32 %v2405, 7
    %v2407 = vsub.s32 0, %v2406
    %v2408 = vrot.slane %v2403, %v2407
    %v2410 = vmul.f32 %v2398, %v2408
    %v2411 = vmul.f32 %v2399, %v2408
    %v2412 = vmul.f32 %v2400, %v2408
    %v2413 = vmul.f32 %v2401, %v2408
    %s2414 = scalar_lea.vmem %s9, 1
    %v2415 = vld [vmem:[%s2414] sm:$0x1]
    %v2417 = vlaneseq
    %v2418 = vshrl.u32 %v2417, 7
    %v2419 = vsub.s32 0, %v2418
    %v2420 = vrot.slane %v2415, %v2419
    %v2422 = vadd.f32 %v2410, %v2420
    %v2423 = vadd.f32 %v2411, %v2420
    %v2424 = vadd.f32 %v2412, %v2420
    %v2425 = vadd.f32 %v2413, %v2420
    %v2426 = vmul.f32 %v2422, %v1271
    %v2427 = vmul.f32 %v2423, %v1276
    %v2428 = vmul.f32 %v2424, %v1281
    %v2429 = vmul.f32 %v2425, %v1286
    %v2430 = vpack.c.bf16 %v2427, %v2426
    %v2431 = vpack.c.bf16 %v2429, %v2428
    %s2432 = scalar_lea.vmem [#allocation16], 16
    %v2433 = vld [vmem:[%s2432] sm:$0xf]
    %v2434 = vld [vmem:[%s2432 + $0x4] sm:$0xf]
    %v2435 = vld [vmem:[%s2432 + $0x8] sm:$0xf]
    %v2436 = vld [vmem:[%s2432 + $0xc] sm:$0xf]
    %s2437 = scalar_lea.vmem [#allocation17], 1
    %v2438 = vld [vmem:[%s2437] sm:$0x1]
    %v2440 = vlaneseq
    %v2441 = vshrl.u32 %v2440, 7
    %v2442 = vsub.s32 0, %v2441
    %v2443 = vrot.slane %v2438, %v2442
    %v2449 = vunpack.c.l.b16 %v2433
    %v2450 = vunpack.c.l.b16 %v2434
    %v2451 = vunpack.c.l.b16 %v2435
    %v2452 = vunpack.c.l.b16 %v2436
    %v2453 = vpack.c.b16 %v2450, %v2449
    %v2454 = vpack.c.b16 %v2452, %v2451
    %v2458 = vsel %vm300, %v2430, 0
    %v2461 = vsel %vm300, %v2431, 0
    %2463 = vmatprep.subr.bf16.mxu0 0
    %2464 = vmatpush1.bf16.msra.mxu0 %v2453
    %2465 = vmatprep.subr.bf16.mxu0 0
    %2466 = vmatpush1.bf16.msra.mxu0 %v2454
    %2467 = vmatprep.subr.bf16.mxu0 0
    %2468 = vmatpush1.bf16.msra.mxu0 0
    %2469 = vmatprep.subr.bf16.mxu0 0
    %2470 = vmatpush1.bf16.msra.mxu0 0
    %2471 = vmatprep.subr.bf16.mxu0 0
    %2472 = vmatpush1.bf16.msra.mxu0 0
    %2473 = vmatprep.subr.bf16.mxu0 0
    %2474 = vmatpush1.bf16.msra.mxu0 0
    %2475 = vmatprep.subr.bf16.mxu0 0
    %2476 = vmatpush1.bf16.msra.mxu0 0
    %2477 = vmatprep.subr.bf16.mxu0 0
    %2478 = vmatpush1.bf16.msra.mxu0 0
    %2479 = vmatprep.subr.bf16.mxu0 0
    %2480 = vmatpush1.bf16.msra.mxu0 0
    %2481 = vmatprep.subr.bf16.mxu0 0
    %2482 = vmatpush1.bf16.msra.mxu0 0
    %2483 = vmatprep.subr.bf16.mxu0 0
    %2484 = vmatpush1.bf16.msra.mxu0 0
    %2485 = vmatprep.subr.bf16.mxu0 0
    %2486 = vmatpush1.bf16.msra.mxu0 0
    %2487 = vmatprep.subr.bf16.mxu0 0
    %2488 = vmatpush1.bf16.msra.mxu0 0
    %2489 = vmatprep.subr.bf16.mxu0 0
    %2490 = vmatpush1.bf16.msra.mxu0 0
    %2491 = vmatprep.subr.bf16.mxu0 0
    %2492 = vmatpush1.bf16.msra.mxu0 0
    %2493 = vmatprep.subr.bf16.mxu0 0
    %2494 = vmatpush1.bf16.msra.mxu0 0
    %2495 = vmatprep.mubr.bf16.mxu0 0
    %2496 = vmatmul.mubr.bf16.gmra.mrb[0].mxu0 %v2458
    %v2497 = vpop.f32.mrb[0].mxu0
    %v2498 = vadd.f32 %v2443, %v2497
    %v2499 = vpop.f32.mrb[0].mxu0
    %v2500 = vpop.f32.mrb[0].mxu0
    %v2501 = vadd.f32 %v2443, %v2500
    %v2502 = vpop.f32.mrb[0].mxu0
    %2503 = vmatprep.mubr.bf16.mxu0 0
    %2504 = vmatmul.mubr.bf16.gmra.mrb[0].mxu0 %v2461
    %v2505 = vpop.f32.mrb[0].mxu0
    %v2506 = vadd.f32 %v2443, %v2505
    %v2507 = vpop.f32.mrb[0].mxu0
    %v2508 = vpop.f32.mrb[0].mxu0
    %v2509 = vadd.f32 %v2443, %v2508
    %v2510 = vpop.f32.mrb[0].mxu0
    %2511 = vdwg.mxu0
    %v2512 = vmax.f32 %v2498, 0.0
    %v2513 = vmax.f32 %v2501, 0.0
    %v2514 = vmax.f32 %v2506, 0.0
    %v2515 = vmax.f32 %v2509, 0.0
    %v2516 = vpack.c.bf16 %v2513, %v2512
    %v2517 = vpack.c.bf16 %v2515, %v2514
    %s2518 = scalar_lea.vmem %s12, 32
    %v2519 = vld [vmem:[%s2518] sm:$0xf]
    %v2520 = vld [vmem:[%s2518 + $0x4] sm:$0xf]
    %v2521 = vld [vmem:[%s2518 + $0x8] sm:$0xf]
    %v2522 = vld [vmem:[%s2518 + $0xc] sm:$0xf]
    %v2523 = vld [vmem:[%s2518 + $0x10] sm:$0xf]
    %v2524 = vld [vmem:[%s2518 + $0x14] sm:$0xf]
    %v2525 = vld [vmem:[%s2518 + $0x18] sm:$0xf]
    %v2526 = vld [vmem:[%s2518 + $0x1c] sm:$0xf]
    %s2527 = scalar_lea.vmem [#allocation19], 1
    %v2528 = vld [vmem:[%s2527] sm:$0x1]
    %v2530 = vlaneseq
    %v2531 = vshrl.u32 %v2530, 7
    %v2532 = vsub.s32 0, %v2531
    %v2533 = vrot.slane %v2528, %v2532
    %v2543 = vunpack.c.l.b16 %v2519
    %v2544 = vunpack.c.l.b16 %v2520
    %v2545 = vunpack.c.l.b16 %v2521
    %v2546 = vunpack.c.l.b16 %v2522
    %v2547 = vunpack.c.l.b16 %v2523
    %v2548 = vunpack.c.l.b16 %v2524
    %v2549 = vunpack.c.l.b16 %v2525
    %v2550 = vunpack.c.l.b16 %v2526
    %v2551 = vpack.c.b16 %v2544, %v2543
    %v2552 = vpack.c.b16 %v2546, %v2545
    %v2553 = vpack.c.b16 %v2548, %v2547
    %v2554 = vpack.c.b16 %v2550, %v2549
    %v2560 = vsel %vm1417, %v2516, 0
    %v2563 = vsel %vm1417, %v2517, 0
    %2565 = vmatprep.subr.bf16.mxu0 0
    %2566 = vmatpush1.bf16.msra.mxu0 %v2551
    %2567 = vmatprep.subr.bf16.mxu0 0
    %2568 = vmatpush1.bf16.msra.mxu0 %v2552
    %2569 = vmatprep.subr.bf16.mxu0 0
    %2570 = vmatpush1.bf16.msra.mxu0 %v2553
    %2571 = vmatprep.subr.bf16.mxu0 0
    %2572 = vmatpush1.bf16.msra.mxu0 %v2554
    %2573 = vmatprep.subr.bf16.mxu0 0
    %2574 = vmatpush1.bf16.msra.mxu0 0
    %2575 = vmatprep.subr.bf16.mxu0 0
    %2576 = vmatpush1.bf16.msra.mxu0 0
    %2577 = vmatprep.subr.bf16.mxu0 0
    %2578 = vmatpush1.bf16.msra.mxu0 0
    %2579 = vmatprep.subr.bf16.mxu0 0
    %2580 = vmatpush1.bf16.msra.mxu0 0
    %2581 = vmatprep.subr.bf16.mxu0 0
    %2582 = vmatpush1.bf16.msra.mxu0 0
    %2583 = vmatprep.subr.bf16.mxu0 0
    %2584 = vmatpush1.bf16.msra.mxu0 0
    %2585 = vmatprep.subr.bf16.mxu0 0
    %2586 = vmatpush1.bf16.msra.mxu0 0
    %2587 = vmatprep.subr.bf16.mxu0 0
    %2588 = vmatpush1.bf16.msra.mxu0 0
    %2589 = vmatprep.subr.bf16.mxu0 0
    %2590 = vmatpush1.bf16.msra.mxu0 0
    %2591 = vmatprep.subr.bf16.mxu0 0
    %2592 = vmatpush1.bf16.msra.mxu0 0
    %2593 = vmatprep.subr.bf16.mxu0 0
    %2594 = vmatpush1.bf16.msra.mxu0 0
    %2595 = vmatprep.subr.bf16.mxu0 0
    %2596 = vmatpush1.bf16.msra.mxu0 0
    %2597 = vmatprep.mubr.bf16.mxu0 0
    %2598 = vmatmul.mubr.bf16.gmra.mrb[0].mxu0 %v2560
    %v2599 = vpop.f32.mrb[0].mxu0
    %v2600 = vadd.f32 %v2533, %v2599
    %v2601 = vpop.f32.mrb[0].mxu0
    %v2602 = vpop.f32.mrb[0].mxu0
    %v2603 = vadd.f32 %v2533, %v2602
    %v2604 = vpop.f32.mrb[0].mxu0
    %2605 = vmatprep.mubr.bf16.mxu0 0
    %2606 = vmatmul.mubr.bf16.gmra.mrb[0].mxu0 %v2563
    %v2607 = vpop.f32.mrb[0].mxu0
    %v2608 = vadd.f32 %v2533, %v2607
    %v2609 = vpop.f32.mrb[0].mxu0
    %v2610 = vpop.f32.mrb[0].mxu0
    %v2611 = vadd.f32 %v2533, %v2610
    %v2612 = vpop.f32.mrb[0].mxu0
    %2613 = vdwg.mxu0
    %v2614 = vadd.f32 %v2600, %v2426
    %v2615 = vadd.f32 %v2603, %v2427
    %v2616 = vadd.f32 %v2608, %v2428
    %v2617 = vadd.f32 %v2611, %v2429
    %v2618 = vsel %vm300, %v2614, 0.0
    %2619 = vadd.xlane.f32.xlu0 %v2618
    %v2620 = vpop.xlane.xlu0 %2619
    %v2621 = vsel %vm300, %v2615, 0.0
    %2622 = vadd.xlane.f32.xlu0 %v2621
    %v2623 = vpop.xlane.xlu0 %2622
    %v2624 = vsel %vm300, %v2616, 0.0
    %2625 = vadd.xlane.f32.xlu0 %v2624
    %v2626 = vpop.xlane.xlu0 %2625
    %v2627 = vsel %vm300, %v2617, 0.0
    %2628 = vadd.xlane.f32.xlu0 %v2627
    %v2629 = vpop.xlane.xlu0 %2628
    %v2630 = vmul.f32 %v2620, %v1205
    %v2631 = vmul.f32 %v2623, %v1205
    %v2632 = vmul.f32 %v2626, %v1205
    %v2633 = vmul.f32 %v2629, %v1205
    %v2634 = vsub.f32 %v2614, %v2630
    %v2635 = vsub.f32 %v2615, %v2631
    %v2636 = vsub.f32 %v2616, %v2632
    %v2637 = vsub.f32 %v2617, %v2633
    %v2638 = vmul.f32 %v2634, %v2634
    %v2639 = vmul.f32 %v2635, %v2635
    %v2640 = vmul.f32 %v2636, %v2636
    %v2641 = vmul.f32 %v2637, %v2637
    %v2642 = vsel %vm300, %v2638, 0.0
    %2643 = vadd.xlane.f32.xlu0 %v2642
    %v2644 = vpop.xlane.xlu0 %2643
    %v2645 = vsel %vm300, %v2639, 0.0
    %2646 = vadd.xlane.f32.xlu0 %v2645
    %v2647 = vpop.xlane.xlu0 %2646
    %v2648 = vsel %vm300, %v2640, 0.0
    %2649 = vadd.xlane.f32.xlu0 %v2648
    %v2650 = vpop.xlane.xlu0 %2649
    %v2651 = vsel %vm300, %v2641, 0.0
    %2652 = vadd.xlane.f32.xlu0 %v2651
    %v2653 = vpop.xlane.xlu0 %2652
    %v2654 = vmul.f32 %v2644, %v1205
    %v2655 = vmul.f32 %v2647, %v1205
    %v2656 = vmul.f32 %v2650, %v1205
    %v2657 = vmul.f32 %v2653, %v1205
    %v2658 = vadd.f32 %v2654, 1e-05
    %v2659 = vadd.f32 %v2655, 1e-05
    %v2660 = vadd.f32 %v2656, 1e-05
    %v2661 = vadd.f32 %v2657, 1e-05
    %v2662 = vrsqrt.pop %v2658
    %v2663 = vrsqrt.pop %v2659
    %v2664 = vrsqrt.pop %v2660
    %v2665 = vrsqrt.pop %v2661
    %v2666 = vmul.f32 %v2634, %v2662
    %v2667 = vmul.f32 %v2635, %v2663
    %v2668 = vmul.f32 %v2636, %v2664
    %v2669 = vmul.f32 %v2637, %v2665
    %s2670 = scalar_lea.vmem %s14, 1
    %v2671 = vld [vmem:[%s2670] sm:$0x1]
    %v2673 = vlaneseq
    %v2674 = vshrl.u32 %v2673, 7
    %v2675 = vsub.s32 0, %v2674
    %v2676 = vrot.slane %v2671, %v2675
    %v2678 = vmul.f32 %v2666, %v2676
    %v2679 = vmul.f32 %v2667, %v2676
    %v2680 = vmul.f32 %v2668, %v2676
    %v2681 = vmul.f32 %v2669, %v2676
    %s2682 = scalar_lea.vmem %s15, 1
    %v2683 = vld [vmem:[%s2682] sm:$0x1]
    %v2685 = vlaneseq
    %v2686 = vshrl.u32 %v2685, 7
    %v2687 = vsub.s32 0, %v2686
    %v2688 = vrot.slane %v2683, %v2687
    %v2690 = vadd.f32 %v2678, %v2688
    %v2691 = vadd.f32 %v2679, %v2688
    %v2692 = vadd.f32 %v2680, %v2688
    %v2693 = vadd.f32 %v2681, %v2688
    %v2694 = vmul.f32 %v2690, %v1271
    %v2695 = vmul.f32 %v2691, %v1276
    %v2696 = vmul.f32 %v2692, %v1281
    %v2697 = vmul.f32 %v2693, %v1286
    %v2698 = vld [vmem:[#allocation20] sm:$0x1]
    %v2699 = vld [vmem:[%s18] sm:$0xf]
    %v2700 = vld [vmem:[%s18 + $0x4] sm:$0xf]
    %v2701 = vld [vmem:[%s18 + $0x8] sm:$0xf]
    %v2702 = vld [vmem:[%s18 + $0xc] sm:$0xf]
    %v2703 = vpack.c.bf16 %v2695, %v2694
    %v2704 = vld [vmem:[#allocation4] sm:$0x1]
    %2706 = vset.pattern.permute.xlu0 0
    %2707 = vperm.xlu0 %2706, %v2704
    %v2708 = vpop.permute.xlu0 %2707
    %v2710 = vlaneseq
    %v2711 = vshrl.u32 %v2710, 7
    %v2712 = vsub.s32 0, %v2711
    %v2713 = vrot.slane %v2708, %v2712
    %v2715 = vsel %vm244, %v2698, 0
    %2717 = vmatprep.subr.bf16.mxu0 0
    %2718 = vmatpush1.bf16.msra.mxu0 %v2703
    %2719 = vmatprep.subr.bf16.mxu0 0
    %2720 = vmatpush1.bf16.msra.mxu0 0
    %2721 = vmatprep.subr.bf16.mxu0 0
    %2722 = vmatpush1.bf16.msra.mxu0 0
    %2723 = vmatprep.subr.bf16.mxu0 0
    %2724 = vmatpush1.bf16.msra.mxu0 0
    %2725 = vmatprep.subr.bf16.mxu0 0
    %2726 = vmatpush1.bf16.msra.mxu0 0
    %2727 = vmatprep.subr.bf16.mxu0 0
    %2728 = vmatpush1.bf16.msra.mxu0 0
    %2729 = vmatprep.subr.bf16.mxu0 0
    %2730 = vmatpush1.bf16.msra.mxu0 0
    %2731 = vmatprep.subr.bf16.mxu0 0
    %2732 = vmatpush1.bf16.msra.mxu0 0
    %2733 = vmatprep.subr.bf16.mxu0 0
    %2734 = vmatpush1.bf16.msra.mxu0 0
    %2735 = vmatprep.subr.bf16.mxu0 0
    %2736 = vmatpush1.bf16.msra.mxu0 0
    %2737 = vmatprep.subr.bf16.mxu0 0
    %2738 = vmatpush1.bf16.msra.mxu0 0
    %2739 = vmatprep.subr.bf16.mxu0 0
    %2740 = vmatpush1.bf16.msra.mxu0 0
    %2741 = vmatprep.subr.bf16.mxu0 0
    %2742 = vmatpush1.bf16.msra.mxu0 0
    %2743 = vmatprep.subr.bf16.mxu0 0
    %2744 = vmatpush1.bf16.msra.mxu0 0
    %2745 = vmatprep.subr.bf16.mxu0 0
    %2746 = vmatpush1.bf16.msra.mxu0 0
    %2747 = vmatprep.subr.bf16.mxu0 0
    %2748 = vmatpush1.bf16.msra.mxu0 0
    %2749 = vmatprep.mubr.bf16.mxu0 0
    %2750 = vmatmul.mubr.bf16.gmra.mrb[0].mxu0 %v2715
    %v2751 = vpop.f32.mrb[0].mxu0
    %v2752 = vadd.f32 %v2713, %v2751
    %v2753 = vpop.f32.mrb[0].mxu0
    %v2754 = vpop.f32.mrb[0].mxu0
    %v2755 = vpop.f32.mrb[0].mxu0
    %2756 = vdwg.mxu0
    %vm2757 = vcmask 253952
    %2758 = vst.msk [vmem:[#allocation22] sm:$0x1] %vm2757, %v2752
    %v2759 = vpack.c.bf16 %v2752, %v2752
    %v2760 = vld [vmem:[%s19] sm:$0x1]
    %v2765 = vunpack.c.l.b16 %v2699
    %v2766 = vunpack.c.l.b16 %v2700
    %v2767 = vunpack.c.l.b16 %v2701
    %v2768 = vunpack.c.l.b16 %v2702
    %v2769 = vpack.c.b16 %v2766, %v2765
    %v2770 = vpack.c.b16 %v2768, %v2767
    %v2774 = vsel %vm300, %v2759, 0
    %2776 = vmatprep.subr.bf16.mxu0 0
    %2777 = vmatpush1.bf16.msra.mxu0 %v2769
    %2778 = vmatprep.subr.bf16.mxu0 0
    %2779 = vmatpush1.bf16.msra.mxu0 %v2770
    %2780 = vmatprep.subr.bf16.mxu0 0
    %2781 = vmatpush1.bf16.msra.mxu0 0
    %2782 = vmatprep.subr.bf16.mxu0 0
    %2783 = vmatpush1.bf16.msra.mxu0 0
    %2784 = vmatprep.subr.bf16.mxu0 0
    %2785 = vmatpush1.bf16.msra.mxu0 0
    %2786 = vmatprep.subr.bf16.mxu0 0
    %2787 = vmatpush1.bf16.msra.mxu0 0
    %2788 = vmatprep.subr.bf16.mxu0 0
    %2789 = vmatpush1.bf16.msra.mxu0 0
    %2790 = vmatprep.subr.bf16.mxu0 0
    %2791 = vmatpush1.bf16.msra.mxu0 0
    %2792 = vmatprep.subr.bf16.mxu0 0
    %2793 = vmatpush1.bf16.msra.mxu0 0
    %2794 = vmatprep.subr.bf16.mxu0 0
    %2795 = vmatpush1.bf16.msra.mxu0 0
    %2796 = vmatprep.subr.bf16.mxu0 0
    %2797 = vmatpush1.bf16.msra.mxu0 0
    %2798 = vmatprep.subr.bf16.mxu0 0
    %2799 = vmatpush1.bf16.msra.mxu0 0
    %2800 = vmatprep.subr.bf16.mxu0 0
    %2801 = vmatpush1.bf16.msra.mxu0 0
    %2802 = vmatprep.subr.bf16.mxu0 0
    %2803 = vmatpush1.bf16.msra.mxu0 0
    %2804 = vmatprep.subr.bf16.mxu0 0
    %2805 = vmatpush1.bf16.msra.mxu0 0
    %2806 = vmatprep.subr.bf16.mxu0 0
    %2807 = vmatpush1.bf16.msra.mxu0 0
    %2808 = vmatprep.mubr.bf16.mxu0 0
    %2809 = vmatmul.mubr.bf16.gmra.mrb[0].mxu0 %v2774
    %v2810 = vpop.f32.mrb[0].mxu0
    %v2811 = vadd.f32 %v2760, %v2810
    %v2812 = vpop.f32.mrb[0].mxu0
    %v2813 = vpop.f32.mrb[0].mxu0
    %v2814 = vpop.f32.mrb[0].mxu0
    %2815 = vdwg.mxu0
    %vm2816 = vcmask 8192
    %2817 = vst.msk [vmem:[#allocation23] sm:$0x1] %vm2816, %v2811
    %v2818 = vsel %vm2816, %v2811, -inf
    %2819 = vmax.xlane.f32.xlu0 %v2818
    %v2820 = vpop.xlane.xlu0 %2819
    %v2821 = vsub.f32 %v2811, %v2820
    %v2822 = vmul.f32 %v2821, 1.442695
    %v2823 = vpow.pop %v2822
    %v2824 = vsel %vm2816, %v2823, 0.0
    %2825 = vadd.xlane.f32.xlu0 %v2824
    %v2826 = vpop.xlane.xlu0 %2825
    %v2827 = vrcp.pop %v2826
    %v2828 = vmul.f32 %v2823, %v2827
    %2829 = vst.msk [vmem:[#allocation25] sm:$0x1] %vm2816, %v2828
    %v2830 = vpack.c.bf16 %v2697, %v2696
    %v2831 = vld [vmem:[#allocation4] sm:$0x1]
    %2833 = vset.pattern.permute.xlu0 0
    %2834 = vperm.xlu0 %2833, %v2831
    %v2835 = vpop.permute.xlu0 %2834
    %v2837 = vlaneseq
    %v2838 = vshrl.u32 %v2837, 7
    %v2839 = vsub.s32 0, %v2838
    %v2840 = vrot.slane %v2835, %v2839
    %2841 = vmatprep.subr.bf16.mxu0 0
    %2842 = vmatpush1.bf16.msra.mxu0 %v2830
    %2843 = vmatprep.subr.bf16.mxu0 0
    %2844 = vmatpush1.bf16.msra.mxu0 0
    %2845 = vmatprep.subr.bf16.mxu0 0
    %2846 = vmatpush1.bf16.msra.mxu0 0
    %2847 = vmatprep.subr.bf16.mxu0 0
    %2848 = vmatpush1.bf16.msra.mxu0 0
    %2849 = vmatprep.subr.bf16.mxu0 0
    %2850 = vmatpush1.bf16.msra.mxu0 0
    %2851 = vmatprep.subr.bf16.mxu0 0
    %2852 = vmatpush1.bf16.msra.mxu0 0
    %2853 = vmatprep.subr.bf16.mxu0 0
    %2854 = vmatpush1.bf16.msra.mxu0 0
    %2855 = vmatprep.subr.bf16.mxu0 0
    %2856 = vmatpush1.bf16.msra.mxu0 0
    %2857 = vmatprep.subr.bf16.mxu0 0
    %2858 = vmatpush1.bf16.msra.mxu0 0
    %2859 = vmatprep.subr.bf16.mxu0 0
    %2860 = vmatpush1.bf16.msra.mxu0 0
    %2861 = vmatprep.subr.bf16.mxu0 0
    %2862 = vmatpush1.bf16.msra.mxu0 0
    %2863 = vmatprep.subr.bf16.mxu0 0
    %2864 = vmatpush1.bf16.msra.mxu0 0
    %2865 = vmatprep.subr.bf16.mxu0 0
    %2866 = vmatpush1.bf16.msra.mxu0 0
    %2867 = vmatprep.subr.bf16.mxu0 0
    %2868 = vmatpush1.bf16.msra.mxu0 0
    %2869 = vmatprep.subr.bf16.mxu0 0
    %2870 = vmatpush1.bf16.msra.mxu0 0
    %2871 = vmatprep.subr.bf16.mxu0 0
    %2872 = vmatpush1.bf16.msra.mxu0 0
    %2873 = vmatprep.mubr.bf16.mxu0 0
    %2874 = vmatmul.mubr.bf16.gmra.mrb[0].mxu0 %v2715
    %v2875 = vpop.f32.mrb[0].mxu0
    %v2876 = vadd.f32 %v2840, %v2875
    %v2877 = vpop.f32.mrb[0].mxu0
    %v2878 = vpop.f32.mrb[0].mxu0
    %v2879 = vpop.f32.mrb[0].mxu0
    %2880 = vdwg.mxu0
    %s2881 = scalar_lea.vmem [#allocation22], 1
    %2882 = vst.msk [vmem:[%s2881] sm:$0x1] %vm2757, %v2876
    %v2883 = vpack.c.bf16 %v2876, %v2876
    %v2884 = vld [vmem:[%s19] sm:$0x1]
    %v2886 = vsel %vm300, %v2883, 0
    %2888 = vmatprep.subr.bf16.mxu0 0
    %2889 = vmatpush1.bf16.msra.mxu0 %v2769
    %2890 = vmatprep.subr.bf16.mxu0 0
    %2891 = vmatpush1.bf16.msra.mxu0 %v2770
    %2892 = vmatprep.subr.bf16.mxu0 0
    %2893 = vmatpush1.bf16.msra.mxu0 0
    %2894 = vmatprep.subr.bf16.mxu0 0
    %2895 = vmatpush1.bf16.msra.mxu0 0
    %2896 = vmatprep.subr.bf16.mxu0 0
    %2897 = vmatpush1.bf16.msra.mxu0 0
    %2898 = vmatprep.subr.bf16.mxu0 0
    %2899 = vmatpush1.bf16.msra.mxu0 0
    %2900 = vmatprep.subr.bf16.mxu0 0
    %2901 = vmatpush1.bf16.msra.mxu0 0
    %2902 = vmatprep.subr.bf16.mxu0 0
    %2903 = vmatpush1.bf16.msra.mxu0 0
    %2904 = vmatprep.subr.bf16.mxu0 0
    %2905 = vmatpush1.bf16.msra.mxu0 0
    %2906 = vmatprep.subr.bf16.mxu0 0
    %2907 = vmatpush1.bf16.msra.mxu0 0
    %2908 = vmatprep.subr.bf16.mxu0 0
    %2909 = vmatpush1.bf16.msra.mxu0 0
    %2910 = vmatprep.subr.bf16.mxu0 0
    %2911 = vmatpush1.bf16.msra.mxu0 0
    %2912 = vmatprep.subr.bf16.mxu0 0
    %2913 = vmatpush1.bf16.msra.mxu0 0
    %2914 = vmatprep.subr.bf16.mxu0 0
    %2915 = vmatpush1.bf16.msra.mxu0 0
    %2916 = vmatprep.subr.bf16.mxu0 0
    %2917 = vmatpush1.bf16.msra.mxu0 0
    %2918 = vmatprep.subr.bf16.mxu0 0
    %2919 = vmatpush1.bf16.msra.mxu0 0
    %2920 = vmatprep.mubr.bf16.mxu0 0
    %2921 = vmatmul.mubr.bf16.gmra.mrb[0].mxu0 %v2886
    %v2922 = vpop.f32.mrb[0].mxu0
    %v2923 = vadd.f32 %v2884, %v2922
    %v2924 = vpop.f32.mrb[0].mxu0
    %v2925 = vpop.f32.mrb[0].mxu0
    %v2926 = vpop.f32.mrb[0].mxu0
    %2927 = vdwg.mxu0
    %2928 = vst.msk [vmem:[#allocation23 + $0x1] sm:$0x1] %vm2816, %v2923
    %v2929 = vsel %vm2816, %v2923, -inf
    %2930 = vmax.xlane.f32.xlu0 %v2929
    %v2931 = vpop.xlane.xlu0 %2930
    %v2932 = vsub.f32 %v2923, %v2931
    %v2933 = vmul.f32 %v2932, 1.442695
    %v2934 = vpow.pop %v2933
    %v2935 = vsel %vm2816, %v2934, 0.0
    %2936 = vadd.xlane.f32.xlu0 %v2935
    %v2937 = vpop.xlane.xlu0 %2936
    %v2938 = vrcp.pop %v2937
    %v2939 = vmul.f32 %v2934, %v2938
    %2940 = vst.msk [vmem:[#allocation25 + $0x1] sm:$0x1] %vm2816, %v2939
    // Predicated region
    $region122: #{_lambda_.1} parent=1 // pred_check
      _
    $region123: #{_lambda_.1} parent=1 // pred_check_branch
      %2942 = sbr.rel (0) target = $region125
    $region124: #{_lambda_.1} parent=1 // pred_region
      %s2944 = ssub.s32 32, 32
      %2945 = vsyncadd [#allocation7], %s2944
      %s2946 = sshll.u32 [#allocation22], 4
      %s2947 = int_to_ptr.vmem [resolvable:$true] %s2946
      %2952 = dma.vmem_to_hbm [thread:$0]  %s2947, 32, %s20, [#allocation7], 16, 16, 1
    $region125: #{_lambda_.1} parent=1 // pred_fallthru
      _
    // Predicated region
    $region126: #{_lambda_.1} parent=1 // pred_check
      _
    $region127: #{_lambda_.1} parent=1 // pred_check_branch
      %2954 = sbr.rel (0) target = $region129
    $region128: #{_lambda_.1} parent=1 // pred_region
      %s2956 = ssub.s32 32, 32
      %2957 = vsyncadd [#allocation24], %s2956
      %s2959 = sshll.u32 [#allocation23], 4
      %s2960 = int_to_ptr.vmem [resolvable:$true] %s2959
      %2962 = dma.vmem_to_hbm [thread:$0]  %s2960, 32, %s21, [#allocation24]
    $region129: #{_lambda_.1} parent=1 // pred_fallthru
      _
    // Predicated region
    $region130: #{_lambda_.1} parent=1 // pred_check
      _
    $region131: #{_lambda_.1} parent=1 // pred_check_branch
      %2964 = sbr.rel (0) target = $region133
    $region132: #{_lambda_.1} parent=1 // pred_region
      %s2966 = ssub.s32 32, 32
      %2967 = vsyncadd [#allocation24], %s2966
      %s2969 = sshll.u32 [#allocation25], 4
      %s2970 = int_to_ptr.vmem [resolvable:$true] %s2969
      %2972 = dma.vmem_to_hbm [thread:$0]  %s2970, 32, %s22, [#allocation24]
    $region133: #{_lambda_.1} parent=1 // pred_fallthru
      _
    // Predicated region
    $region134: #{_lambda_.1} parent=1 // pred_check
      _
    $region135: #{_lambda_.1} parent=1 // pred_check_branch
      %2974 = sbr.rel (0) target = $region137
    $region136: #{_lambda_.1} parent=1 // pred_region
      %2975 = dma.done [#allocation7], 32
    $region137: #{_lambda_.1} parent=1 // pred_fallthru
      _
    // Predicated region
    $region138: #{_lambda_.1} parent=1 // pred_check
      _
    $region139: #{_lambda_.1} parent=1 // pred_check_branch
      %2977 = sbr.rel (0) target = $region141
    $region140: #{_lambda_.1} parent=1 // pred_region
      %2978 = dma.done [#allocation24], 32
    $region141: #{_lambda_.1} parent=1 // pred_fallthru
      _
    // Predicated region
    $region142: #{_lambda_.1} parent=1 // pred_check
      _
    $region143: #{_lambda_.1} parent=1 // pred_check_branch
      %2980 = sbr.rel (0) target = $region145
    $region144: #{_lambda_.1} parent=1 // pred_region
      %2981 = dma.done [#allocation24], 32
    $region145: #{_lambda_.1} parent=1 // pred_fallthru
      _
    %2982 = vsyncpa [#allocation6], 1
    %2983 = vsyncpa [#allocation9], 1
    %2984 = vsyncpa [#allocation12], 1
    %2985 = vsyncpa [#allocation15], 1
    %2986 = vsyncpa [#allocation18], 1
    %2987 = vsyncpa [#allocation21], 1
    %2988 = vsyncpa [#allocation7], 1
    %2989 = vsyncpa [#allocation24], 1

</llo_original>
